<compile_context>
chip_gen: v7x
topology: tpu7x:2x2x1
jax: 0.10.0
libtpu: 0.0.40
codegen_flags: <defaults>
</compile_context>

<pallas_src>
import functools
import math

import jax
import jax.numpy as jnp
from jax import lax
from jax.experimental import pallas as pl
from jax.experimental.pallas import tpu as pltpu


# ------------------------- LSTM stack kernel (grid = layer) -------------------
def _lstm_stack_kernel(z_ref, wih_ref, whh_ref, b_ref, h0_ref, c0_ref,
                       act_ref, hn_ref, cn_ref,
                       gates_sc, h_sc, c_sc,
                       *, seq_len, b_pad, d_model, compute_dtype, unroll):
    """Grid axis 0 = layer (sequential).

    z_ref:    (T*B_pad, D) bf16  embedded tokens, time-major rows (r = t*B_pad + b)
    wih_ref:  (1, D, 4D)  bf16   this layer's W_ih^T (cols = [i|f|g|o])
    whh_ref:  (1, D, 4D)  bf16   this layer's W_hh^T
    b_ref:    (1, 1, 4D)  f32    b_ih + b_hh
    h0/c0:    (1, B_pad, D) f32  initial state for this layer
    act_ref:  (T*B_pad, D) f32   output: last layer's hidden states; also the
                                 VMEM-resident inter-layer activation buffer
    hn/cn:    (1, B_pad, D) f32  final state for this layer
    gates_sc: (T*B_pad, 4D) f32  hoisted input projection + bias
    h_sc/c_sc:(B_pad, D) f32     recurrent carry
    """
    l = pl.program_id(0)
    D = d_model
    D4 = 4 * D

    wih = wih_ref[0]                                    # (D, 4D) bf16
    whh = whh_ref[0]                                    # (D, 4D) bf16
    bias = b_ref[0]                                     # (1, 4D) f32

    # ---- Hoisted input projection: one MXU-friendly matmul per layer. --------
    # Layer 0 reads the embedded tokens directly (no scratch copy); deeper
    # layers read the previous layer's activations already resident in act_ref.
    @pl.when(l == 0)
    def _():
        gates_sc[...] = jnp.dot(z_ref[...], wih,
                                preferred_element_type=jnp.float32) + bias

    @pl.when(l > 0)
    def _():
        gates_sc[...] = jnp.dot(act_ref[...].astype(compute_dtype), wih,
                                preferred_element_type=jnp.float32) + bias

    h_sc[...] = h0_ref[0]
    c_sc[...] = c0_ref[0]

    # Fused nonlinearity constants (hoisted out of the time loop; JAX does not
    # CSE broadcasts):  sigmoid(x) = 0.5*tanh(0.5*x) + 0.5 for i/f/o columns,
    # plain tanh for g columns -> one tanh pass over (B_pad, 4D).
    col = lax.broadcasted_iota(jnp.int32, (1, D4), 1)
    is_g = jnp.logical_and(col >= 2 * D, col < 3 * D)
    pre = jnp.broadcast_to(
        jnp.where(is_g, 1.0, 0.5).astype(jnp.float32), (b_pad, D4))
    post_scale = pre                                    # same 0.5 / 1.0 pattern
    post_shift = jnp.broadcast_to(
        jnp.where(is_g, 0.0, 0.5).astype(jnp.float32), (b_pad, D4))

    # ---- Sequential recurrence: only h_prev @ W_hh^T per step. ---------------
    # TODO(synk): keep W_hh resident in MXU weight registers with
    #             pltpu.matmul_push_rhs / matmul_acc_lhs / matmul_pop.
    def step(t, carry):
        row = pl.multiple_of(t * b_pad, b_pad)          # sublane-aligned offset
        h_prev = h_sc[...]
        c_prev = c_sc[...]
        gates = gates_sc[pl.ds(row, b_pad), :] + jnp.dot(
            h_prev.astype(compute_dtype), whh,
            preferred_element_type=jnp.float32)         # (B_pad, 4D) f32

        tanh_all = jnp.tanh(gates * pre)                # single EUP pass
        acts = tanh_all * post_scale + post_shift       # i/f/o -> sigmoid, g -> tanh
        i_g = acts[:, 0:D]
        f_g = acts[:, D:2 * D]
        g_g = acts[:, 2 * D:3 * D]
        o_g = acts[:, 3 * D:4 * D]

        c_new = f_g * c_prev + i_g * g_g
        h_new = o_g * jnp.tanh(c_new)

        h_sc[...] = h_new
        c_sc[...] = c_new
        act_ref[pl.ds(row, b_pad), :] = h_new           # next layer's input
        return carry

    lax.fori_loop(0, seq_len, step, 0, unroll=unroll)

    # Final states: written once per layer (not per timestep).
    hn_ref[0] = h_sc[...]
    cn_ref[0] = c_sc[...]


def _lstm_stack_call(z2d, w_ih_t, w_hh_t, bias, h0, c0, *, seq_len, b_pad,
                     unroll):
    L, D, D4 = w_ih_t.shape
    TB = seq_len * b_pad

    kernel = functools.partial(
        _lstm_stack_kernel, seq_len=seq_len, b_pad=b_pad, d_model=D,
        compute_dtype=w_ih_t.dtype, unroll=unroll)

    grid_spec = pltpu.PrefetchScalarGridSpec(
        num_scalar_prefetch=0,
        grid=(L,),
        in_specs=[
            pl.BlockSpec((TB, D), lambda l: (0, 0)),            # embedded tokens
            pl.BlockSpec((1, D, D4), lambda l: (l, 0, 0)),      # W_ih^T[l]
            pl.BlockSpec((1, D, D4), lambda l: (l, 0, 0)),      # W_hh^T[l]
            pl.BlockSpec((1, 1, D4), lambda l: (l, 0, 0)),      # bias[l]
            pl.BlockSpec((1, b_pad, D), lambda l: (l, 0, 0)),   # h0[l]
            pl.BlockSpec((1, b_pad, D), lambda l: (l, 0, 0)),   # c0[l]
        ],
        out_specs=[
            pl.BlockSpec((TB, D), lambda l: (0, 0)),            # activations
            pl.BlockSpec((1, b_pad, D), lambda l: (l, 0, 0)),   # h_n[l]
            pl.BlockSpec((1, b_pad, D), lambda l: (l, 0, 0)),   # c_n[l]
        ],
        scratch_shapes=[
            pltpu.VMEM((TB, D4), jnp.float32),      # hoisted input-proj gates
            pltpu.VMEM((b_pad, D), jnp.float32),    # h carry
            pltpu.VMEM((b_pad, D), jnp.float32),    # c carry
        ],
    )
    out_shapes = (
        jax.ShapeDtypeStruct((TB, D), jnp.float32),
        jax.ShapeDtypeStruct((L, b_pad, D), jnp.float32),
        jax.ShapeDtypeStruct((L, b_pad, D), jnp.float32),
    )
    return pl.pallas_call(
        kernel,
        out_shape=out_shapes,
        grid_spec=grid_spec,
        compiler_params=pltpu.CompilerParams(
            dimension_semantics=("arbitrary",),     # layers are sequential
            vmem_limit_bytes=64 * 1024 * 1024),     # v5e default (16 MiB) is small
    )(z2d, w_ih_t, w_hh_t, bias, h0, c0)


# ------------------------------ linear head kernel ----------------------------
def _head_kernel(act_ref, wo_ref, bo_ref, logits_ref, *, compute_dtype):
    logits_ref[...] = (
        jnp.dot(act_ref[...].astype(compute_dtype), wo_ref[...],
                preferred_element_type=jnp.float32)
        + bo_ref[...]
    ).astype(logits_ref.dtype)


def _head_row_tile(tb, max_rows=512):
    best = 8
    r = 8
    while r <= min(tb, max_rows):
        if tb % r == 0:
            best = r
        r += 8
    return best


def _head_call(act2d, head_w_t, head_b2d, *, logits_dtype):
    TB, D = act2d.shape
    V = head_w_t.shape[1]
    tile = _head_row_tile(TB)

    kernel = functools.partial(_head_kernel, compute_dtype=head_w_t.dtype)
    grid_spec = pltpu.PrefetchScalarGridSpec(
        num_scalar_prefetch=0,
        grid=(TB // tile,),
        in_specs=[
            pl.BlockSpec((tile, D), lambda i: (i, 0)),
            pl.BlockSpec((D, V), lambda i: (0, 0)),
            pl.BlockSpec((1, V), lambda i: (0, 0)),
        ],
        out_specs=pl.BlockSpec((tile, V), lambda i: (i, 0)),
    )
    return pl.pallas_call(
        kernel,
        out_shape=jax.ShapeDtypeStruct((TB, V), logits_dtype),
        grid_spec=grid_spec,
        compiler_params=pltpu.CompilerParams(
            dimension_semantics=("parallel",),      # row tiles are independent
            vmem_limit_bytes=64 * 1024 * 1024),
    )(act2d, head_w_t, head_b2d)


# --------------------------------- model glue ----------------------------------
def _pad_axis(a, size, axis):
    pad = size - a.shape[axis]
    if pad <= 0:
        return a
    widths = [(0, 0)] * a.ndim
    widths[axis] = (0, pad)
    return jnp.pad(a, widths)


def init_params(key, ntok, d_model, nlayers, weight_dtype=jnp.bfloat16):
    keys = jax.random.split(key, 3 + 4 * nlayers)
    scale = 1.0 / math.sqrt(d_model)

    embed = jax.random.normal(keys[0], (ntok, d_model), jnp.float32) * 0.02
    embed = embed.at[0].set(0.0)  # padding_idx=0

    wih, whh, bias = [], [], []
    for l in range(nlayers):
        k = keys[3 + 4 * l: 3 + 4 * (l + 1)]
        wih.append(jax.random.uniform(k[0], (d_model, 4 * d_model), jnp.float32,
                                      -scale, scale))
        whh.append(jax.random.uniform(k[1], (d_model, 4 * d_model), jnp.float32,
                                      -scale, scale))
        b_ih = jax.random.uniform(k[2], (4 * d_model,), jnp.float32, -scale, scale)
        b_hh = jax.random.uniform(k[3], (4 * d_model,), jnp.float32, -scale, scale)
        bias.append(b_ih + b_hh)

    return {
        "embed": embed,                                           # f32
        "w_ih_t": jnp.stack(wih).astype(weight_dtype),            # (L, D, 4D)
        "w_hh_t": jnp.stack(whh).astype(weight_dtype),            # (L, D, 4D)
        "bias": jnp.stack(bias)[:, None, :],                      # (L, 1, 4D) f32
        "head_w_t": (jax.random.normal(keys[1], (d_model, ntok), jnp.float32)
                     * 0.02).astype(weight_dtype),                # (D, V)
        "head_b": jax.random.normal(keys[2], (ntok,), jnp.float32) * 0.02,
    }


def music_lstm_forward(params, x_ids, h=None):
    """x_ids: (B, T) int32 token ids.

    Returns (logits (B, T, ntok) bf16, (h_n (nlayers, B, D), c_n (nlayers, B, D))).
    """
    B, T = x_ids.shape
    embed = params["embed"]
    D = embed.shape[1]
    L = params["w_ih_t"].shape[0]
    V = params["head_w_t"].shape[1]
    wdt = params["w_ih_t"].dtype

    # Pad batch to a full f32 sublane group; for larger batches fill a full
    # packed bf16 group of MXU rows (the latency-bound step makes extra rows
    # nearly free and raises MXU row utilization).
    B_pad = 8 if B <= 8 else ((B + 15) // 16) * 16

    # Embedding gather, produced directly time-major (T, B, D).
    # TODO(synk): fuse the gather via scalar-prefetch token ids at large T.
    z = jnp.take(embed, x_ids.T, axis=0)
    z = _pad_axis(z, B_pad, axis=1)                       # (T, B_pad, D)
    z2d = z.reshape(T * B_pad, D).astype(wdt)             # bf16 MXU operand

    if h is None:
        h0 = jnp.zeros((L, B_pad, D), jnp.float32)
        c0 = jnp.zeros((L, B_pad, D), jnp.float32)
    else:
        h0 = _pad_axis(h[0].astype(jnp.float32), B_pad, axis=1)
        c0 = _pad_axis(h[1].astype(jnp.float32), B_pad, axis=1)

    unroll = True if T <= 16 else 8                       # bounded unroll at scale
    act2d, h_n, c_n = _lstm_stack_call(
        z2d, params["w_ih_t"], params["w_hh_t"], params["bias"], h0, c0,
        seq_len=T, b_pad=B_pad, unroll=unroll)

    logits2d = _head_call(act2d, params["head_w_t"],
                          params["head_b"].reshape(1, V),
                          logits_dtype=jnp.bfloat16)

    logits = logits2d.reshape(T, B_pad, V)[:, :B, :].transpose(1, 0, 2)
    return logits, (h_n[:, :B, :], c_n[:, :B, :])


# --------------------------- pure-JAX reference (check) ------------------------
def music_lstm_reference(params, x_ids, h=None):
    compute_dtype = params["w_ih_t"].dtype
    B, T = x_ids.shape
    embed = params["embed"]
    D = embed.shape[1]
    L = params["w_ih_t"].shape[0]

    x = jnp.take(embed, x_ids.T, axis=0).astype(jnp.float32)   # (T, B, D)
    if h is None:
        h0 = jnp.zeros((L, B, D), jnp.float32)
        c0 = jnp.zeros((L, B, D), jnp.float32)
    else:
        h0, c0 = h

    h_fin, c_fin = [], []
    for l in range(L):
        wih = params["w_ih_t"][l]
        whh = params["w_hh_t"][l]
        b = params["bias"][l]

        def step(carry, x_t):
            h_prev, c_prev = carry
            gates = (jnp.dot(x_t.astype(compute_dtype), wih,
                             preferred_element_type=jnp.float32)
                     + jnp.dot(h_prev.astype(compute_dtype), whh,
                               preferred_element_type=jnp.float32)
                     + b)
            i_g = jax.nn.sigmoid(gates[:, 0:D])
            f_g = jax.nn.sigmoid(gates[:, D:2 * D])
            g_g = jnp.tanh(gates[:, 2 * D:3 * D])
            o_g = jax.nn.sigmoid(gates[:, 3 * D:4 * D])
            c_new = f_g * c_prev + i_g * g_g
            h_new = o_g * jnp.tanh(c_new)
            return (h_new, c_new), h_new

        (hT, cT), ys = lax.scan(step, (h0[l], c0[l]), x)
        x = ys
        h_fin.append(hT)
        c_fin.append(cT)

    logits2d = (jnp.dot(x.reshape(T * B, D).astype(compute_dtype),
                        params["head_w_t"], preferred_element_type=jnp.float32)
                + params["head_b"][None, :])
    logits = logits2d.reshape(T, B, -1).transpose(1, 0, 2)
    return logits, (jnp.stack(h_fin), jnp.stack(c_fin))


# ------------------------------------ main -------------------------------------
if __name__ == "__main__":
    NTOK = 256
    D_MODEL = 128
    NLAYERS = 3
    B, T = 2, 8

    key = jax.random.PRNGKey(0)
    pkey, xkey = jax.random.split(key)
    params = init_params(pkey, NTOK, D_MODEL, NLAYERS)
    x_ids = jax.random.randint(xkey, (B, T), 0, NTOK, dtype=jnp.int32)

    fwd = jax.jit(music_lstm_forward)
    logits, (h_n, c_n) = fwd(params, x_ids)
    jax.block_until_ready((logits, h_n, c_n))

    assert logits.shape == (B, T, NTOK)
    assert h_n.shape == (NLAYERS, B, D_MODEL)
    assert c_n.shape == (NLAYERS, B, D_MODEL)

    ref_logits, (ref_h, ref_c) = jax.jit(music_lstm_reference)(params, x_ids)
    err = max(float(jnp.max(jnp.abs(logits.astype(jnp.float32) - ref_logits))),
              float(jnp.max(jnp.abs(h_n - ref_h))),
              float(jnp.max(jnp.abs(c_n - ref_c))))
    assert err < 1e-2, f"mismatch vs reference: max abs err {err}"

    print("KERNEL_OK")
</pallas_src>

<mosaic_0001>
module attributes {stable_mosaic.version = 11 : i64} {
  func.func @_head_kernel(%arg0: i32, %arg1: memref<64x128xf32, #tpu.memory_space<vmem>>, %arg2: memref<128x256xbf16, #tpu.memory_space<vmem>>, %arg3: memref<1x256xf32, #tpu.memory_space<vmem>>, %arg4: memref<64x256xbf16, #tpu.memory_space<vmem>>) attributes {dimension_semantics = [#tpu.dimension_semantics<parallel>], iteration_bounds = array<i64: 1>, scalar_prefetch = 0 : i64, scratch_operands = 0 : i64, tpu.core_type = #tpu.core_type<tc>, window_params = [{transform_indices = @transform_0, window_bounds = array<i64: 64, 128>}, {pipeline_mode = #tpu.pipeline_mode<synchronous>, transform_indices = @transform_1, window_bounds = array<i64: 128, 256>}, {pipeline_mode = #tpu.pipeline_mode<synchronous>, transform_indices = @transform_2, window_bounds = array<i64: 1, 256>}, {transform_indices = @transform_3, window_bounds = array<i64: 64, 256>}]} {
    %c0 = arith.constant 0 : index
    %c0_0 = arith.constant 0 : index
    %0 = vector.load %arg1[%c0, %c0_0] : memref<64x128xf32, #tpu.memory_space<vmem>>, vector<64x128xf32>
    %1 = arith.truncf %0 : vector<64x128xf32> to vector<64x128xbf16>
    %c0_1 = arith.constant 0 : index
    %c0_2 = arith.constant 0 : index
    %2 = vector.load %arg2[%c0_1, %c0_2] : memref<128x256xbf16, #tpu.memory_space<vmem>>, vector<128x256xbf16>
    %cst = arith.constant dense<0.000000e+00> : vector<64x256xf32>
    %3 = tpu.matmul %1, %2, %cst {dimension_numbers = #tpu.dot_dimension_numbers<[1], [0], [0], [1], [0, 0, 1, 1], [], []>} : vector<64x128xbf16>, vector<128x256xbf16>, vector<64x256xf32> -> vector<64x256xf32>
    %c0_3 = arith.constant 0 : index
    %c0_4 = arith.constant 0 : index
    %4 = vector.load %arg3[%c0_3, %c0_4] : memref<1x256xf32, #tpu.memory_space<vmem>>, vector<1x256xf32>
    %5 = vector.broadcast %4 : vector<1x256xf32> to vector<64x256xf32>
    %6 = arith.addf %3, %5 : vector<64x256xf32>
    %7 = arith.truncf %6 : vector<64x256xf32> to vector<64x256xbf16>
    %c0_5 = arith.constant 0 : index
    %c0_6 = arith.constant 0 : index
    %8 = vector.load %arg4[%c0_5, %c0_6] : memref<64x256xbf16, #tpu.memory_space<vmem>>, vector<64x256xbf16>
    tpu.vector_store %arg4[%c0_5, %c0_6], %7 {strides = array<i32>} : memref<64x256xbf16, #tpu.memory_space<vmem>>, vector<64x256xbf16>,
    return
  }
  func.func @transform_0(%arg0: i32) -> (i32, i32) {
    %c0_i32 = arith.constant 0 : i32
    %c0_i32_0 = arith.constant 0 : i32
    return %arg0, %c0_i32 : i32, i32
  }
  func.func @transform_1(%arg0: i32) -> (i32, i32) {
    %c0_i32 = arith.constant 0 : i32
    %c0_i32_0 = arith.constant 0 : i32
    %c0_i32_1 = arith.constant 0 : i32
    return %c0_i32, %c0_i32_0 : i32, i32
  }
  func.func @transform_2(%arg0: i32) -> (i32, i32) {
    %c0_i32 = arith.constant 0 : i32
    %c0_i32_0 = arith.constant 0 : i32
    %c0_i32_1 = arith.constant 0 : i32
    return %c0_i32, %c0_i32_0 : i32, i32
  }
  func.func @transform_3(%arg0: i32) -> (i32, i32) {
    %c0_i32 = arith.constant 0 : i32
    %c0_i32_0 = arith.constant 0 : i32
    return %arg0, %c0_i32 : i32, i32
  }
}

module attributes {stable_mosaic.version = 11 : i64} {
  func.func @_lstm_stack_kernel(%arg0: i32, %arg1: memref<64x128xbf16, #tpu.memory_space<vmem>>, %arg2: memref<1x128x512xbf16, #tpu.memory_space<vmem>>, %arg3: memref<1x128x512xbf16, #tpu.memory_space<vmem>>, %arg4: memref<1x1x512xf32, #tpu.memory_space<vmem>>, %arg5: memref<1x8x128xf32, #tpu.memory_space<vmem>>, %arg6: memref<1x8x128xf32, #tpu.memory_space<vmem>>, %arg7: memref<64x128xf32, #tpu.memory_space<vmem>>, %arg8: memref<1x8x128xf32, #tpu.memory_space<vmem>>, %arg9: memref<1x8x128xf32, #tpu.memory_space<vmem>>, %arg10: memref<64x512xf32, #tpu.memory_space<vmem>>, %arg11: memref<8x128xf32, #tpu.memory_space<vmem>>, %arg12: memref<8x128xf32, #tpu.memory_space<vmem>>) attributes {dimension_semantics = [#tpu.dimension_semantics<arbitrary>], iteration_bounds = array<i64: 3>, scalar_prefetch = 0 : i64, scratch_operands = 3 : i64, tpu.core_type = #tpu.core_type<tc>, window_params = [{pipeline_mode = #tpu.pipeline_mode<synchronous>, transform_indices = @transform_0, window_bounds = array<i64: 64, 128>}, {transform_indices = @transform_1, window_bounds = array<i64: 1, 128, 512>}, {transform_indices = @transform_2, window_bounds = array<i64: 1, 128, 512>}, {transform_indices = @transform_3, window_bounds = array<i64: 1, 1, 512>}, {transform_indices = @transform_4, window_bounds = array<i64: 1, 8, 128>}, {transform_indices = @transform_5, window_bounds = array<i64: 1, 8, 128>}, {pipeline_mode = #tpu.pipeline_mode<synchronous>, transform_indices = @transform_6, window_bounds = array<i64: 64, 128>}, {transform_indices = @transform_7, window_bounds = array<i64: 1, 8, 128>}, {transform_indices = @transform_8, window_bounds = array<i64: 1, 8, 128>}]} {
    %c0 = arith.constant 0 : index
    %c0_0 = arith.constant 0 : index
    %c0_1 = arith.constant 0 : index
    %0 = vector.load %arg2[%c0, %c0_0, %c0_1] : memref<1x128x512xbf16, #tpu.memory_space<vmem>>, vector<1x128x512xbf16>
    %1 = vector.shape_cast %0 : vector<1x128x512xbf16> to vector<128x512xbf16>
    %c0_2 = arith.constant 0 : index
    %c0_3 = arith.constant 0 : index
    %c0_4 = arith.constant 0 : index
    %2 = vector.load %arg3[%c0_2, %c0_3, %c0_4] : memref<1x128x512xbf16, #tpu.memory_space<vmem>>, vector<1x128x512xbf16>
    %3 = vector.shape_cast %2 : vector<1x128x512xbf16> to vector<128x512xbf16>
    %c0_5 = arith.constant 0 : index
    %c0_6 = arith.constant 0 : index
    %c0_7 = arith.constant 0 : index
    %4 = vector.load %arg4[%c0_5, %c0_6, %c0_7] : memref<1x1x512xf32, #tpu.memory_space<vmem>>, vector<1x1x512xf32>
    %5 = vector.shape_cast %4 : vector<1x1x512xf32> to vector<1x512xf32>
    %c0_i32 = arith.constant 0 : i32
    %6 = arith.cmpi eq, %arg0, %c0_i32 : i32
    %7 = arith.extui %6 : i1 to i32
    %c0_i32_8 = arith.constant 0 : i32
    %8 = arith.cmpi ne, %7, %c0_i32_8 : i32
    scf.if %8 {
      %c0_131 = arith.constant 0 : index
      %c0_132 = arith.constant 0 : index
      %250 = vector.load %arg1[%c0_131, %c0_132] : memref<64x128xbf16, #tpu.memory_space<vmem>>, vector<64x128xbf16>
      %cst_133 = arith.constant dense<0.000000e+00> : vector<64x512xf32>
      %251 = tpu.matmul %250, %1, %cst_133 {dimension_numbers = #tpu.dot_dimension_numbers<[1], [0], [0], [1], [0, 0, 1, 1], [], []>} : vector<64x128xbf16>, vector<128x512xbf16>, vector<64x512xf32> -> vector<64x512xf32>
      %252 = vector.broadcast %5 : vector<1x512xf32> to vector<64x512xf32>
      %253 = arith.addf %251, %252 : vector<64x512xf32>
      %c0_134 = arith.constant 0 : index
      %c0_135 = arith.constant 0 : index
      %254 = vector.load %arg10[%c0_134, %c0_135] : memref<64x512xf32, #tpu.memory_space<vmem>>, vector<64x512xf32>
      tpu.vector_store %arg10[%c0_134, %c0_135], %253 {strides = array<i32>} : memref<64x512xf32, #tpu.memory_space<vmem>>, vector<64x512xf32>,
    } else {
    }
    %c0_i32_9 = arith.constant 0 : i32
    %9 = arith.cmpi sgt, %arg0, %c0_i32_9 : i32
    %10 = arith.extui %9 : i1 to i32
    %c0_i32_10 = arith.constant 0 : i32
    %11 = arith.cmpi ne, %10, %c0_i32_10 : i32
    scf.if %11 {
      %c0_131 = arith.constant 0 : index
      %c0_132 = arith.constant 0 : index
      %250 = vector.load %arg7[%c0_131, %c0_132] : memref<64x128xf32, #tpu.memory_space<vmem>>, vector<64x128xf32>
      %251 = arith.truncf %250 : vector<64x128xf32> to vector<64x128xbf16>
      %cst_133 = arith.constant dense<0.000000e+00> : vector<64x512xf32>
      %252 = tpu.matmul %251, %1, %cst_133 {dimension_numbers = #tpu.dot_dimension_numbers<[1], [0], [0], [1], [0, 0, 1, 1], [], []>} : vector<64x128xbf16>, vector<128x512xbf16>, vector<64x512xf32> -> vector<64x512xf32>
      %253 = vector.broadcast %5 : vector<1x512xf32> to vector<64x512xf32>
      %254 = arith.addf %252, %253 : vector<64x512xf32>
      %c0_134 = arith.constant 0 : index
      %c0_135 = arith.constant 0 : index
      %255 = vector.load %arg10[%c0_134, %c0_135] : memref<64x512xf32, #tpu.memory_space<vmem>>, vector<64x512xf32>
      tpu.vector_store %arg10[%c0_134, %c0_135], %254 {strides = array<i32>} : memref<64x512xf32, #tpu.memory_space<vmem>>, vector<64x512xf32>,
    } else {
    }
    %c0_11 = arith.constant 0 : index
    %c0_12 = arith.constant 0 : index
    %c0_13 = arith.constant 0 : index
    %12 = vector.load %arg5[%c0_11, %c0_12, %c0_13] : memref<1x8x128xf32, #tpu.memory_space<vmem>>, vector<1x8x128xf32>
    %13 = vector.shape_cast %12 : vector<1x8x128xf32> to vector<8x128xf32>
    %c0_14 = arith.constant 0 : index
    %c0_15 = arith.constant 0 : index
    %14 = vector.load %arg11[%c0_14, %c0_15] : memref<8x128xf32, #tpu.memory_space<vmem>>, vector<8x128xf32>
    tpu.vector_store %arg11[%c0_14, %c0_15], %13 {strides = array<i32>} : memref<8x128xf32, #tpu.memory_space<vmem>>, vector<8x128xf32>,
    %c0_16 = arith.constant 0 : index
    %c0_17 = arith.constant 0 : index
    %c0_18 = arith.constant 0 : index
    %15 = vector.load %arg6[%c0_16, %c0_17, %c0_18] : memref<1x8x128xf32, #tpu.memory_space<vmem>>, vector<1x8x128xf32>
    %16 = vector.shape_cast %15 : vector<1x8x128xf32> to vector<8x128xf32>
    %c0_19 = arith.constant 0 : index
    %c0_20 = arith.constant 0 : index
    %17 = vector.load %arg12[%c0_19, %c0_20] : memref<8x128xf32, #tpu.memory_space<vmem>>, vector<8x128xf32>
    tpu.vector_store %arg12[%c0_19, %c0_20], %16 {strides = array<i32>} : memref<8x128xf32, #tpu.memory_space<vmem>>, vector<8x128xf32>,
    %18 = tpu.iota {dimensions = array<i32: 1>} : vector<1x512xi32>
    %c256_i32 = arith.constant 256 : i32
    %19 = vector.broadcast %c256_i32 : i32 to vector<1x512xi32>
    %20 = arith.cmpi sge, %18, %19 : vector<1x512xi32>
    %c384_i32 = arith.constant 384 : i32
    %21 = vector.broadcast %c384_i32 : i32 to vector<1x512xi32>
    %22 = arith.cmpi slt, %18, %21 : vector<1x512xi32>
    %23 = arith.andi %20, %22 : vector<1x512xi1>
    %cst = arith.constant 1.000000e+00 : f32
    %cst_21 = arith.constant 5.000000e-01 : f32
    %24 = vector.broadcast %cst : f32 to vector<1x512xf32>
    %25 = vector.broadcast %cst_21 : f32 to vector<1x512xf32>
    %26 = arith.select %23, %24, %25 : vector<1x512xi1>, vector<1x512xf32>
    %27 = vector.shape_cast %26 : vector<1x512xf32> to vector<1x512xf32>
    %28 = vector.broadcast %27 : vector<1x512xf32> to vector<8x512xf32>
    %cst_22 = arith.constant 0.000000e+00 : f32
    %cst_23 = arith.constant 5.000000e-01 : f32
    %29 = vector.broadcast %cst_22 : f32 to vector<1x512xf32>
    %30 = vector.broadcast %cst_23 : f32 to vector<1x512xf32>
    %31 = arith.select %23, %29, %30 : vector<1x512xi1>, vector<1x512xf32>
    %32 = vector.shape_cast %31 : vector<1x512xf32> to vector<1x512xf32>
    %33 = vector.broadcast %32 : vector<1x512xf32> to vector<8x512xf32>
    %c0_i32_24 = arith.constant 0 : i32
    %c8_i32 = arith.constant 8 : i32
    %34 = arith.muli %c0_i32_24, %c8_i32 : i32
    %35 = tpu.assume_multiple %34, 8 : i32
    %c0_25 = arith.constant 0 : index
    %c0_26 = arith.constant 0 : index
    %36 = vector.load %arg11[%c0_25, %c0_26] : memref<8x128xf32, #tpu.memory_space<vmem>>, vector<8x128xf32>
    %c0_27 = arith.constant 0 : index
    %c0_28 = arith.constant 0 : index
    %37 = vector.load %arg12[%c0_27, %c0_28] : memref<8x128xf32, #tpu.memory_space<vmem>>, vector<8x128xf32>
    %38 = arith.index_cast %35 : i32 to index
    %c0_29 = arith.constant 0 : index
    %39 = vector.load %arg10[%38, %c0_29] : memref<64x512xf32, #tpu.memory_space<vmem>>, vector<8x512xf32>
    %40 = arith.truncf %36 : vector<8x128xf32> to vector<8x128xbf16>
    %cst_30 = arith.constant dense<0.000000e+00> : vector<8x512xf32>
    %41 = tpu.matmul %40, %3, %cst_30 {dimension_numbers = #tpu.dot_dimension_numbers<[1], [0], [0], [1], [0, 0, 1, 1], [], []>} : vector<8x128xbf16>, vector<128x512xbf16>, vector<8x512xf32> -> vector<8x512xf32>
    %42 = arith.addf %39, %41 : vector<8x512xf32>
    %43 = arith.mulf %42, %28 : vector<8x512xf32>
    %44 = math.tanh %43 : vector<8x512xf32>
    %45 = arith.mulf %44, %28 : vector<8x512xf32>
    %46 = arith.addf %45, %33 : vector<8x512xf32>
    %47 = vector.extract_strided_slice %46 {offsets = [0, 0], sizes = [8, 128], strides = [1, 1]} : vector<8x512xf32> to vector<8x128xf32>
    %48 = vector.extract_strided_slice %46 {offsets = [0, 128], sizes = [8, 128], strides = [1, 1]} : vector<8x512xf32> to vector<8x128xf32>
    %49 = vector.extract_strided_slice %46 {offsets = [0, 256], sizes = [8, 128], strides = [1, 1]} : vector<8x512xf32> to vector<8x128xf32>
    %50 = vector.extract_strided_slice %46 {offsets = [0, 384], sizes = [8, 128], strides = [1, 1]} : vector<8x512xf32> to vector<8x128xf32>
    %51 = arith.mulf %48, %37 : vector<8x128xf32>
    %52 = arith.mulf %47, %49 : vector<8x128xf32>
    %53 = arith.addf %51, %52 : vector<8x128xf32>
    %54 = math.tanh %53 : vector<8x128xf32>
    %55 = arith.mulf %50, %54 : vector<8x128xf32>
    %c0_31 = arith.constant 0 : index
    %c0_32 = arith.constant 0 : index
    %56 = vector.load %arg11[%c0_31, %c0_32] : memref<8x128xf32, #tpu.memory_space<vmem>>, vector<8x128xf32>
    tpu.vector_store %arg11[%c0_31, %c0_32], %55 {strides = array<i32>} : memref<8x128xf32, #tpu.memory_space<vmem>>, vector<8x128xf32>,
    %c0_33 = arith.constant 0 : index
    %c0_34 = arith.constant 0 : index
    %57 = vector.load %arg12[%c0_33, %c0_34] : memref<8x128xf32, #tpu.memory_space<vmem>>, vector<8x128xf32>
    tpu.vector_store %arg12[%c0_33, %c0_34], %53 {strides = array<i32>} : memref<8x128xf32, #tpu.memory_space<vmem>>, vector<8x128xf32>,
    %58 = arith.index_cast %35 : i32 to index
    %c0_35 = arith.constant 0 : index
    %59 = vector.load %arg7[%58, %c0_35] : memref<64x128xf32, #tpu.memory_space<vmem>>, vector<8x128xf32>
    tpu.vector_store %arg7[%58, %c0_35], %55 {strides = array<i32>} : memref<64x128xf32, #tpu.memory_space<vmem>>, vector<8x128xf32>,
    %c1_i32 = arith.constant 1 : i32
    %c8_i32_36 = arith.constant 8 : i32
    %60 = arith.muli %c1_i32, %c8_i32_36 : i32
    %61 = tpu.assume_multiple %60, 8 : i32
    %c0_37 = arith.constant 0 : index
    %c0_38 = arith.constant 0 : index
    %62 = vector.load %arg11[%c0_37, %c0_38] : memref<8x128xf32, #tpu.memory_space<vmem>>, vector<8x128xf32>
    %c0_39 = arith.constant 0 : index
    %c0_40 = arith.constant 0 : index
    %63 = vector.load %arg12[%c0_39, %c0_40] : memref<8x128xf32, #tpu.memory_space<vmem>>, vector<8x128xf32>
    %64 = arith.index_cast %61 : i32 to index
    %c0_41 = arith.constant 0 : index
    %65 = vector.load %arg10[%64, %c0_41] : memref<64x512xf32, #tpu.memory_space<vmem>>, vector<8x512xf32>
    %66 = arith.truncf %62 : vector<8x128xf32> to vector<8x128xbf16>
    %cst_42 = arith.constant dense<0.000000e+00> : vector<8x512xf32>
    %67 = tpu.matmul %66, %3, %cst_42 {dimension_numbers = #tpu.dot_dimension_numbers<[1], [0], [0], [1], [0, 0, 1, 1], [], []>} : vector<8x128xbf16>, vector<128x512xbf16>, vector<8x512xf32> -> vector<8x512xf32>
    %68 = arith.addf %65, %67 : vector<8x512xf32>
    %69 = arith.mulf %68, %28 : vector<8x512xf32>
    %70 = math.tanh %69 : vector<8x512xf32>
    %71 = arith.mulf %70, %28 : vector<8x512xf32>
    %72 = arith.addf %71, %33 : vector<8x512xf32>
    %73 = vector.extract_strided_slice %72 {offsets = [0, 0], sizes = [8, 128], strides = [1, 1]} : vector<8x512xf32> to vector<8x128xf32>
    %74 = vector.extract_strided_slice %72 {offsets = [0, 128], sizes = [8, 128], strides = [1, 1]} : vector<8x512xf32> to vector<8x128xf32>
    %75 = vector.extract_strided_slice %72 {offsets = [0, 256], sizes = [8, 128], strides = [1, 1]} : vector<8x512xf32> to vector<8x128xf32>
    %76 = vector.extract_strided_slice %72 {offsets = [0, 384], sizes = [8, 128], strides = [1, 1]} : vector<8x512xf32> to vector<8x128xf32>
    %77 = arith.mulf %74, %63 : vector<8x128xf32>
    %78 = arith.mulf %73, %75 : vector<8x128xf32>
    %79 = arith.addf %77, %78 : vector<8x128xf32>
    %80 = math.tanh %79 : vector<8x128xf32>
    %81 = arith.mulf %76, %80 : vector<8x128xf32>
    %c0_43 = arith.constant 0 : index
    %c0_44 = arith.constant 0 : index
    %82 = vector.load %arg11[%c0_43, %c0_44] : memref<8x128xf32, #tpu.memory_space<vmem>>, vector<8x128xf32>
    tpu.vector_store %arg11[%c0_43, %c0_44], %81 {strides = array<i32>} : memref<8x128xf32, #tpu.memory_space<vmem>>, vector<8x128xf32>,
    %c0_45 = arith.constant 0 : index
    %c0_46 = arith.constant 0 : index
    %83 = vector.load %arg12[%c0_45, %c0_46] : memref<8x128xf32, #tpu.memory_space<vmem>>, vector<8x128xf32>
    tpu.vector_store %arg12[%c0_45, %c0_46], %79 {strides = array<i32>} : memref<8x128xf32, #tpu.memory_space<vmem>>, vector<8x128xf32>,
    %84 = arith.index_cast %61 : i32 to index
    %c0_47 = arith.constant 0 : index
    %85 = vector.load %arg7[%84, %c0_47] : memref<64x128xf32, #tpu.memory_space<vmem>>, vector<8x128xf32>
    tpu.vector_store %arg7[%84, %c0_47], %81 {strides = array<i32>} : memref<64x128xf32, #tpu.memory_space<vmem>>, vector<8x128xf32>,
    %c2_i32 = arith.constant 2 : i32
    %c8_i32_48 = arith.constant 8 : i32
    %86 = arith.muli %c2_i32, %c8_i32_48 : i32
    %87 = tpu.assume_multiple %86, 8 : i32
    %c0_49 = arith.constant 0 : index
    %c0_50 = arith.constant 0 : index
    %88 = vector.load %arg11[%c0_49, %c0_50] : memref<8x128xf32, #tpu.memory_space<vmem>>, vector<8x128xf32>
    %c0_51 = arith.constant 0 : index
    %c0_52 = arith.constant 0 : index
    %89 = vector.load %arg12[%c0_51, %c0_52] : memref<8x128xf32, #tpu.memory_space<vmem>>, vector<8x128xf32>
    %90 = arith.index_cast %87 : i32 to index
    %c0_53 = arith.constant 0 : index
    %91 = vector.load %arg10[%90, %c0_53] : memref<64x512xf32, #tpu.memory_space<vmem>>, vector<8x512xf32>
    %92 = arith.truncf %88 : vector<8x128xf32> to vector<8x128xbf16>
    %cst_54 = arith.constant dense<0.000000e+00> : vector<8x512xf32>
    %93 = tpu.matmul %92, %3, %cst_54 {dimension_numbers = #tpu.dot_dimension_numbers<[1], [0], [0], [1], [0, 0, 1, 1], [], []>} : vector<8x128xbf16>, vector<128x512xbf16>, vector<8x512xf32> -> vector<8x512xf32>
    %94 = arith.addf %91, %93 : vector<8x512xf32>
    %95 = arith.mulf %94, %28 : vector<8x512xf32>
    %96 = math.tanh %95 : vector<8x512xf32>
    %97 = arith.mulf %96, %28 : vector<8x512xf32>
    %98 = arith.addf %97, %33 : vector<8x512xf32>
    %99 = vector.extract_strided_slice %98 {offsets = [0, 0], sizes = [8, 128], strides = [1, 1]} : vector<8x512xf32> to vector<8x128xf32>
    %100 = vector.extract_strided_slice %98 {offsets = [0, 128], sizes = [8, 128], strides = [1, 1]} : vector<8x512xf32> to vector<8x128xf32>
    %101 = vector.extract_strided_slice %98 {offsets = [0, 256], sizes = [8, 128], strides = [1, 1]} : vector<8x512xf32> to vector<8x128xf32>
    %102 = vector.extract_strided_slice %98 {offsets = [0, 384], sizes = [8, 128], strides = [1, 1]} : vector<8x512xf32> to vector<8x128xf32>
    %103 = arith.mulf %100, %89 : vector<8x128xf32>
    %104 = arith.mulf %99, %101 : vector<8x128xf32>
    %105 = arith.addf %103, %104 : vector<8x128xf32>
    %106 = math.tanh %105 : vector<8x128xf32>
    %107 = arith.mulf %102, %106 : vector<8x128xf32>
    %c0_55 = arith.constant 0 : index
    %c0_56 = arith.constant 0 : index
    %108 = vector.load %arg11[%c0_55, %c0_56] : memref<8x128xf32, #tpu.memory_space<vmem>>, vector<8x128xf32>
    tpu.vector_store %arg11[%c0_55, %c0_56], %107 {strides = array<i32>} : memref<8x128xf32, #tpu.memory_space<vmem>>, vector<8x128xf32>,
    %c0_57 = arith.constant 0 : index
    %c0_58 = arith.constant 0 : index
    %109 = vector.load %arg12[%c0_57, %c0_58] : memref<8x128xf32, #tpu.memory_space<vmem>>, vector<8x128xf32>
    tpu.vector_store %arg12[%c0_57, %c0_58], %105 {strides = array<i32>} : memref<8x128xf32, #tpu.memory_space<vmem>>, vector<8x128xf32>,
    %110 = arith.index_cast %87 : i32 to index
    %c0_59 = arith.constant 0 : index
    %111 = vector.load %arg7[%110, %c0_59] : memref<64x128xf32, #tpu.memory_space<vmem>>, vector<8x128xf32>
    tpu.vector_store %arg7[%110, %c0_59], %107 {strides = array<i32>} : memref<64x128xf32, #tpu.memory_space<vmem>>, vector<8x128xf32>,
    %c3_i32 = arith.constant 3 : i32
    %c8_i32_60 = arith.constant 8 : i32
    %112 = arith.muli %c3_i32, %c8_i32_60 : i32
    %113 = tpu.assume_multiple %112, 8 : i32
    %c0_61 = arith.constant 0 : index
    %c0_62 = arith.constant 0 : index
    %114 = vector.load %arg11[%c0_61, %c0_62] : memref<8x128xf32, #tpu.memory_space<vmem>>, vector<8x128xf32>
    %c0_63 = arith.constant 0 : index
    %c0_64 = arith.constant 0 : index
    %115 = vector.load %arg12[%c0_63, %c0_64] : memref<8x128xf32, #tpu.memory_space<vmem>>, vector<8x128xf32>
    %116 = arith.index_cast %113 : i32 to index
    %c0_65 = arith.constant 0 : index
    %117 = vector.load %arg10[%116, %c0_65] : memref<64x512xf32, #tpu.memory_space<vmem>>, vector<8x512xf32>
    %118 = arith.truncf %114 : vector<8x128xf32> to vector<8x128xbf16>
    %cst_66 = arith.constant dense<0.000000e+00> : vector<8x512xf32>
    %119 = tpu.matmul %118, %3, %cst_66 {dimension_numbers = #tpu.dot_dimension_numbers<[1], [0], [0], [1], [0, 0, 1, 1], [], []>} : vector<8x128xbf16>, vector<128x512xbf16>, vector<8x512xf32> -> vector<8x512xf32>
    %120 = arith.addf %117, %119 : vector<8x512xf32>
    %121 = arith.mulf %120, %28 : vector<8x512xf32>
    %122 = math.tanh %121 : vector<8x512xf32>
    %123 = arith.mulf %122, %28 : vector<8x512xf32>
    %124 = arith.addf %123, %33 : vector<8x512xf32>
    %125 = vector.extract_strided_slice %124 {offsets = [0, 0], sizes = [8, 128], strides = [1, 1]} : vector<8x512xf32> to vector<8x128xf32>
    %126 = vector.extract_strided_slice %124 {offsets = [0, 128], sizes = [8, 128], strides = [1, 1]} : vector<8x512xf32> to vector<8x128xf32>
    %127 = vector.extract_strided_slice %124 {offsets = [0, 256], sizes = [8, 128], strides = [1, 1]} : vector<8x512xf32> to vector<8x128xf32>
    %128 = vector.extract_strided_slice %124 {offsets = [0, 384], sizes = [8, 128], strides = [1, 1]} : vector<8x512xf32> to vector<8x128xf32>
    %129 = arith.mulf %126, %115 : vector<8x128xf32>
    %130 = arith.mulf %125, %127 : vector<8x128xf32>
    %131 = arith.addf %129, %130 : vector<8x128xf32>
    %132 = math.tanh %131 : vector<8x128xf32>
    %133 = arith.mulf %128, %132 : vector<8x128xf32>
    %c0_67 = arith.constant 0 : index
    %c0_68 = arith.constant 0 : index
    %134 = vector.load %arg11[%c0_67, %c0_68] : memref<8x128xf32, #tpu.memory_space<vmem>>, vector<8x128xf32>
    tpu.vector_store %arg11[%c0_67, %c0_68], %133 {strides = array<i32>} : memref<8x128xf32, #tpu.memory_space<vmem>>, vector<8x128xf32>,
    %c0_69 = arith.constant 0 : index
    %c0_70 = arith.constant 0 : index
    %135 = vector.load %arg12[%c0_69, %c0_70] : memref<8x128xf32, #tpu.memory_space<vmem>>, vector<8x128xf32>
    tpu.vector_store %arg12[%c0_69, %c0_70], %131 {strides = array<i32>} : memref<8x128xf32, #tpu.memory_space<vmem>>, vector<8x128xf32>,
    %136 = arith.index_cast %113 : i32 to index
    %c0_71 = arith.constant 0 : index
    %137 = vector.load %arg7[%136, %c0_71] : memref<64x128xf32, #tpu.memory_space<vmem>>, vector<8x128xf32>
    tpu.vector_store %arg7[%136, %c0_71], %133 {strides = array<i32>} : memref<64x128xf32, #tpu.memory_space<vmem>>, vector<8x128xf32>,
    %c4_i32 = arith.constant 4 : i32
    %c8_i32_72 = arith.constant 8 : i32
    %138 = arith.muli %c4_i32, %c8_i32_72 : i32
    %139 = tpu.assume_multiple %138, 8 : i32
    %c0_73 = arith.constant 0 : index
    %c0_74 = arith.constant 0 : index
    %140 = vector.load %arg11[%c0_73, %c0_74] : memref<8x128xf32, #tpu.memory_space<vmem>>, vector<8x128xf32>
    %c0_75 = arith.constant 0 : index
    %c0_76 = arith.constant 0 : index
    %141 = vector.load %arg12[%c0_75, %c0_76] : memref<8x128xf32, #tpu.memory_space<vmem>>, vector<8x128xf32>
    %142 = arith.index_cast %139 : i32 to index
    %c0_77 = arith.constant 0 : index
    %143 = vector.load %arg10[%142, %c0_77] : memref<64x512xf32, #tpu.memory_space<vmem>>, vector<8x512xf32>
    %144 = arith.truncf %140 : vector<8x128xf32> to vector<8x128xbf16>
    %cst_78 = arith.constant dense<0.000000e+00> : vector<8x512xf32>
    %145 = tpu.matmul %144, %3, %cst_78 {dimension_numbers = #tpu.dot_dimension_numbers<[1], [0], [0], [1], [0, 0, 1, 1], [], []>} : vector<8x128xbf16>, vector<128x512xbf16>, vector<8x512xf32> -> vector<8x512xf32>
    %146 = arith.addf %143, %145 : vector<8x512xf32>
    %147 = arith.mulf %146, %28 : vector<8x512xf32>
    %148 = math.tanh %147 : vector<8x512xf32>
    %149 = arith.mulf %148, %28 : vector<8x512xf32>
    %150 = arith.addf %149, %33 : vector<8x512xf32>
    %151 = vector.extract_strided_slice %150 {offsets = [0, 0], sizes = [8, 128], strides = [1, 1]} : vector<8x512xf32> to vector<8x128xf32>
    %152 = vector.extract_strided_slice %150 {offsets = [0, 128], sizes = [8, 128], strides = [1, 1]} : vector<8x512xf32> to vector<8x128xf32>
    %153 = vector.extract_strided_slice %150 {offsets = [0, 256], sizes = [8, 128], strides = [1, 1]} : vector<8x512xf32> to vector<8x128xf32>
    %154 = vector.extract_strided_slice %150 {offsets = [0, 384], sizes = [8, 128], strides = [1, 1]} : vector<8x512xf32> to vector<8x128xf32>
    %155 = arith.mulf %152, %141 : vector<8x128xf32>
    %156 = arith.mulf %151, %153 : vector<8x128xf32>
    %157 = arith.addf %155, %156 : vector<8x128xf32>
    %158 = math.tanh %157 : vector<8x128xf32>
    %159 = arith.mulf %154, %158 : vector<8x128xf32>
    %c0_79 = arith.constant 0 : index
    %c0_80 = arith.constant 0 : index
    %160 = vector.load %arg11[%c0_79, %c0_80] : memref<8x128xf32, #tpu.memory_space<vmem>>, vector<8x128xf32>
    tpu.vector_store %arg11[%c0_79, %c0_80], %159 {strides = array<i32>} : memref<8x128xf32, #tpu.memory_space<vmem>>, vector<8x128xf32>,
    %c0_81 = arith.constant 0 : index
    %c0_82 = arith.constant 0 : index
    %161 = vector.load %arg12[%c0_81, %c0_82] : memref<8x128xf32, #tpu.memory_space<vmem>>, vector<8x128xf32>
    tpu.vector_store %arg12[%c0_81, %c0_82], %157 {strides = array<i32>} : memref<8x128xf32, #tpu.memory_space<vmem>>, vector<8x128xf32>,
    %162 = arith.index_cast %139 : i32 to index
    %c0_83 = arith.constant 0 : index
    %163 = vector.load %arg7[%162, %c0_83] : memref<64x128xf32, #tpu.memory_space<vmem>>, vector<8x128xf32>
    tpu.vector_store %arg7[%162, %c0_83], %159 {strides = array<i32>} : memref<64x128xf32, #tpu.memory_space<vmem>>, vector<8x128xf32>,
    %c5_i32 = arith.constant 5 : i32
    %c8_i32_84 = arith.constant 8 : i32
    %164 = arith.muli %c5_i32, %c8_i32_84 : i32
    %165 = tpu.assume_multiple %164, 8 : i32
    %c0_85 = arith.constant 0 : index
    %c0_86 = arith.constant 0 : index
    %166 = vector.load %arg11[%c0_85, %c0_86] : memref<8x128xf32, #tpu.memory_space<vmem>>, vector<8x128xf32>
    %c0_87 = arith.constant 0 : index
    %c0_88 = arith.constant 0 : index
    %167 = vector.load %arg12[%c0_87, %c0_88] : memref<8x128xf32, #tpu.memory_space<vmem>>, vector<8x128xf32>
    %168 = arith.index_cast %165 : i32 to index
    %c0_89 = arith.constant 0 : index
    %169 = vector.load %arg10[%168, %c0_89] : memref<64x512xf32, #tpu.memory_space<vmem>>, vector<8x512xf32>
    %170 = arith.truncf %166 : vector<8x128xf32> to vector<8x128xbf16>
    %cst_90 = arith.constant dense<0.000000e+00> : vector<8x512xf32>
    %171 = tpu.matmul %170, %3, %cst_90 {dimension_numbers = #tpu.dot_dimension_numbers<[1], [0], [0], [1], [0, 0, 1, 1], [], []>} : vector<8x128xbf16>, vector<128x512xbf16>, vector<8x512xf32> -> vector<8x512xf32>
    %172 = arith.addf %169, %171 : vector<8x512xf32>
    %173 = arith.mulf %172, %28 : vector<8x512xf32>
    %174 = math.tanh %173 : vector<8x512xf32>
    %175 = arith.mulf %174, %28 : vector<8x512xf32>
    %176 = arith.addf %175, %33 : vector<8x512xf32>
    %177 = vector.extract_strided_slice %176 {offsets = [0, 0], sizes = [8, 128], strides = [1, 1]} : vector<8x512xf32> to vector<8x128xf32>
    %178 = vector.extract_strided_slice %176 {offsets = [0, 128], sizes = [8, 128], strides = [1, 1]} : vector<8x512xf32> to vector<8x128xf32>
    %179 = vector.extract_strided_slice %176 {offsets = [0, 256], sizes = [8, 128], strides = [1, 1]} : vector<8x512xf32> to vector<8x128xf32>
    %180 = vector.extract_strided_slice %176 {offsets = [0, 384], sizes = [8, 128], strides = [1, 1]} : vector<8x512xf32> to vector<8x128xf32>
    %181 = arith.mulf %178, %167 : vector<8x128xf32>
    %182 = arith.mulf %177, %179 : vector<8x128xf32>
    %183 = arith.addf %181, %182 : vector<8x128xf32>
    %184 = math.tanh %183 : vector<8x128xf32>
    %185 = arith.mulf %180, %184 : vector<8x128xf32>
    %c0_91 = arith.constant 0 : index
    %c0_92 = arith.constant 0 : index
    %186 = vector.load %arg11[%c0_91, %c0_92] : memref<8x128xf32, #tpu.memory_space<vmem>>, vector<8x128xf32>
    tpu.vector_store %arg11[%c0_91, %c0_92], %185 {strides = array<i32>} : memref<8x128xf32, #tpu.memory_space<vmem>>, vector<8x128xf32>,
    %c0_93 = arith.constant 0 : index
    %c0_94 = arith.constant 0 : index
    %187 = vector.load %arg12[%c0_93, %c0_94] : memref<8x128xf32, #tpu.memory_space<vmem>>, vector<8x128xf32>
    tpu.vector_store %arg12[%c0_93, %c0_94], %183 {strides = array<i32>} : memref<8x128xf32, #tpu.memory_space<vmem>>, vector<8x128xf32>,
    %188 = arith.index_cast %165 : i32 to index
    %c0_95 = arith.constant 0 : index
    %189 = vector.load %arg7[%188, %c0_95] : memref<64x128xf32, #tpu.memory_space<vmem>>, vector<8x128xf32>
    tpu.vector_store %arg7[%188, %c0_95], %185 {strides = array<i32>} : memref<64x128xf32, #tpu.memory_space<vmem>>, vector<8x128xf32>,
    %c6_i32 = arith.constant 6 : i32
    %c8_i32_96 = arith.constant 8 : i32
    %190 = arith.muli %c6_i32, %c8_i32_96 : i32
    %191 = tpu.assume_multiple %190, 8 : i32
    %c0_97 = arith.constant 0 : index
    %c0_98 = arith.constant 0 : index
    %192 = vector.load %arg11[%c0_97, %c0_98] : memref<8x128xf32, #tpu.memory_space<vmem>>, vector<8x128xf32>
    %c0_99 = arith.constant 0 : index
    %c0_100 = arith.constant 0 : index
    %193 = vector.load %arg12[%c0_99, %c0_100] : memref<8x128xf32, #tpu.memory_space<vmem>>, vector<8x128xf32>
    %194 = arith.index_cast %191 : i32 to index
    %c0_101 = arith.constant 0 : index
    %195 = vector.load %arg10[%194, %c0_101] : memref<64x512xf32, #tpu.memory_space<vmem>>, vector<8x512xf32>
    %196 = arith.truncf %192 : vector<8x128xf32> to vector<8x128xbf16>
    %cst_102 = arith.constant dense<0.000000e+00> : vector<8x512xf32>
    %197 = tpu.matmul %196, %3, %cst_102 {dimension_numbers = #tpu.dot_dimension_numbers<[1], [0], [0], [1], [0, 0, 1, 1], [], []>} : vector<8x128xbf16>, vector<128x512xbf16>, vector<8x512xf32> -> vector<8x512xf32>
    %198 = arith.addf %195, %197 : vector<8x512xf32>
    %199 = arith.mulf %198, %28 : vector<8x512xf32>
    %200 = math.tanh %199 : vector<8x512xf32>
    %201 = arith.mulf %200, %28 : vector<8x512xf32>
    %202 = arith.addf %201, %33 : vector<8x512xf32>
    %203 = vector.extract_strided_slice %202 {offsets = [0, 0], sizes = [8, 128], strides = [1, 1]} : vector<8x512xf32> to vector<8x128xf32>
    %204 = vector.extract_strided_slice %202 {offsets = [0, 128], sizes = [8, 128], strides = [1, 1]} : vector<8x512xf32> to vector<8x128xf32>
    %205 = vector.extract_strided_slice %202 {offsets = [0, 256], sizes = [8, 128], strides = [1, 1]} : vector<8x512xf32> to vector<8x128xf32>
    %206 = vector.extract_strided_slice %202 {offsets = [0, 384], sizes = [8, 128], strides = [1, 1]} : vector<8x512xf32> to vector<8x128xf32>
    %207 = arith.mulf %204, %193 : vector<8x128xf32>
    %208 = arith.mulf %203, %205 : vector<8x128xf32>
    %209 = arith.addf %207, %208 : vector<8x128xf32>
    %210 = math.tanh %209 : vector<8x128xf32>
    %211 = arith.mulf %206, %210 : vector<8x128xf32>
    %c0_103 = arith.constant 0 : index
    %c0_104 = arith.constant 0 : index
    %212 = vector.load %arg11[%c0_103, %c0_104] : memref<8x128xf32, #tpu.memory_space<vmem>>, vector<8x128xf32>
    tpu.vector_store %arg11[%c0_103, %c0_104], %211 {strides = array<i32>} : memref<8x128xf32, #tpu.memory_space<vmem>>, vector<8x128xf32>,
    %c0_105 = arith.constant 0 : index
    %c0_106 = arith.constant 0 : index
    %213 = vector.load %arg12[%c0_105, %c0_106] : memref<8x128xf32, #tpu.memory_space<vmem>>, vector<8x128xf32>
    tpu.vector_store %arg12[%c0_105, %c0_106], %209 {strides = array<i32>} : memref<8x128xf32, #tpu.memory_space<vmem>>, vector<8x128xf32>,
    %214 = arith.index_cast %191 : i32 to index
    %c0_107 = arith.constant 0 : index
    %215 = vector.load %arg7[%214, %c0_107] : memref<64x128xf32, #tpu.memory_space<vmem>>, vector<8x128xf32>
    tpu.vector_store %arg7[%214, %c0_107], %211 {strides = array<i32>} : memref<64x128xf32, #tpu.memory_space<vmem>>, vector<8x128xf32>,
    %c7_i32 = arith.constant 7 : i32
    %c8_i32_108 = arith.constant 8 : i32
    %216 = arith.muli %c7_i32, %c8_i32_108 : i32
    %217 = tpu.assume_multiple %216, 8 : i32
    %c0_109 = arith.constant 0 : index
    %c0_110 = arith.constant 0 : index
    %218 = vector.load %arg11[%c0_109, %c0_110] : memref<8x128xf32, #tpu.memory_space<vmem>>, vector<8x128xf32>
    %c0_111 = arith.constant 0 : index
    %c0_112 = arith.constant 0 : index
    %219 = vector.load %arg12[%c0_111, %c0_112] : memref<8x128xf32, #tpu.memory_space<vmem>>, vector<8x128xf32>
    %220 = arith.index_cast %217 : i32 to index
    %c0_113 = arith.constant 0 : index
    %221 = vector.load %arg10[%220, %c0_113] : memref<64x512xf32, #tpu.memory_space<vmem>>, vector<8x512xf32>
    %222 = arith.truncf %218 : vector<8x128xf32> to vector<8x128xbf16>
    %cst_114 = arith.constant dense<0.000000e+00> : vector<8x512xf32>
    %223 = tpu.matmul %222, %3, %cst_114 {dimension_numbers = #tpu.dot_dimension_numbers<[1], [0], [0], [1], [0, 0, 1, 1], [], []>} : vector<8x128xbf16>, vector<128x512xbf16>, vector<8x512xf32> -> vector<8x512xf32>
    %224 = arith.addf %221, %223 : vector<8x512xf32>
    %225 = arith.mulf %224, %28 : vector<8x512xf32>
    %226 = math.tanh %225 : vector<8x512xf32>
    %227 = arith.mulf %226, %28 : vector<8x512xf32>
    %228 = arith.addf %227, %33 : vector<8x512xf32>
    %229 = vector.extract_strided_slice %228 {offsets = [0, 0], sizes = [8, 128], strides = [1, 1]} : vector<8x512xf32> to vector<8x128xf32>
    %230 = vector.extract_strided_slice %228 {offsets = [0, 128], sizes = [8, 128], strides = [1, 1]} : vector<8x512xf32> to vector<8x128xf32>
    %231 = vector.extract_strided_slice %228 {offsets = [0, 256], sizes = [8, 128], strides = [1, 1]} : vector<8x512xf32> to vector<8x128xf32>
    %232 = vector.extract_strided_slice %228 {offsets = [0, 384], sizes = [8, 128], strides = [1, 1]} : vector<8x512xf32> to vector<8x128xf32>
    %233 = arith.mulf %230, %219 : vector<8x128xf32>
    %234 = arith.mulf %229, %231 : vector<8x128xf32>
    %235 = arith.addf %233, %234 : vector<8x128xf32>
    %236 = math.tanh %235 : vector<8x128xf32>
    %237 = arith.mulf %232, %236 : vector<8x128xf32>
    %c0_115 = arith.constant 0 : index
    %c0_116 = arith.constant 0 : index
    %238 = vector.load %arg11[%c0_115, %c0_116] : memref<8x128xf32, #tpu.memory_space<vmem>>, vector<8x128xf32>
    tpu.vector_store %arg11[%c0_115, %c0_116], %237 {strides = array<i32>} : memref<8x128xf32, #tpu.memory_space<vmem>>, vector<8x128xf32>,
    %c0_117 = arith.constant 0 : index
    %c0_118 = arith.constant 0 : index
    %239 = vector.load %arg12[%c0_117, %c0_118] : memref<8x128xf32, #tpu.memory_space<vmem>>, vector<8x128xf32>
    tpu.vector_store %arg12[%c0_117, %c0_118], %235 {strides = array<i32>} : memref<8x128xf32, #tpu.memory_space<vmem>>, vector<8x128xf32>,
    %240 = arith.index_cast %217 : i32 to index
    %c0_119 = arith.constant 0 : index
    %241 = vector.load %arg7[%240, %c0_119] : memref<64x128xf32, #tpu.memory_space<vmem>>, vector<8x128xf32>
    tpu.vector_store %arg7[%240, %c0_119], %237 {strides = array<i32>} : memref<64x128xf32, #tpu.memory_space<vmem>>, vector<8x128xf32>,
    %c8_i32_120 = arith.constant 8 : i32
    %c0_121 = arith.constant 0 : index
    %c0_122 = arith.constant 0 : index
    %242 = vector.load %arg11[%c0_121, %c0_122] : memref<8x128xf32, #tpu.memory_space<vmem>>, vector<8x128xf32>
    %c0_123 = arith.constant 0 : index
    %c0_124 = arith.constant 0 : index
    %c0_125 = arith.constant 0 : index
    %243 = vector.load %arg8[%c0_123, %c0_124, %c0_125] : memref<1x8x128xf32, #tpu.memory_space<vmem>>, vector<1x8x128xf32>
    %244 = vector.shape_cast %243 : vector<1x8x128xf32> to vector<8x128xf32>
    %245 = vector.shape_cast %242 : vector<8x128xf32> to vector<1x8x128xf32>
    tpu.vector_store %arg8[%c0_123, %c0_124, %c0_125], %245 {strides = array<i32>} : memref<1x8x128xf32, #tpu.memory_space<vmem>>, vector<1x8x128xf32>,
    %c0_126 = arith.constant 0 : index
    %c0_127 = arith.constant 0 : index
    %246 = vector.load %arg12[%c0_126, %c0_127] : memref<8x128xf32, #tpu.memory_space<vmem>>, vector<8x128xf32>
    %c0_128 = arith.constant 0 : index
    %c0_129 = arith.constant 0 : index
    %c0_130 = arith.constant 0 : index
    %247 = vector.load %arg9[%c0_128, %c0_129, %c0_130] : memref<1x8x128xf32, #tpu.memory_space<vmem>>, vector<1x8x128xf32>
    %248 = vector.shape_cast %247 : vector<1x8x128xf32> to vector<8x128xf32>
    %249 = vector.shape_cast %246 : vector<8x128xf32> to vector<1x8x128xf32>
    tpu.vector_store %arg9[%c0_128, %c0_129, %c0_130], %249 {strides = array<i32>} : memref<1x8x128xf32, #tpu.memory_space<vmem>>, vector<1x8x128xf32>,
    return
  }
  func.func @transform_0(%arg0: i32) -> (i32, i32) {
    %c0_i32 = arith.constant 0 : i32
    %c0_i32_0 = arith.constant 0 : i32
    %c0_i32_1 = arith.constant 0 : i32
    return %c0_i32, %c0_i32_0 : i32, i32
  }
  func.func @transform_1(%arg0: i32) -> (i32, i32, i32) {
    %c0_i32 = arith.constant 0 : i32
    %c0_i32_0 = arith.constant 0 : i32
    %c0_i32_1 = arith.constant 0 : i32
    return %arg0, %c0_i32, %c0_i32_0 : i32, i32, i32
  }
  func.func @transform_2(%arg0: i32) -> (i32, i32, i32) {
    %c0_i32 = arith.constant 0 : i32
    %c0_i32_0 = arith.constant 0 : i32
    %c0_i32_1 = arith.constant 0 : i32
    return %arg0, %c0_i32, %c0_i32_0 : i32, i32, i32
  }
  func.func @transform_3(%arg0: i32) -> (i32, i32, i32) {
    %c0_i32 = arith.constant 0 : i32
    %c0_i32_0 = arith.constant 0 : i32
    %c0_i32_1 = arith.constant 0 : i32
    return %arg0, %c0_i32, %c0_i32_0 : i32, i32, i32
  }
  func.func @transform_4(%arg0: i32) -> (i32, i32, i32) {
    %c0_i32 = arith.constant 0 : i32
    %c0_i32_0 = arith.constant 0 : i32
    %c0_i32_1 = arith.constant 0 : i32
    return %arg0, %c0_i32, %c0_i32_0 : i32, i32, i32
  }
  func.func @transform_5(%arg0: i32) -> (i32, i32, i32) {
    %c0_i32 = arith.constant 0 : i32
    %c0_i32_0 = arith.constant 0 : i32
    %c0_i32_1 = arith.constant 0 : i32
    return %arg0, %c0_i32, %c0_i32_0 : i32, i32, i32
  }
  func.func @transform_6(%arg0: i32) -> (i32, i32) {
    %c0_i32 = arith.constant 0 : i32
    %c0_i32_0 = arith.constant 0 : i32
    %c0_i32_1 = arith.constant 0 : i32
    return %c0_i32, %c0_i32_0 : i32, i32
  }
  func.func @transform_7(%arg0: i32) -> (i32, i32, i32) {
    %c0_i32 = arith.constant 0 : i32
    %c0_i32_0 = arith.constant 0 : i32
    %c0_i32_1 = arith.constant 0 : i32
    return %arg0, %c0_i32, %c0_i32_0 : i32, i32, i32
  }
  func.func @transform_8(%arg0: i32) -> (i32, i32, i32) {
    %c0_i32 = arith.constant 0 : i32
    %c0_i32_0 = arith.constant 0 : i32
    %c0_i32_1 = arith.constant 0 : i32
    return %arg0, %c0_i32, %c0_i32_0 : i32, i32, i32
  }
}

</mosaic_0001>

<llo_original>
// kernel: music_lstm_forward.3
$region0: #{music_lstm_forward.3}
  #allocation0 [shape = 'u32[]', space=smem, size = 0x4, offset = 0x4, fixed_abs, tag = 'smem constant byte address 0x4 - core index']
  #allocation1 [shape = 'u32[144,128]{1,0:T(1,128)}', space=vmem, size = 0x12000, scoped, tag = 'internal scratch']
  %s0 = inlined_call_operand.hbm [shape: f32[64,128], index: 0, kind: input, shape index: {}]
  %s1 = inlined_call_operand.hbm [shape: bf16[128,256], index: 1, kind: input, shape index: {}]
  %s2 = inlined_call_operand.hbm [shape: f32[1,256], index: 2, kind: input, shape index: {}]
  %s3 = inlined_call_operand.hbm [shape: bf16[64,256], index: 3, kind: output, shape index: {}]
  %s4 = sld [smem:[#allocation0]]
  $region34: #{music_lstm_forward.3} parent=0
    _
  %s6 = ssub.s32 1, %s4
  %s7 = scalar_select 0, %s6, %s4
  $region1: #{music_lstm_forward.3} parent=0
    #allocation2 [shape = 'u8[32768]{0}', space=vmem, size = 0x8000, scoped, tag = 'input window, operand 0, single buffered']
    #allocation3 [shape = 's32[1]{0}', space=sflag, size = 0x4, scoped, tag = 'scoped memory for music_lstm_forward.3']
    #allocation4 [shape = 's32[1]{0}', space=sflag, size = 0x4, scoped, tag = 'scoped memory for music_lstm_forward.3']
    #allocation5 [shape = 'u8[65536]{0}', space=vmem, size = 0x10000, scoped, tag = 'input window, operand 1, single buffered']
    #allocation6 [shape = 's32[1]{0}', space=sflag, size = 0x4, scoped, tag = 'scoped memory for music_lstm_forward.3']
    #allocation7 [shape = 'u8[1024]{0}', space=vmem, size = 0x400, scoped, tag = 'input window, operand 2, single buffered']
    #allocation8 [shape = 'u8[32768]{0}', space=vmem, size = 0x8000, scoped, tag = 'output window, operand 0, single buffered']
    %8 = vsyncpa [#allocation3], 0
    %9 = vsyncpa [#allocation6], 0
    %10 = vsyncpa [#allocation4], 0
    // Predicated region
    $region2: #{music_lstm_forward.3} parent=1 // pred_check
      _
    $region3: #{music_lstm_forward.3} parent=1 // pred_check_branch
      %12 = sbr.rel (0) target = $region5
    $region4: #{music_lstm_forward.3} parent=1 // pred_region
      %s14 = ssub.s32 1024, 1024
      %15 = vsyncadd [#allocation3], %s14
      %s16 = sshll.u32 [#allocation2], 4
      %s17 = int_to_ptr.vmem [resolvable:$true] %s16
      %22 = dma.hbm_to_vmem [thread:$0]  %s0, 1024, %s17, [#allocation3], 128, 128, 8
    $region5: #{music_lstm_forward.3} parent=1 // pred_fallthru
      _
    // Predicated region
    $region6: #{music_lstm_forward.3} parent=1 // pred_check
      _
    $region7: #{music_lstm_forward.3} parent=1 // pred_check_branch
      %24 = sbr.rel (0) target = $region9
    $region8: #{music_lstm_forward.3} parent=1 // pred_region
      %s26 = ssub.s32 2048, 2048
      %27 = vsyncadd [#allocation6], %s26
      %s28 = sshll.u32 [#allocation5], 4
      %s29 = int_to_ptr.vmem [resolvable:$true] %s28
      %34 = dma.hbm_to_vmem [thread:$0]  %s1, 2048, %s29, [#allocation6], 128, 128, 8
    $region9: #{music_lstm_forward.3} parent=1 // pred_fallthru
      _
    // Predicated region
    $region10: #{music_lstm_forward.3} parent=1 // pred_check
      _
    $region11: #{music_lstm_forward.3} parent=1 // pred_check_branch
      %36 = sbr.rel (0) target = $region13
    $region12: #{music_lstm_forward.3} parent=1 // pred_region
      %s38 = ssub.s32 32, 32
      %39 = vsyncadd [#allocation6], %s38
      %s41 = sshll.u32 [#allocation7], 4
      %s42 = int_to_ptr.vmem [resolvable:$true] %s41
      %44 = dma.hbm_to_vmem [thread:$0]  %s2, 32, %s42, [#allocation6]
    $region13: #{music_lstm_forward.3} parent=1 // pred_fallthru
      _
    // Predicated region
    $region14: #{music_lstm_forward.3} parent=1 // pred_check
      _
    $region15: #{music_lstm_forward.3} parent=1 // pred_check_branch
      %46 = sbr.rel (0) target = $region17
    $region16: #{music_lstm_forward.3} parent=1 // pred_region
      %47 = dma.done [#allocation3], 1024
    $region17: #{music_lstm_forward.3} parent=1 // pred_fallthru
      _
    // Predicated region
    $region18: #{music_lstm_forward.3} parent=1 // pred_check
      _
    $region19: #{music_lstm_forward.3} parent=1 // pred_check_branch
      %49 = sbr.rel (0) target = $region21
    $region20: #{music_lstm_forward.3} parent=1 // pred_region
      %50 = dma.done [#allocation6], 2048
    $region21: #{music_lstm_forward.3} parent=1 // pred_fallthru
      _
    // Predicated region
    $region22: #{music_lstm_forward.3} parent=1 // pred_check
      _
    $region23: #{music_lstm_forward.3} parent=1 // pred_check_branch
      %52 = sbr.rel (0) target = $region25
    $region24: #{music_lstm_forward.3} parent=1 // pred_region
      %53 = dma.done [#allocation6], 32
    $region25: #{music_lstm_forward.3} parent=1 // pred_fallthru
      _
    %v55 = vld [vmem:[#allocation2] sm:$0xff]
    %v56 = vld [vmem:[#allocation2 + $0x8] sm:$0xff]
    %v57 = vld [vmem:[#allocation2 + $0x10] sm:$0xff]
    %v58 = vld [vmem:[#allocation2 + $0x18] sm:$0xff]
    %v59 = vld [vmem:[#allocation2 + $0x20] sm:$0xff]
    %v60 = vld [vmem:[#allocation2 + $0x28] sm:$0xff]
    %v61 = vld [vmem:[#allocation2 + $0x30] sm:$0xff]
    %v62 = vld [vmem:[#allocation2 + $0x38] sm:$0xff]
    %v63 = vpack.c.bf16 %v56, %v55
    %v64 = vpack.c.bf16 %v58, %v57
    %v65 = vpack.c.bf16 %v60, %v59
    %v66 = vpack.c.bf16 %v62, %v61
    %v67 = vld [vmem:[#allocation5] sm:$0xff]
    %v68 = vld [vmem:[#allocation5 + $0x8] sm:$0xff]
    %v69 = vld [vmem:[#allocation5 + $0x10] sm:$0xff]
    %v70 = vld [vmem:[#allocation5 + $0x18] sm:$0xff]
    %v71 = vld [vmem:[#allocation5 + $0x20] sm:$0xff]
    %v72 = vld [vmem:[#allocation5 + $0x28] sm:$0xff]
    %v73 = vld [vmem:[#allocation5 + $0x30] sm:$0xff]
    %v74 = vld [vmem:[#allocation5 + $0x38] sm:$0xff]
    %v75 = vld [vmem:[#allocation5 + $0x40] sm:$0xff]
    %v76 = vld [vmem:[#allocation5 + $0x48] sm:$0xff]
    %v77 = vld [vmem:[#allocation5 + $0x50] sm:$0xff]
    %v78 = vld [vmem:[#allocation5 + $0x58] sm:$0xff]
    %v79 = vld [vmem:[#allocation5 + $0x60] sm:$0xff]
    %v80 = vld [vmem:[#allocation5 + $0x68] sm:$0xff]
    %v81 = vld [vmem:[#allocation5 + $0x70] sm:$0xff]
    %v82 = vld [vmem:[#allocation5 + $0x78] sm:$0xff]
    %v83 = vld [vmem:[#allocation7] sm:$0x3]
    %v85 = vlaneseq
    %v86 = vshrl.u32 %v85, 7
    %v87 = vsub.s32 0, %v86
    %v88 = vrot.slane %v83, %v87
    %v89 = vlaneseq
    %v90 = vshrl.u32 %v89, 7
    %v91 = vsub.s32 1, %v90
    %v92 = vrot.slane %v83, %v91
    %v111 = vunpack.c.l.b16 %v67
    %v112 = vunpack.c.h.b16 %v67
    %v113 = vunpack.c.l.b16 %v68
    %v114 = vunpack.c.h.b16 %v68
    %v115 = vunpack.c.l.b16 %v69
    %v116 = vunpack.c.h.b16 %v69
    %v117 = vunpack.c.l.b16 %v70
    %v118 = vunpack.c.h.b16 %v70
    %v119 = vunpack.c.l.b16 %v71
    %v120 = vunpack.c.h.b16 %v71
    %v121 = vunpack.c.l.b16 %v72
    %v122 = vunpack.c.h.b16 %v72
    %v123 = vunpack.c.l.b16 %v73
    %v124 = vunpack.c.h.b16 %v73
    %v125 = vunpack.c.l.b16 %v74
    %v126 = vunpack.c.h.b16 %v74
    %v127 = vunpack.c.l.b16 %v75
    %v128 = vunpack.c.h.b16 %v75
    %v129 = vunpack.c.l.b16 %v76
    %v130 = vunpack.c.h.b16 %v76
    %v131 = vunpack.c.l.b16 %v77
    %v132 = vunpack.c.h.b16 %v77
    %v133 = vunpack.c.l.b16 %v78
    %v134 = vunpack.c.h.b16 %v78
    %v135 = vunpack.c.l.b16 %v79
    %v136 = vunpack.c.h.b16 %v79
    %v137 = vunpack.c.l.b16 %v80
    %v138 = vunpack.c.h.b16 %v80
    %v139 = vunpack.c.l.b16 %v81
    %v140 = vunpack.c.h.b16 %v81
    %v141 = vunpack.c.l.b16 %v82
    %v142 = vunpack.c.h.b16 %v82
    %v143 = vpack.c.b16 %v113, %v111
    %v144 = vpack.c.b16 %v114, %v112
    %v145 = vpack.c.b16 %v117, %v115
    %v146 = vpack.c.b16 %v118, %v116
    %v147 = vpack.c.b16 %v121, %v119
    %v148 = vpack.c.b16 %v122, %v120
    %v149 = vpack.c.b16 %v125, %v123
    %v150 = vpack.c.b16 %v126, %v124
    %v151 = vpack.c.b16 %v129, %v127
    %v152 = vpack.c.b16 %v130, %v128
    %v153 = vpack.c.b16 %v133, %v131
    %v154 = vpack.c.b16 %v134, %v132
    %v155 = vpack.c.b16 %v137, %v135
    %v156 = vpack.c.b16 %v138, %v136
    %v157 = vpack.c.b16 %v141, %v139
    %v158 = vpack.c.b16 %v142, %v140
    %175 = vmatprep.subr.bf16.mxu0 %v144
    %176 = vmatpush1.bf16.msra.mxu0 %v143
    %177 = vmatprep.subr.bf16.mxu0 %v146
    %178 = vmatpush1.bf16.msra.mxu0 %v145
    %179 = vmatprep.subr.bf16.mxu0 %v148
    %180 = vmatpush1.bf16.msra.mxu0 %v147
    %181 = vmatprep.subr.bf16.mxu0 %v150
    %182 = vmatpush1.bf16.msra.mxu0 %v149
    %183 = vmatprep.subr.bf16.mxu0 %v152
    %184 = vmatpush1.bf16.msra.mxu0 %v151
    %185 = vmatprep.subr.bf16.mxu0 %v154
    %186 = vmatpush1.bf16.msra.mxu0 %v153
    %187 = vmatprep.subr.bf16.mxu0 %v156
    %188 = vmatpush1.bf16.msra.mxu0 %v155
    %189 = vmatprep.subr.bf16.mxu0 %v158
    %190 = vmatpush1.bf16.msra.mxu0 %v157
    %191 = vmatprep.subr.bf16.mxu0 0
    %192 = vmatpush1.bf16.msra.mxu0 0
    %193 = vmatprep.subr.bf16.mxu0 0
    %194 = vmatpush1.bf16.msra.mxu0 0
    %195 = vmatprep.subr.bf16.mxu0 0
    %196 = vmatpush1.bf16.msra.mxu0 0
    %197 = vmatprep.subr.bf16.mxu0 0
    %198 = vmatpush1.bf16.msra.mxu0 0
    %199 = vmatprep.subr.bf16.mxu0 0
    %200 = vmatpush1.bf16.msra.mxu0 0
    %201 = vmatprep.subr.bf16.mxu0 0
    %202 = vmatpush1.bf16.msra.mxu0 0
    %203 = vmatprep.subr.bf16.mxu0 0
    %204 = vmatpush1.bf16.msra.mxu0 0
    %205 = vmatprep.subr.bf16.mxu0 0
    %206 = vmatpush1.bf16.msra.mxu0 0
    %207 = vmatprep.mubr.bf16.mxu0 0
    %208 = vmatmul.mubr.bf16.gmra.mrb[0].mxu0 %v63
    %v209 = vpop.f32.mrb[0].mxu0
    %v210 = vadd.f32 %v88, %v209
    %v211 = vpop.f32.mrb[0].mxu0
    %v212 = vadd.f32 %v92, %v211
    %v213 = vpop.f32.mrb[0].mxu0
    %v214 = vadd.f32 %v88, %v213
    %v215 = vpop.f32.mrb[0].mxu0
    %v216 = vadd.f32 %v92, %v215
    %217 = vmatprep.mubr.bf16.mxu0 0
    %218 = vmatmul.mubr.bf16.gmra.mrb[0].mxu0 %v64
    %v219 = vpop.f32.mrb[0].mxu0
    %v220 = vadd.f32 %v88, %v219
    %v221 = vpop.f32.mrb[0].mxu0
    %v222 = vadd.f32 %v92, %v221
    %v223 = vpop.f32.mrb[0].mxu0
    %v224 = vadd.f32 %v88, %v223
    %v225 = vpop.f32.mrb[0].mxu0
    %v226 = vadd.f32 %v92, %v225
    %227 = vmatprep.mubr.bf16.mxu0 0
    %228 = vmatmul.mubr.bf16.gmra.mrb[0].mxu0 %v65
    %v229 = vpop.f32.mrb[0].mxu0
    %v230 = vadd.f32 %v88, %v229
    %v231 = vpop.f32.mrb[0].mxu0
    %v232 = vadd.f32 %v92, %v231
    %v233 = vpop.f32.mrb[0].mxu0
    %v234 = vadd.f32 %v88, %v233
    %v235 = vpop.f32.mrb[0].mxu0
    %v236 = vadd.f32 %v92, %v235
    %237 = vmatprep.mubr.bf16.mxu0 0
    %238 = vmatmul.mubr.bf16.gmra.mrb[0].mxu0 %v66
    %v239 = vpop.f32.mrb[0].mxu0
    %v240 = vadd.f32 %v88, %v239
    %v241 = vpop.f32.mrb[0].mxu0
    %v242 = vadd.f32 %v92, %v241
    %v243 = vpop.f32.mrb[0].mxu0
    %v244 = vadd.f32 %v88, %v243
    %v245 = vpop.f32.mrb[0].mxu0
    %v246 = vadd.f32 %v92, %v245
    %247 = vdwg.mxu0
    %v248 = vpack.c.bf16 %v214, %v210
    %v249 = vpack.c.bf16 %v216, %v212
    %v250 = vpack.c.bf16 %v224, %v220
    %v251 = vpack.c.bf16 %v226, %v222
    %v252 = vpack.c.bf16 %v234, %v230
    %v253 = vpack.c.bf16 %v236, %v232
    %v254 = vpack.c.bf16 %v244, %v240
    %v255 = vpack.c.bf16 %v246, %v242
    %v264 = vunpack.c.l.b16 %v248
    %v265 = vunpack.c.l.b16 %v249
    %v266 = vunpack.c.h.b16 %v248
    %v267 = vunpack.c.h.b16 %v249
    %v268 = vunpack.c.l.b16 %v250
    %v269 = vunpack.c.l.b16 %v251
    %v270 = vunpack.c.h.b16 %v250
    %v271 = vunpack.c.h.b16 %v251
    %v272 = vunpack.c.l.b16 %v252
    %v273 = vunpack.c.l.b16 %v253
    %v274 = vunpack.c.h.b16 %v252
    %v275 = vunpack.c.h.b16 %v253
    %v276 = vunpack.c.l.b16 %v254
    %v277 = vunpack.c.l.b16 %v255
    %v278 = vunpack.c.h.b16 %v254
    %v279 = vunpack.c.h.b16 %v255
    %v280 = vpack.c.b16 %v265, %v264
    %v281 = vpack.c.b16 %v267, %v266
    %v282 = vpack.c.b16 %v269, %v268
    %v283 = vpack.c.b16 %v271, %v270
    %v284 = vpack.c.b16 %v273, %v272
    %v285 = vpack.c.b16 %v275, %v274
    %v286 = vpack.c.b16 %v277, %v276
    %v287 = vpack.c.b16 %v279, %v278
    %296 = vst [vmem:[#allocation8] sm:$0xff] %v280
    %297 = vst [vmem:[#allocation8 + $0x8] sm:$0xff] %v281
    %298 = vst [vmem:[#allocation8 + $0x10] sm:$0xff] %v282
    %299 = vst [vmem:[#allocation8 + $0x18] sm:$0xff] %v283
    %300 = vst [vmem:[#allocation8 + $0x20] sm:$0xff] %v284
    %301 = vst [vmem:[#allocation8 + $0x28] sm:$0xff] %v285
    %302 = vst [vmem:[#allocation8 + $0x30] sm:$0xff] %v286
    %303 = vst [vmem:[#allocation8 + $0x38] sm:$0xff] %v287
    // Predicated region
    $region26: #{music_lstm_forward.3} parent=1 // pred_check
      _
    $region27: #{music_lstm_forward.3} parent=1 // pred_check_branch
      %305 = sbr.rel (0) target = $region29
    $region28: #{music_lstm_forward.3} parent=1 // pred_region
      %s307 = ssub.s32 1024, 1024
      %308 = vsyncadd [#allocation4], %s307
      %s309 = sshll.u32 [#allocation8], 4
      %s310 = int_to_ptr.vmem [resolvable:$true] %s309
      %315 = dma.vmem_to_hbm [thread:$0]  %s310, 1024, %s3, [#allocation4], 128, 128, 8
    $region29: #{music_lstm_forward.3} parent=1 // pred_fallthru
      _
    // Predicated region
    $region30: #{music_lstm_forward.3} parent=1 // pred_check
      _
    $region31: #{music_lstm_forward.3} parent=1 // pred_check_branch
      %317 = sbr.rel (0) target = $region33
    $region32: #{music_lstm_forward.3} parent=1 // pred_region
      %318 = dma.done [#allocation4], 1024
    $region33: #{music_lstm_forward.3} parent=1 // pred_fallthru
      _
    %319 = vsyncpa [#allocation3], 1
    %320 = vsyncpa [#allocation6], 1
    %321 = vsyncpa [#allocation4], 1

// kernel: music_lstm_forward.2
$region0: #{music_lstm_forward.2}
  #allocation0 [shape = 'u32[]', space=smem, size = 0x4, offset = 0x4, fixed_abs, tag = 'smem constant byte address 0x4 - core index']
  #allocation1 [shape = 'u32[144,128]{1,0:T(1,128)}', space=vmem, size = 0x12000, scoped, tag = 'internal scratch']
  #allocation2 [shape = 'f32[64,512]{1,0:T(8,128)}', space=vmem, size = 0x20000, scoped, tag = 'scratch operand']
  #allocation3 [shape = 'f32[8,128]{1,0:T(8,128)}', space=vmem, size = 0x1000, scoped, tag = 'scratch operand']
  #allocation4 [shape = 'f32[8,128]{1,0:T(8,128)}', space=vmem, size = 0x1000, scoped, tag = 'scratch operand']
  %s0 = inlined_call_operand.hbm [shape: bf16[64,128], index: 0, kind: input, shape index: {}]
  %s1 = inlined_call_operand.hbm [shape: bf16[3,128,512], index: 1, kind: input, shape index: {}]
  %s2 = inlined_call_operand.hbm [shape: bf16[3,128,512], index: 2, kind: input, shape index: {}]
  %s3 = inlined_call_operand.hbm [shape: f32[3,1,512], index: 3, kind: input, shape index: {}]
  %s4 = inlined_call_operand.hbm [shape: f32[3,8,128], index: 4, kind: input, shape index: {}, may-alias: {4,5}]
  %s5 = inlined_call_operand.hbm [shape: f32[3,8,128], index: 5, kind: input, shape index: {}, may-alias: {4,5}]
  %s6 = inlined_call_operand.hbm [shape: f32[64,128], index: 6, kind: output, shape index: {0}]
  %s7 = inlined_call_operand.hbm [shape: f32[3,8,128], index: 7, kind: output, shape index: {1}]
  %s8 = inlined_call_operand.hbm [shape: f32[3,8,128], index: 8, kind: output, shape index: {2}]
  %9 = xla_tuple %s6, %s7, %s8
  %s10 = sld [smem:[#allocation0]]
  $region105: #{music_lstm_forward.2} parent=0
    _
  %s12 = ssub.s32 1, %s10
  %s13 = scalar_select 0, %s12, %s10
  $region1: #{music_lstm_forward.2} parent=0
    #allocation5 [shape = 'u8[16384]{0}', space=vmem, size = 0x4000, scoped, tag = 'input window, operand 0, single buffered']
    #allocation6 [shape = 's32[2]{0}', space=sflag, size = 0x8, scoped, tag = 'scoped memory for music_lstm_forward.2']
    #allocation7 [shape = 's32[2]{0}', space=sflag, size = 0x8, scoped, tag = 'scoped memory for music_lstm_forward.2']
    #allocation8 [shape = 'u8[262144]{0}', space=vmem, size = 0x40000, scoped, tag = 'input window, operand 1']
    #allocation9 [shape = 's32[2]{0}', space=sflag, size = 0x8, scoped, tag = 'scoped memory for music_lstm_forward.2']
    #allocation10 [shape = 'u8[262144]{0}', space=vmem, size = 0x40000, scoped, tag = 'input window, operand 2']
    #allocation11 [shape = 'u8[4096]{0}', space=vmem, size = 0x1000, scoped, tag = 'input window, operand 3']
    #allocation12 [shape = 's32[2]{0}', space=sflag, size = 0x8, scoped, tag = 'scoped memory for music_lstm_forward.2']
    #allocation13 [shape = 'u8[8192]{0}', space=vmem, size = 0x2000, scoped, tag = 'input window, operand 4']
    #allocation14 [shape = 'u8[8192]{0}', space=vmem, size = 0x2000, scoped, tag = 'input window, operand 5']
    #allocation15 [shape = 's32[2]{0}', space=sflag, size = 0x8, scoped, tag = 'scoped memory for music_lstm_forward.2']
    #allocation16 [shape = 'u8[32768]{0}', space=vmem, size = 0x8000, scoped, tag = 'output window, operand 0, single buffered']
    #allocation17 [shape = 'u8[8192]{0}', space=vmem, size = 0x2000, scoped, tag = 'output window, operand 1']
    #allocation18 [shape = 's32[2]{0}', space=sflag, size = 0x8, scoped, tag = 'scoped memory for music_lstm_forward.2']
    #allocation19 [shape = 'u8[8192]{0}', space=vmem, size = 0x2000, scoped, tag = 'output window, operand 2']
    %14 = vsyncpa [#allocation6], 0
    %15 = vsyncpa [#allocation9], 0
    %s16 = scalar_lea.sflag [#allocation9], 1
    %17 = vsyncpa %s16, 0
    %18 = vsyncpa [#allocation12], 0
    %s19 = scalar_lea.sflag [#allocation12], 1
    %20 = vsyncpa %s19, 0
    %21 = vsyncpa [#allocation15], 0
    %s22 = scalar_lea.sflag [#allocation15], 1
    %23 = vsyncpa %s22, 0
    %24 = vsyncpa [#allocation7], 0
    %25 = vsyncpa [#allocation18], 0
    %s26 = scalar_lea.sflag [#allocation18], 1
    %27 = vsyncpa %s26, 0
    loop: start=0, step=1, limit=5
    $region2: #{music_lstm_forward.2} parent=1 // loop_pre_header
      _
    $region3: #{music_lstm_forward.2} parent=1 // loop_header
      %s29 = sphi 0, %s33
      %p30 = scmp.ge.s32.totalorder %s29, 5
      %s37 = sphi 0, %s37
      %s39 = sphi 0, %s37
      %s40 = sphi 0, %s39
      %s54 = sphi 0, %s40
      %s60 = sphi 0, %s62
      %s63 = sphi 0, %s60
      %s64 = sphi 0, %s63
      %s80 = sphi 0, %s64
      %s86 = sphi 0, %s88
      %s89 = sphi 0, %s86
      %s90 = sphi 0, %s89
      %s106 = sphi 0, %s90
      %s112 = sphi 0, %s114
      %s115 = sphi 0, %s112
      %s116 = sphi 0, %s115
      %s132 = sphi 0, %s116
      %s138 = sphi 0, %s140
      %s141 = sphi 0, %s138
      %s142 = sphi 0, %s141
      %s158 = sphi 0, %s142
      %s164 = sphi 0, %s166
      %s167 = sphi 0, %s164
      %s168 = sphi 0, %s167
      %s184 = sphi 0, %s168
      %s188 = sphi 0, %s188
      %s190 = sphi 0, %s188
      %s191 = sphi 0, %s190
      %s205 = sphi 0, %s191
      %s211 = sphi 0, %s213
      %s214 = sphi 0, %s211
      %s215 = sphi 0, %s214
      %s231 = sphi 0, %s215
      %s237 = sphi 0, %s239
      %s240 = sphi 0, %s237
      %s241 = sphi 0, %s240
      %s257 = sphi 0, %s241
    $region4: #{music_lstm_forward.2} parent=1 // loop_header_branch
      %32 = sbr.rel (%p30) target = $region8
    $region5: #{music_lstm_forward.2} parent=1 // loop_body
      %s34 = ssub.s32 %s29, 1
      %s35 = ssub.s32 %s29, 2
      %s36 = sadd.s32 %s29, 1
      %s38 = sadd.s32 %s37, 1
      %p41 = scmp.eq.s32.totalorder %s29, 2
      %p42 = scmp.ne.s32.totalorder %s37, %s39
      %p43 = scmp.eq.s32.totalorder %s29, 0
      %p44 = por %p42, %p43
      %p45 = scmp.ne.s32.totalorder %s37, %s39
      %p46 = scmp.eq.s32.totalorder %s34, 2
      %p47 = por %p45, %p46
      %p48 = scmp.ne.s32.totalorder %s39, %s40
      %p49 = scmp.eq.s32.totalorder %s34, 0
      %p50 = por %p48, %p49
      %p51 = scmp.ne.s32.totalorder %s39, %s40
      %p52 = scmp.eq.s32.totalorder %s35, 2
      %p53 = por %p51, %p52
      %p55 = scmp.ne.s32.totalorder %s40, %s54
      %p56 = scmp.eq.s32.totalorder %s35, 0
      %p57 = por %p55, %p56
      %s58 = ssub.s32 %s29, %s36
      %p59 = scmp.eq.s32.totalorder %s58, 0
      %s61 = sadd.s32 %s60, 1
      %s62 = scalar_select %p59, %s60, %s61
      %p65 = pneg %p59
      %p66 = scmp.eq.s32.totalorder %s29, 2
      %p67 = por %p65, %p66
      %p68 = scmp.ne.s32.totalorder %s60, %s63
      %p69 = scmp.eq.s32.totalorder %s29, 0
      %p70 = por %p68, %p69
      %p71 = scmp.ne.s32.totalorder %s60, %s63
      %p72 = scmp.eq.s32.totalorder %s34, 2
      %p73 = por %p71, %p72
      %p74 = scmp.ne.s32.totalorder %s63, %s64
      %p75 = scmp.eq.s32.totalorder %s34, 0
      %p76 = por %p74, %p75
      %p77 = scmp.ne.s32.totalorder %s63, %s64
      %p78 = scmp.eq.s32.totalorder %s35, 2
      %p79 = por %p77, %p78
      %p81 = scmp.ne.s32.totalorder %s64, %s80
      %p82 = scmp.eq.s32.totalorder %s35, 0
      %p83 = por %p81, %p82
      %s84 = ssub.s32 %s29, %s36
      %p85 = scmp.eq.s32.totalorder %s84, 0
      %s87 = sadd.s32 %s86, 1
      %s88 = scalar_select %p85, %s86, %s87
      %p91 = pneg %p85
      %p92 = scmp.eq.s32.totalorder %s29, 2
      %p93 = por %p91, %p92
      %p94 = scmp.ne.s32.totalorder %s86, %s89
      %p95 = scmp.eq.s32.totalorder %s29, 0
      %p96 = por %p94, %p95
      %p97 = scmp.ne.s32.totalorder %s86, %s89
      %p98 = scmp.eq.s32.totalorder %s34, 2
      %p99 = por %p97, %p98
      %p100 = scmp.ne.s32.totalorder %s89, %s90
      %p101 = scmp.eq.s32.totalorder %s34, 0
      %p102 = por %p100, %p101
      %p103 = scmp.ne.s32.totalorder %s89, %s90
      %p104 = scmp.eq.s32.totalorder %s35, 2
      %p105 = por %p103, %p104
      %p107 = scmp.ne.s32.totalorder %s90, %s106
      %p108 = scmp.eq.s32.totalorder %s35, 0
      %p109 = por %p107, %p108
      %s110 = ssub.s32 %s29, %s36
      %p111 = scmp.eq.s32.totalorder %s110, 0
      %s113 = sadd.s32 %s112, 1
      %s114 = scalar_select %p111, %s112, %s113
      %p117 = pneg %p111
      %p118 = scmp.eq.s32.totalorder %s29, 2
      %p119 = por %p117, %p118
      %p120 = scmp.ne.s32.totalorder %s112, %s115
      %p121 = scmp.eq.s32.totalorder %s29, 0
      %p122 = por %p120, %p121
      %p123 = scmp.ne.s32.totalorder %s112, %s115
      %p124 = scmp.eq.s32.totalorder %s34, 2
      %p125 = por %p123, %p124
      %p126 = scmp.ne.s32.totalorder %s115, %s116
      %p127 = scmp.eq.s32.totalorder %s34, 0
      %p128 = por %p126, %p127
      %p129 = scmp.ne.s32.totalorder %s115, %s116
      %p130 = scmp.eq.s32.totalorder %s35, 2
      %p131 = por %p129, %p130
      %p133 = scmp.ne.s32.totalorder %s116, %s132
      %p134 = scmp.eq.s32.totalorder %s35, 0
      %p135 = por %p133, %p134
      %s136 = ssub.s32 %s29, %s36
      %p137 = scmp.eq.s32.totalorder %s136, 0
      %s139 = sadd.s32 %s138, 1
      %s140 = scalar_select %p137, %s138, %s139
      %p143 = pneg %p137
      %p144 = scmp.eq.s32.totalorder %s29, 2
      %p145 = por %p143, %p144
      %p146 = scmp.ne.s32.totalorder %s138, %s141
      %p147 = scmp.eq.s32.totalorder %s29, 0
      %p148 = por %p146, %p147
      %p149 = scmp.ne.s32.totalorder %s138, %s141
      %p150 = scmp.eq.s32.totalorder %s34, 2
      %p151 = por %p149, %p150
      %p152 = scmp.ne.s32.totalorder %s141, %s142
      %p153 = scmp.eq.s32.totalorder %s34, 0
      %p154 = por %p152, %p153
      %p155 = scmp.ne.s32.totalorder %s141, %s142
      %p156 = scmp.eq.s32.totalorder %s35, 2
      %p157 = por %p155, %p156
      %p159 = scmp.ne.s32.totalorder %s142, %s158
      %p160 = scmp.eq.s32.totalorder %s35, 0
      %p161 = por %p159, %p160
      %s162 = ssub.s32 %s29, %s36
      %p163 = scmp.eq.s32.totalorder %s162, 0
      %s165 = sadd.s32 %s164, 1
      %s166 = scalar_select %p163, %s164, %s165
      %p169 = pneg %p163
      %p170 = scmp.eq.s32.totalorder %s29, 2
      %p171 = por %p169, %p170
      %p172 = scmp.ne.s32.totalorder %s164, %s167
      %p173 = scmp.eq.s32.totalorder %s29, 0
      %p174 = por %p172, %p173
      %p175 = scmp.ne.s32.totalorder %s164, %s167
      %p176 = scmp.eq.s32.totalorder %s34, 2
      %p177 = por %p175, %p176
      %p178 = scmp.ne.s32.totalorder %s167, %s168
      %p179 = scmp.eq.s32.totalorder %s34, 0
      %p180 = por %p178, %p179
      %p181 = scmp.ne.s32.totalorder %s167, %s168
      %p182 = scmp.eq.s32.totalorder %s35, 2
      %p183 = por %p181, %p182
      %p185 = scmp.ne.s32.totalorder %s168, %s184
      %p186 = scmp.eq.s32.totalorder %s35, 0
      %p187 = por %p185, %p186
      %s189 = sadd.s32 %s188, 1
      %p192 = scmp.eq.s32.totalorder %s29, 2
      %p193 = scmp.ne.s32.totalorder %s188, %s190
      %p194 = scmp.eq.s32.totalorder %s29, 0
      %p195 = por %p193, %p194
      %p196 = scmp.ne.s32.totalorder %s188, %s190
      %p197 = scmp.eq.s32.totalorder %s34, 2
      %p198 = por %p196, %p197
      %p199 = scmp.ne.s32.totalorder %s190, %s191
      %p200 = scmp.eq.s32.totalorder %s34, 0
      %p201 = por %p199, %p200
      %p202 = scmp.ne.s32.totalorder %s190, %s191
      %p203 = scmp.eq.s32.totalorder %s35, 2
      %p204 = por %p202, %p203
      %p206 = scmp.ne.s32.totalorder %s191, %s205
      %p207 = scmp.eq.s32.totalorder %s35, 0
      %p208 = por %p206, %p207
      %s209 = ssub.s32 %s29, %s36
      %p210 = scmp.eq.s32.totalorder %s209, 0
      %s212 = sadd.s32 %s211, 1
      %s213 = scalar_select %p210, %s211, %s212
      %p216 = pneg %p210
      %p217 = scmp.eq.s32.totalorder %s29, 2
      %p218 = por %p216, %p217
      %p219 = scmp.ne.s32.totalorder %s211, %s214
      %p220 = scmp.eq.s32.totalorder %s29, 0
      %p221 = por %p219, %p220
      %p222 = scmp.ne.s32.totalorder %s211, %s214
      %p223 = scmp.eq.s32.totalorder %s34, 2
      %p224 = por %p222, %p223
      %p225 = scmp.ne.s32.totalorder %s214, %s215
      %p226 = scmp.eq.s32.totalorder %s34, 0
      %p227 = por %p225, %p226
      %p228 = scmp.ne.s32.totalorder %s214, %s215
      %p229 = scmp.eq.s32.totalorder %s35, 2
      %p230 = por %p228, %p229
      %p232 = scmp.ne.s32.totalorder %s215, %s231
      %p233 = scmp.eq.s32.totalorder %s35, 0
      %p234 = por %p232, %p233
      %s235 = ssub.s32 %s29, %s36
      %p236 = scmp.eq.s32.totalorder %s235, 0
      %s238 = sadd.s32 %s237, 1
      %s239 = scalar_select %p236, %s237, %s238
      %p242 = pneg %p236
      %p243 = scmp.eq.s32.totalorder %s29, 2
      %p244 = por %p242, %p243
      %p245 = scmp.ne.s32.totalorder %s237, %s240
      %p246 = scmp.eq.s32.totalorder %s29, 0
      %p247 = por %p245, %p246
      %p248 = scmp.ne.s32.totalorder %s237, %s240
      %p249 = scmp.eq.s32.totalorder %s34, 2
      %p250 = por %p248, %p249
      %p251 = scmp.ne.s32.totalorder %s240, %s241
      %p252 = scmp.eq.s32.totalorder %s34, 0
      %p253 = por %p251, %p252
      %p254 = scmp.ne.s32.totalorder %s240, %s241
      %p255 = scmp.eq.s32.totalorder %s35, 2
      %p256 = por %p254, %p255
      %p258 = scmp.ne.s32.totalorder %s241, %s257
      %p259 = scmp.eq.s32.totalorder %s35, 0
      %p260 = por %p258, %p259
      %p261 = scmp.le.s32.totalorder 1, %s29
      %p262 = scmp.lt.s32.totalorder %s29, 4
      %p263 = pnand %p261, %p262
      %p264 = pneg %p263
      // Predicated region
      $region9: #{music_lstm_forward.2} parent=5 // pred_check
        _
      $region10: #{music_lstm_forward.2} parent=5 // pred_check_branch
        %266 = sbr.rel (%p263) target = $region12
      $region11: #{music_lstm_forward.2} parent=5 // pred_region
        %s267 = ssub.s32 %s29, 1
        // Predicated region
        $region13: #{music_lstm_forward.2} parent=11 // pred_check
          %p268 = pneg %p50
        $region14: #{music_lstm_forward.2} parent=11 // pred_check_branch
          %270 = sbr.rel (%p268) target = $region16
        $region15: #{music_lstm_forward.2} parent=11 // pred_region
          %s272 = ssub.s32 512, 512
          %273 = vsyncadd [#allocation6], %s272
          %s274 = sshll.u32 [#allocation5], 4
          %s275 = int_to_ptr.vmem [resolvable:$true] %s274
          %280 = dma.hbm_to_vmem [thread:$0]  %s0, 512, %s275, [#allocation6], 64, 64, 4
        $region16: #{music_lstm_forward.2} parent=11 // pred_fallthru
          _
      $region12: #{music_lstm_forward.2} parent=5 // pred_fallthru
        _
      %p281 = scmp.lt.s32.totalorder %s29, 3
      // Predicated region
      $region17: #{music_lstm_forward.2} parent=5 // pred_check
        %p282 = pneg %p281
      $region18: #{music_lstm_forward.2} parent=5 // pred_check_branch
        %284 = sbr.rel (%p282) target = $region20
      $region19: #{music_lstm_forward.2} parent=5 // pred_region
        // Predicated region
        $region21: #{music_lstm_forward.2} parent=19 // pred_check
          %p285 = pneg %p70
        $region22: #{music_lstm_forward.2} parent=19 // pred_check_branch
          %287 = sbr.rel (%p285) target = $region24
        $region23: #{music_lstm_forward.2} parent=19 // pred_region
          %s288 = sand.u32 %s29, 1
          %s289 = scalar_lea.sflag [#allocation9], %s288
          %s290 = sand.u32 %s60, 1
          %s291 = smul.addr %s290, 256
          %s292 = scalar_lea.vmem [#allocation8], %s291
          %s294 = ssub.s32 4096, 4096
          %295 = vsyncadd %s289, %s294
          %s296 = smul.addr %s29, 64
          %s297 = smul.addr %s296, 64
          %s298 = scalar_lea.hbm %s1, %s297
          %s299 = sshll.u32 %s292, 4
          %s300 = int_to_ptr.vmem [resolvable:$true] %s299
          %305 = dma.hbm_to_vmem [thread:$0]  %s298, 4096, %s300, %s289, 256, 256, 16
        $region24: #{music_lstm_forward.2} parent=19 // pred_fallthru
          _
        // Predicated region
        $region25: #{music_lstm_forward.2} parent=19 // pred_check
          %p306 = pneg %p96
        $region26: #{music_lstm_forward.2} parent=19 // pred_check_branch
          %308 = sbr.rel (%p306) target = $region28
        $region27: #{music_lstm_forward.2} parent=19 // pred_region
          %s309 = sand.u32 %s29, 1
          %s310 = scalar_lea.sflag [#allocation9], %s309
          %s311 = sand.u32 %s86, 1
          %s312 = smul.addr %s311, 256
          %s313 = scalar_lea.vmem [#allocation10], %s312
          %s315 = ssub.s32 4096, 4096
          %316 = vsyncadd %s310, %s315
          %s317 = smul.addr %s29, 64
          %s318 = smul.addr %s317, 64
          %s319 = scalar_lea.hbm %s2, %s318
          %s320 = sshll.u32 %s313, 4
          %s321 = int_to_ptr.vmem [resolvable:$true] %s320
          %326 = dma.hbm_to_vmem [thread:$0]  %s319, 4096, %s321, %s310, 256, 256, 16
        $region28: #{music_lstm_forward.2} parent=19 // pred_fallthru
          _
        // Predicated region
        $region29: #{music_lstm_forward.2} parent=19 // pred_check
          %p327 = pneg %p122
        $region30: #{music_lstm_forward.2} parent=19 // pred_check_branch
          %329 = sbr.rel (%p327) target = $region32
        $region31: #{music_lstm_forward.2} parent=19 // pred_region
          %s330 = sand.u32 %s29, 1
          %s331 = scalar_lea.sflag [#allocation12], %s330
          %s332 = sand.u32 %s112, 1
          %s333 = smul.addr %s332, 4
          %s334 = scalar_lea.vmem [#allocation11], %s333
          %s336 = ssub.s32 64, 64
          %337 = vsyncadd %s331, %s336
          %s338 = smul.addr %s29, 4
          %s339 = smul.addr %s338, 16
          %s340 = scalar_lea.hbm %s3, %s339
          %s342 = sshll.u32 %s334, 4
          %s343 = int_to_ptr.vmem [resolvable:$true] %s342
          %345 = dma.hbm_to_vmem [thread:$0]  %s340, 64, %s343, %s331
        $region32: #{music_lstm_forward.2} parent=19 // pred_fallthru
          _
        // Predicated region
        $region33: #{music_lstm_forward.2} parent=19 // pred_check
          %p346 = pneg %p148
        $region34: #{music_lstm_forward.2} parent=19 // pred_check_branch
          %348 = sbr.rel (%p346) target = $region36
        $region35: #{music_lstm_forward.2} parent=19 // pred_region
          %s349 = sand.u32 %s29, 1
          %s350 = scalar_lea.sflag [#allocation12], %s349
          %s351 = sand.u32 %s138, 1
          %s352 = smul.addr %s351, 8
          %s353 = scalar_lea.vmem [#allocation13], %s352
          %s355 = ssub.s32 128, 128
          %356 = vsyncadd %s350, %s355
          %s357 = smul.addr %s29, 128
          %s358 = scalar_lea.hbm %s4, %s357
          %s360 = sshll.u32 %s353, 4
          %s361 = int_to_ptr.vmem [resolvable:$true] %s360
          %363 = dma.hbm_to_vmem [thread:$0]  %s358, 128, %s361, %s350
        $region36: #{music_lstm_forward.2} parent=19 // pred_fallthru
          _
        // Predicated region
        $region37: #{music_lstm_forward.2} parent=19 // pred_check
          %p364 = pneg %p174
        $region38: #{music_lstm_forward.2} parent=19 // pred_check_branch
          %366 = sbr.rel (%p364) target = $region40
        $region39: #{music_lstm_forward.2} parent=19 // pred_region
          %s367 = sand.u32 %s164, 1
          %s368 = scalar_lea.sflag [#allocation15], %s367
          %s369 = sand.u32 %s164, 1
          %s370 = smul.addr %s369, 8
          %s371 = scalar_lea.vmem [#allocation14], %s370
          %s373 = ssub.s32 128, 128
          %374 = vsyncadd %s368, %s373
          %s375 = smul.addr %s29, 128
          %s376 = scalar_lea.hbm %s5, %s375
          %s378 = sshll.u32 %s371, 4
          %s379 = int_to_ptr.vmem [resolvable:$true] %s378
          %381 = dma.hbm_to_vmem [thread:$0]  %s376, 128, %s379, %s368
        $region40: #{music_lstm_forward.2} parent=19 // pred_fallthru
          _
      $region20: #{music_lstm_forward.2} parent=5 // pred_fallthru
        _
      %p382 = scmp.le.s32.totalorder 1, %s29
      %p383 = scmp.lt.s32.totalorder %s29, 4
      %p384 = pnand %p382, %p383
      %p385 = pneg %p384
      // Predicated region
      $region41: #{music_lstm_forward.2} parent=5 // pred_check
        _
      $region42: #{music_lstm_forward.2} parent=5 // pred_check_branch
        %387 = sbr.rel (%p384) target = $region44
      $region43: #{music_lstm_forward.2} parent=5 // pred_region
        %s388 = ssub.s32 %s29, 1
        // Predicated region
        $region45: #{music_lstm_forward.2} parent=43 // pred_check
          %p389 = pneg %p50
        $region46: #{music_lstm_forward.2} parent=43 // pred_check_branch
          %391 = sbr.rel (%p389) target = $region48
        $region47: #{music_lstm_forward.2} parent=43 // pred_region
          %392 = dma.done [#allocation6], 512
        $region48: #{music_lstm_forward.2} parent=43 // pred_fallthru
          _
        %s393 = sand.u32 %s34, 1
        %s394 = scalar_lea.sflag [#allocation9], %s393
        %s395 = sand.u32 %s63, 1
        %s396 = smul.addr %s395, 256
        %s397 = scalar_lea.vmem [#allocation8], %s396
        // Predicated region
        $region49: #{music_lstm_forward.2} parent=43 // pred_check
          %p398 = pneg %p76
        $region50: #{music_lstm_forward.2} parent=43 // pred_check_branch
          %400 = sbr.rel (%p398) target = $region52
        $region51: #{music_lstm_forward.2} parent=43 // pred_region
          %401 = dma.done %s394, 4096
        $region52: #{music_lstm_forward.2} parent=43 // pred_fallthru
          _
        %s402 = sand.u32 %s34, 1
        %s403 = scalar_lea.sflag [#allocation9], %s402
        %s404 = sand.u32 %s89, 1
        %s405 = smul.addr %s404, 256
        %s406 = scalar_lea.vmem [#allocation10], %s405
        // Predicated region
        $region53: #{music_lstm_forward.2} parent=43 // pred_check
          %p407 = pneg %p102
        $region54: #{music_lstm_forward.2} parent=43 // pred_check_branch
          %409 = sbr.rel (%p407) target = $region56
        $region55: #{music_lstm_forward.2} parent=43 // pred_region
          %410 = dma.done %s403, 4096
        $region56: #{music_lstm_forward.2} parent=43 // pred_fallthru
          _
        %s411 = sand.u32 %s34, 1
        %s412 = scalar_lea.sflag [#allocation12], %s411
        %s413 = sand.u32 %s115, 1
        %s414 = smul.addr %s413, 4
        %s415 = scalar_lea.vmem [#allocation11], %s414
        // Predicated region
        $region57: #{music_lstm_forward.2} parent=43 // pred_check
          %p416 = pneg %p128
        $region58: #{music_lstm_forward.2} parent=43 // pred_check_branch
          %418 = sbr.rel (%p416) target = $region60
        $region59: #{music_lstm_forward.2} parent=43 // pred_region
          %419 = dma.done %s412, 64
        $region60: #{music_lstm_forward.2} parent=43 // pred_fallthru
          _
        %s420 = sand.u32 %s34, 1
        %s421 = scalar_lea.sflag [#allocation12], %s420
        %s422 = sand.u32 %s141, 1
        %s423 = smul.addr %s422, 8
        %s424 = scalar_lea.vmem [#allocation13], %s423
        // Predicated region
        $region61: #{music_lstm_forward.2} parent=43 // pred_check
          %p425 = pneg %p154
        $region62: #{music_lstm_forward.2} parent=43 // pred_check_branch
          %427 = sbr.rel (%p425) target = $region64
        $region63: #{music_lstm_forward.2} parent=43 // pred_region
          %428 = dma.done %s421, 128
        $region64: #{music_lstm_forward.2} parent=43 // pred_fallthru
          _
        %s429 = sand.u32 %s167, 1
        %s430 = scalar_lea.sflag [#allocation15], %s429
        %s431 = sand.u32 %s167, 1
        %s432 = smul.addr %s431, 8
        %s433 = scalar_lea.vmem [#allocation14], %s432
        // Predicated region
        $region65: #{music_lstm_forward.2} parent=43 // pred_check
          %p434 = pneg %p180
        $region66: #{music_lstm_forward.2} parent=43 // pred_check_branch
          %436 = sbr.rel (%p434) target = $region68
        $region67: #{music_lstm_forward.2} parent=43 // pred_region
          %437 = dma.done %s430, 128
        $region68: #{music_lstm_forward.2} parent=43 // pred_fallthru
          _
        %p438 = pneg %p50
        %p439 = pneg %p47
        %s440 = sand.u32 %s34, 1
        %s441 = scalar_lea.sflag [#allocation9], %s440
        %s442 = sand.u32 %s63, 1
        %s443 = smul.addr %s442, 256
        %s444 = scalar_lea.vmem [#allocation8], %s443
        %p445 = pneg %p76
        %p446 = pneg %p73
        %s447 = sand.u32 %s34, 1
        %s448 = scalar_lea.sflag [#allocation9], %s447
        %s449 = sand.u32 %s89, 1
        %s450 = smul.addr %s449, 256
        %s451 = scalar_lea.vmem [#allocation10], %s450
        %p452 = pneg %p102
        %p453 = pneg %p99
        %s454 = sand.u32 %s34, 1
        %s455 = scalar_lea.sflag [#allocation12], %s454
        %s456 = sand.u32 %s115, 1
        %s457 = smul.addr %s456, 4
        %s458 = scalar_lea.vmem [#allocation11], %s457
        %p459 = pneg %p128
        %p460 = pneg %p125
        %s461 = sand.u32 %s34, 1
        %s462 = scalar_lea.sflag [#allocation12], %s461
        %s463 = sand.u32 %s141, 1
        %s464 = smul.addr %s463, 8
        %s465 = scalar_lea.vmem [#allocation13], %s464
        %p466 = pneg %p154
        %p467 = pneg %p151
        %s468 = sand.u32 %s167, 1
        %s469 = scalar_lea.sflag [#allocation15], %s468
        %s470 = sand.u32 %s167, 1
        %s471 = smul.addr %s470, 8
        %s472 = scalar_lea.vmem [#allocation14], %s471
        %p473 = pneg %p180
        %p474 = pneg %p177
        %p475 = pneg %p201
        %p476 = pneg %p198
        %p477 = pneg %p227
        %p478 = pneg %p224
        %s479 = sand.u32 %s34, 1
        %s480 = scalar_lea.sflag [#allocation18], %s479
        %s481 = sand.u32 %s214, 1
        %s482 = smul.addr %s481, 8
        %s483 = scalar_lea.vmem [#allocation17], %s482
        %p484 = pneg %p253
        %p485 = pneg %p250
        %s486 = sand.u32 %s34, 1
        %s487 = scalar_lea.sflag [#allocation18], %s486
        %s488 = sand.u32 %s240, 1
        %s489 = smul.addr %s488, 8
        %s490 = scalar_lea.vmem [#allocation19], %s489
        %v492 = vld [vmem:[%s397] sm:$0xff]
        %v493 = vld [vmem:[%s397 + $0x8] sm:$0xff]
        %v494 = vld [vmem:[%s397 + $0x10] sm:$0xff]
        %v495 = vld [vmem:[%s397 + $0x18] sm:$0xff]
        %v496 = vld [vmem:[%s397 + $0x20] sm:$0xff]
        %v497 = vld [vmem:[%s397 + $0x28] sm:$0xff]
        %v498 = vld [vmem:[%s397 + $0x30] sm:$0xff]
        %v499 = vld [vmem:[%s397 + $0x38] sm:$0xff]
        %v500 = vld [vmem:[%s397 + $0x40] sm:$0xff]
        %v501 = vld [vmem:[%s397 + $0x48] sm:$0xff]
        %v502 = vld [vmem:[%s397 + $0x50] sm:$0xff]
        %v503 = vld [vmem:[%s397 + $0x58] sm:$0xff]
        %v504 = vld [vmem:[%s397 + $0x60] sm:$0xff]
        %v505 = vld [vmem:[%s397 + $0x68] sm:$0xff]
        %v506 = vld [vmem:[%s397 + $0x70] sm:$0xff]
        %v507 = vld [vmem:[%s397 + $0x78] sm:$0xff]
        %v508 = vld [vmem:[%s397 + $0x80] sm:$0xff]
        %v509 = vld [vmem:[%s397 + $0x88] sm:$0xff]
        %v510 = vld [vmem:[%s397 + $0x90] sm:$0xff]
        %v511 = vld [vmem:[%s397 + $0x98] sm:$0xff]
        %v512 = vld [vmem:[%s397 + $0xa0] sm:$0xff]
        %v513 = vld [vmem:[%s397 + $0xa8] sm:$0xff]
        %v514 = vld [vmem:[%s397 + $0xb0] sm:$0xff]
        %v515 = vld [vmem:[%s397 + $0xb8] sm:$0xff]
        %v516 = vld [vmem:[%s397 + $0xc0] sm:$0xff]
        %v517 = vld [vmem:[%s397 + $0xc8] sm:$0xff]
        %v518 = vld [vmem:[%s397 + $0xd0] sm:$0xff]
        %v519 = vld [vmem:[%s397 + $0xd8] sm:$0xff]
        %v520 = vld [vmem:[%s397 + $0xe0] sm:$0xff]
        %v521 = vld [vmem:[%s397 + $0xe8] sm:$0xff]
        %v522 = vld [vmem:[%s397 + $0xf0] sm:$0xff]
        %v523 = vld [vmem:[%s397 + $0xf8] sm:$0xff]
        %v524 = vld [vmem:[%s406] sm:$0xff]
        %v525 = vld [vmem:[%s406 + $0x8] sm:$0xff]
        %v526 = vld [vmem:[%s406 + $0x10] sm:$0xff]
        %v527 = vld [vmem:[%s406 + $0x18] sm:$0xff]
        %v528 = vld [vmem:[%s406 + $0x20] sm:$0xff]
        %v529 = vld [vmem:[%s406 + $0x28] sm:$0xff]
        %v530 = vld [vmem:[%s406 + $0x30] sm:$0xff]
        %v531 = vld [vmem:[%s406 + $0x38] sm:$0xff]
        %v532 = vld [vmem:[%s406 + $0x40] sm:$0xff]
        %v533 = vld [vmem:[%s406 + $0x48] sm:$0xff]
        %v534 = vld [vmem:[%s406 + $0x50] sm:$0xff]
        %v535 = vld [vmem:[%s406 + $0x58] sm:$0xff]
        %v536 = vld [vmem:[%s406 + $0x60] sm:$0xff]
        %v537 = vld [vmem:[%s406 + $0x68] sm:$0xff]
        %v538 = vld [vmem:[%s406 + $0x70] sm:$0xff]
        %v539 = vld [vmem:[%s406 + $0x78] sm:$0xff]
        %v540 = vld [vmem:[%s406 + $0x80] sm:$0xff]
        %v541 = vld [vmem:[%s406 + $0x88] sm:$0xff]
        %v542 = vld [vmem:[%s406 + $0x90] sm:$0xff]
        %v543 = vld [vmem:[%s406 + $0x98] sm:$0xff]
        %v544 = vld [vmem:[%s406 + $0xa0] sm:$0xff]
        %v545 = vld [vmem:[%s406 + $0xa8] sm:$0xff]
        %v546 = vld [vmem:[%s406 + $0xb0] sm:$0xff]
        %v547 = vld [vmem:[%s406 + $0xb8] sm:$0xff]
        %v548 = vld [vmem:[%s406 + $0xc0] sm:$0xff]
        %v549 = vld [vmem:[%s406 + $0xc8] sm:$0xff]
        %v550 = vld [vmem:[%s406 + $0xd0] sm:$0xff]
        %v551 = vld [vmem:[%s406 + $0xd8] sm:$0xff]
        %v552 = vld [vmem:[%s406 + $0xe0] sm:$0xff]
        %v553 = vld [vmem:[%s406 + $0xe8] sm:$0xff]
        %v554 = vld [vmem:[%s406 + $0xf0] sm:$0xff]
        %v555 = vld [vmem:[%s406 + $0xf8] sm:$0xff]
        %v556 = vld [vmem:[%s415] sm:$0xf]
        %p557 = scmp.eq.s32.totalorder %s34, 0
        // Predicated region
        $region69: #{music_lstm_forward.2} parent=43 // pred_check
          %p558 = pneg %p557
        $region70: #{music_lstm_forward.2} parent=43 // pred_check_branch
          %560 = sbr.rel (%p558) target = $region72
        $region71: #{music_lstm_forward.2} parent=43 // pred_region
          %v561 = vld [vmem:[#allocation5] sm:$0xf]
          %v562 = vld [vmem:[#allocation5 + $0x4] sm:$0xf]
          %v563 = vld [vmem:[#allocation5 + $0x8] sm:$0xf]
          %v564 = vld [vmem:[#allocation5 + $0xc] sm:$0xf]
          %v565 = vld [vmem:[#allocation5 + $0x10] sm:$0xf]
          %v566 = vld [vmem:[#allocation5 + $0x14] sm:$0xf]
          %v567 = vld [vmem:[#allocation5 + $0x18] sm:$0xf]
          %v568 = vld [vmem:[#allocation5 + $0x1c] sm:$0xf]
          %v570 = vlaneseq
          %v571 = vshrl.u32 %v570, 7
          %v572 = vsub.s32 0, %v571
          %v573 = vrot.slane %v556, %v572
          %v574 = vlaneseq
          %v575 = vshrl.u32 %v574, 7
          %v576 = vsub.s32 1, %v575
          %v577 = vrot.slane %v556, %v576
          %v578 = vlaneseq
          %v579 = vshrl.u32 %v578, 7
          %v580 = vsub.s32 2, %v579
          %v581 = vrot.slane %v556, %v580
          %v582 = vlaneseq
          %v583 = vshrl.u32 %v582, 7
          %v584 = vsub.s32 3, %v583
          %v585 = vrot.slane %v556, %v584
          %v598 = vunpack.c.l.b16 %v561
          %v599 = vunpack.c.l.b16 %v562
          %v600 = vunpack.c.l.b16 %v563
          %v601 = vunpack.c.l.b16 %v564
          %v602 = vunpack.c.l.b16 %v565
          %v603 = vunpack.c.l.b16 %v566
          %v604 = vunpack.c.l.b16 %v567
          %v605 = vunpack.c.l.b16 %v568
          %v606 = vpack.c.b16 %v599, %v598
          %v607 = vpack.c.b16 %v601, %v600
          %v608 = vpack.c.b16 %v603, %v602
          %v609 = vpack.c.b16 %v605, %v604
          %v646 = vunpack.c.l.b16 %v492
          %v647 = vunpack.c.h.b16 %v492
          %v648 = vunpack.c.l.b16 %v493
          %v649 = vunpack.c.h.b16 %v493
          %v650 = vunpack.c.l.b16 %v494
          %v651 = vunpack.c.h.b16 %v494
          %v652 = vunpack.c.l.b16 %v495
          %v653 = vunpack.c.h.b16 %v495
          %v654 = vunpack.c.l.b16 %v496
          %v655 = vunpack.c.h.b16 %v496
          %v656 = vunpack.c.l.b16 %v497
          %v657 = vunpack.c.h.b16 %v497
          %v658 = vunpack.c.l.b16 %v498
          %v659 = vunpack.c.h.b16 %v498
          %v660 = vunpack.c.l.b16 %v499
          %v661 = vunpack.c.h.b16 %v499
          %v662 = vunpack.c.l.b16 %v500
          %v663 = vunpack.c.h.b16 %v500
          %v664 = vunpack.c.l.b16 %v501
          %v665 = vunpack.c.h.b16 %v501
          %v666 = vunpack.c.l.b16 %v502
          %v667 = vunpack.c.h.b16 %v502
          %v668 = vunpack.c.l.b16 %v503
          %v669 = vunpack.c.h.b16 %v503
          %v670 = vunpack.c.l.b16 %v504
          %v671 = vunpack.c.h.b16 %v504
          %v672 = vunpack.c.l.b16 %v505
          %v673 = vunpack.c.h.b16 %v505
          %v674 = vunpack.c.l.b16 %v506
          %v675 = vunpack.c.h.b16 %v506
          %v676 = vunpack.c.l.b16 %v507
          %v677 = vunpack.c.h.b16 %v507
          %v678 = vunpack.c.l.b16 %v508
          %v679 = vunpack.c.h.b16 %v508
          %v680 = vunpack.c.l.b16 %v509
          %v681 = vunpack.c.h.b16 %v509
          %v682 = vunpack.c.l.b16 %v510
          %v683 = vunpack.c.h.b16 %v510
          %v684 = vunpack.c.l.b16 %v511
          %v685 = vunpack.c.h.b16 %v511
          %v686 = vunpack.c.l.b16 %v512
          %v687 = vunpack.c.h.b16 %v512
          %v688 = vunpack.c.l.b16 %v513
          %v689 = vunpack.c.h.b16 %v513
          %v690 = vunpack.c.l.b16 %v514
          %v691 = vunpack.c.h.b16 %v514
          %v692 = vunpack.c.l.b16 %v515
          %v693 = vunpack.c.h.b16 %v515
          %v694 = vunpack.c.l.b16 %v516
          %v695 = vunpack.c.h.b16 %v516
          %v696 = vunpack.c.l.b16 %v517
          %v697 = vunpack.c.h.b16 %v517
          %v698 = vunpack.c.l.b16 %v518
          %v699 = vunpack.c.h.b16 %v518
          %v700 = vunpack.c.l.b16 %v519
          %v701 = vunpack.c.h.b16 %v519
          %v702 = vunpack.c.l.b16 %v520
          %v703 = vunpack.c.h.b16 %v520
          %v704 = vunpack.c.l.b16 %v521
          %v705 = vunpack.c.h.b16 %v521
          %v706 = vunpack.c.l.b16 %v522
          %v707 = vunpack.c.h.b16 %v522
          %v708 = vunpack.c.l.b16 %v523
          %v709 = vunpack.c.h.b16 %v523
          %v710 = vpack.c.b16 %v650, %v646
          %v711 = vpack.c.b16 %v651, %v647
          %v712 = vpack.c.b16 %v652, %v648
          %v713 = vpack.c.b16 %v653, %v649
          %v714 = vpack.c.b16 %v658, %v654
          %v715 = vpack.c.b16 %v659, %v655
          %v716 = vpack.c.b16 %v660, %v656
          %v717 = vpack.c.b16 %v661, %v657
          %v718 = vpack.c.b16 %v666, %v662
          %v719 = vpack.c.b16 %v667, %v663
          %v720 = vpack.c.b16 %v668, %v664
          %v721 = vpack.c.b16 %v669, %v665
          %v722 = vpack.c.b16 %v674, %v670
          %v723 = vpack.c.b16 %v675, %v671
          %v724 = vpack.c.b16 %v676, %v672
          %v725 = vpack.c.b16 %v677, %v673
          %v726 = vpack.c.b16 %v682, %v678
          %v727 = vpack.c.b16 %v683, %v679
          %v728 = vpack.c.b16 %v684, %v680
          %v729 = vpack.c.b16 %v685, %v681
          %v730 = vpack.c.b16 %v690, %v686
          %v731 = vpack.c.b16 %v691, %v687
          %v732 = vpack.c.b16 %v692, %v688
          %v733 = vpack.c.b16 %v693, %v689
          %v734 = vpack.c.b16 %v698, %v694
          %v735 = vpack.c.b16 %v699, %v695
          %v736 = vpack.c.b16 %v700, %v696
          %v737 = vpack.c.b16 %v701, %v697
          %v738 = vpack.c.b16 %v706, %v702
          %v739 = vpack.c.b16 %v707, %v703
          %v740 = vpack.c.b16 %v708, %v704
          %v741 = vpack.c.b16 %v709, %v705
          %774 = vmatprep.subr.bf16.mxu0 %v711
          %775 = vmatpush1.bf16.msra.mxu0 %v710
          %776 = vmatprep.subr.bf16.mxu0 %v715
          %777 = vmatpush1.bf16.msra.mxu0 %v714
          %778 = vmatprep.subr.bf16.mxu0 %v719
          %779 = vmatpush1.bf16.msra.mxu0 %v718
          %780 = vmatprep.subr.bf16.mxu0 %v723
          %781 = vmatpush1.bf16.msra.mxu0 %v722
          %782 = vmatprep.subr.bf16.mxu0 %v727
          %783 = vmatpush1.bf16.msra.mxu0 %v726
          %784 = vmatprep.subr.bf16.mxu0 %v731
          %785 = vmatpush1.bf16.msra.mxu0 %v730
          %786 = vmatprep.subr.bf16.mxu0 %v735
          %787 = vmatpush1.bf16.msra.mxu0 %v734
          %788 = vmatprep.subr.bf16.mxu0 %v739
          %789 = vmatpush1.bf16.msra.mxu0 %v738
          %790 = vmatprep.subr.bf16.mxu0 0
          %791 = vmatpush1.bf16.msra.mxu0 0
          %792 = vmatprep.subr.bf16.mxu0 0
          %793 = vmatpush1.bf16.msra.mxu0 0
          %794 = vmatprep.subr.bf16.mxu0 0
          %795 = vmatpush1.bf16.msra.mxu0 0
          %796 = vmatprep.subr.bf16.mxu0 0
          %797 = vmatpush1.bf16.msra.mxu0 0
          %798 = vmatprep.subr.bf16.mxu0 0
          %799 = vmatpush1.bf16.msra.mxu0 0
          %800 = vmatprep.subr.bf16.mxu0 0
          %801 = vmatpush1.bf16.msra.mxu0 0
          %802 = vmatprep.subr.bf16.mxu0 0
          %803 = vmatpush1.bf16.msra.mxu0 0
          %804 = vmatprep.subr.bf16.mxu0 0
          %805 = vmatpush1.bf16.msra.mxu0 0
          %806 = vmatprep.mubr.bf16.mxu0 0
          %807 = vmatmul.mubr.bf16.gmra.mrb[0].mxu0 %v606
          %v808 = vpop.f32.mrb[0].mxu0
          %v809 = vadd.f32 %v573, %v808
          %v810 = vpop.f32.mrb[0].mxu0
          %v811 = vadd.f32 %v577, %v810
          %v812 = vpop.f32.mrb[0].mxu0
          %v813 = vadd.f32 %v573, %v812
          %v814 = vpop.f32.mrb[0].mxu0
          %v815 = vadd.f32 %v577, %v814
          %816 = vmatprep.mubr.bf16.mxu0 0
          %817 = vmatmul.mubr.bf16.gmra.mrb[0].mxu0 %v607
          %v818 = vpop.f32.mrb[0].mxu0
          %v819 = vadd.f32 %v573, %v818
          %v820 = vpop.f32.mrb[0].mxu0
          %v821 = vadd.f32 %v577, %v820
          %v822 = vpop.f32.mrb[0].mxu0
          %v823 = vadd.f32 %v573, %v822
          %v824 = vpop.f32.mrb[0].mxu0
          %v825 = vadd.f32 %v577, %v824
          %826 = vmatprep.mubr.bf16.mxu0 0
          %827 = vmatmul.mubr.bf16.gmra.mrb[0].mxu0 %v608
          %v828 = vpop.f32.mrb[0].mxu0
          %v829 = vadd.f32 %v573, %v828
          %v830 = vpop.f32.mrb[0].mxu0
          %v831 = vadd.f32 %v577, %v830
          %v832 = vpop.f32.mrb[0].mxu0
          %v833 = vadd.f32 %v573, %v832
          %v834 = vpop.f32.mrb[0].mxu0
          %v835 = vadd.f32 %v577, %v834
          %836 = vmatprep.mubr.bf16.mxu0 0
          %837 = vmatmul.mubr.bf16.gmra.mrb[0].mxu0 %v609
          %v838 = vpop.f32.mrb[0].mxu0
          %v839 = vadd.f32 %v573, %v838
          %v840 = vpop.f32.mrb[0].mxu0
          %v841 = vadd.f32 %v577, %v840
          %v842 = vpop.f32.mrb[0].mxu0
          %v843 = vadd.f32 %v573, %v842
          %v844 = vpop.f32.mrb[0].mxu0
          %v845 = vadd.f32 %v577, %v844
          %846 = vdwg.mxu0
          %847 = vmatprep.subr.bf16.mxu0 %v713
          %848 = vmatpush1.bf16.msra.mxu0 %v712
          %849 = vmatprep.subr.bf16.mxu0 %v717
          %850 = vmatpush1.bf16.msra.mxu0 %v716
          %851 = vmatprep.subr.bf16.mxu0 %v721
          %852 = vmatpush1.bf16.msra.mxu0 %v720
          %853 = vmatprep.subr.bf16.mxu0 %v725
          %854 = vmatpush1.bf16.msra.mxu0 %v724
          %855 = vmatprep.subr.bf16.mxu0 %v729
          %856 = vmatpush1.bf16.msra.mxu0 %v728
          %857 = vmatprep.subr.bf16.mxu0 %v733
          %858 = vmatpush1.bf16.msra.mxu0 %v732
          %859 = vmatprep.subr.bf16.mxu0 %v737
          %860 = vmatpush1.bf16.msra.mxu0 %v736
          %861 = vmatprep.subr.bf16.mxu0 %v741
          %862 = vmatpush1.bf16.msra.mxu0 %v740
          %863 = vmatprep.subr.bf16.mxu0 0
          %864 = vmatpush1.bf16.msra.mxu0 0
          %865 = vmatprep.subr.bf16.mxu0 0
          %866 = vmatpush1.bf16.msra.mxu0 0
          %867 = vmatprep.subr.bf16.mxu0 0
          %868 = vmatpush1.bf16.msra.mxu0 0
          %869 = vmatprep.subr.bf16.mxu0 0
          %870 = vmatpush1.bf16.msra.mxu0 0
          %871 = vmatprep.subr.bf16.mxu0 0
          %872 = vmatpush1.bf16.msra.mxu0 0
          %873 = vmatprep.subr.bf16.mxu0 0
          %874 = vmatpush1.bf16.msra.mxu0 0
          %875 = vmatprep.subr.bf16.mxu0 0
          %876 = vmatpush1.bf16.msra.mxu0 0
          %877 = vmatprep.subr.bf16.mxu0 0
          %878 = vmatpush1.bf16.msra.mxu0 0
          %879 = vmatprep.mubr.bf16.mxu0 0
          %880 = vmatmul.mubr.bf16.gmra.mrb[0].mxu0 %v606
          %v881 = vpop.f32.mrb[0].mxu0
          %v882 = vadd.f32 %v581, %v881
          %v883 = vpop.f32.mrb[0].mxu0
          %v884 = vadd.f32 %v585, %v883
          %v885 = vpop.f32.mrb[0].mxu0
          %v886 = vadd.f32 %v581, %v885
          %v887 = vpop.f32.mrb[0].mxu0
          %v888 = vadd.f32 %v585, %v887
          %889 = vmatprep.mubr.bf16.mxu0 0
          %890 = vmatmul.mubr.bf16.gmra.mrb[0].mxu0 %v607
          %v891 = vpop.f32.mrb[0].mxu0
          %v892 = vadd.f32 %v581, %v891
          %v893 = vpop.f32.mrb[0].mxu0
          %v894 = vadd.f32 %v585, %v893
          %v895 = vpop.f32.mrb[0].mxu0
          %v896 = vadd.f32 %v581, %v895
          %v897 = vpop.f32.mrb[0].mxu0
          %v898 = vadd.f32 %v585, %v897
          %899 = vmatprep.mubr.bf16.mxu0 0
          %900 = vmatmul.mubr.bf16.gmra.mrb[0].mxu0 %v608
          %v901 = vpop.f32.mrb[0].mxu0
          %v902 = vadd.f32 %v581, %v901
          %v903 = vpop.f32.mrb[0].mxu0
          %v904 = vadd.f32 %v585, %v903
          %v905 = vpop.f32.mrb[0].mxu0
          %v906 = vadd.f32 %v581, %v905
          %v907 = vpop.f32.mrb[0].mxu0
          %v908 = vadd.f32 %v585, %v907
          %909 = vmatprep.mubr.bf16.mxu0 0
          %910 = vmatmul.mubr.bf16.gmra.mrb[0].mxu0 %v609
          %v911 = vpop.f32.mrb[0].mxu0
          %v912 = vadd.f32 %v581, %v911
          %v913 = vpop.f32.mrb[0].mxu0
          %v914 = vadd.f32 %v585, %v913
          %v915 = vpop.f32.mrb[0].mxu0
          %v916 = vadd.f32 %v581, %v915
          %v917 = vpop.f32.mrb[0].mxu0
          %v918 = vadd.f32 %v585, %v917
          %919 = vdwg.mxu0
          %920 = vst [vmem:[#allocation2] sm:$0xff] %v809
          %921 = vst [vmem:[#allocation2 + $0x8] sm:$0xff] %v811
          %922 = vst [vmem:[#allocation2 + $0x10] sm:$0xff] %v882
          %923 = vst [vmem:[#allocation2 + $0x18] sm:$0xff] %v884
          %924 = vst [vmem:[#allocation2 + $0x20] sm:$0xff] %v813
          %925 = vst [vmem:[#allocation2 + $0x28] sm:$0xff] %v815
          %926 = vst [vmem:[#allocation2 + $0x30] sm:$0xff] %v886
          %927 = vst [vmem:[#allocation2 + $0x38] sm:$0xff] %v888
          %928 = vst [vmem:[#allocation2 + $0x40] sm:$0xff] %v819
          %929 = vst [vmem:[#allocation2 + $0x48] sm:$0xff] %v821
          %930 = vst [vmem:[#allocation2 + $0x50] sm:$0xff] %v892
          %931 = vst [vmem:[#allocation2 + $0x58] sm:$0xff] %v894
          %932 = vst [vmem:[#allocation2 + $0x60] sm:$0xff] %v823
          %933 = vst [vmem:[#allocation2 + $0x68] sm:$0xff] %v825
          %934 = vst [vmem:[#allocation2 + $0x70] sm:$0xff] %v896
          %935 = vst [vmem:[#allocation2 + $0x78] sm:$0xff] %v898
          %936 = vst [vmem:[#allocation2 + $0x80] sm:$0xff] %v829
          %937 = vst [vmem:[#allocation2 + $0x88] sm:$0xff] %v831
          %938 = vst [vmem:[#allocation2 + $0x90] sm:$0xff] %v902
          %939 = vst [vmem:[#allocation2 + $0x98] sm:$0xff] %v904
          %940 = vst [vmem:[#allocation2 + $0xa0] sm:$0xff] %v833
          %941 = vst [vmem:[#allocation2 + $0xa8] sm:$0xff] %v835
          %942 = vst [vmem:[#allocation2 + $0xb0] sm:$0xff] %v906
          %943 = vst [vmem:[#allocation2 + $0xb8] sm:$0xff] %v908
          %944 = vst [vmem:[#allocation2 + $0xc0] sm:$0xff] %v839
          %945 = vst [vmem:[#allocation2 + $0xc8] sm:$0xff] %v841
          %946 = vst [vmem:[#allocation2 + $0xd0] sm:$0xff] %v912
          %947 = vst [vmem:[#allocation2 + $0xd8] sm:$0xff] %v914
          %948 = vst [vmem:[#allocation2 + $0xe0] sm:$0xff] %v843
          %949 = vst [vmem:[#allocation2 + $0xe8] sm:$0xff] %v845
          %950 = vst [vmem:[#allocation2 + $0xf0] sm:$0xff] %v916
          %951 = vst [vmem:[#allocation2 + $0xf8] sm:$0xff] %v918
        $region72: #{music_lstm_forward.2} parent=43 // pred_fallthru
          _
        %p952 = scmp.gt.s32.totalorder %s34, 0
        // Predicated region
        $region73: #{music_lstm_forward.2} parent=43 // pred_check
          %p953 = pneg %p952
        $region74: #{music_lstm_forward.2} parent=43 // pred_check_branch
          %955 = sbr.rel (%p953) target = $region76
        $region75: #{music_lstm_forward.2} parent=43 // pred_region
          %v956 = vld [vmem:[#allocation16] sm:$0xff]
          %v957 = vld [vmem:[#allocation16 + $0x8] sm:$0xff]
          %v958 = vld [vmem:[#allocation16 + $0x10] sm:$0xff]
          %v959 = vld [vmem:[#allocation16 + $0x18] sm:$0xff]
          %v960 = vld [vmem:[#allocation16 + $0x20] sm:$0xff]
          %v961 = vld [vmem:[#allocation16 + $0x28] sm:$0xff]
          %v962 = vld [vmem:[#allocation16 + $0x30] sm:$0xff]
          %v963 = vld [vmem:[#allocation16 + $0x38] sm:$0xff]
          %v964 = vpack.c.bf16 %v957, %v956
          %v965 = vpack.c.bf16 %v959, %v958
          %v966 = vpack.c.bf16 %v961, %v960
          %v967 = vpack.c.bf16 %v963, %v962
          %v969 = vlaneseq
          %v970 = vshrl.u32 %v969, 7
          %v971 = vsub.s32 0, %v970
          %v972 = vrot.slane %v556, %v971
          %v973 = vlaneseq
          %v974 = vshrl.u32 %v973, 7
          %v975 = vsub.s32 1, %v974
          %v976 = vrot.slane %v556, %v975
          %v977 = vlaneseq
          %v978 = vshrl.u32 %v977, 7
          %v979 = vsub.s32 2, %v978
          %v980 = vrot.slane %v556, %v979
          %v981 = vlaneseq
          %v982 = vshrl.u32 %v981, 7
          %v983 = vsub.s32 3, %v982
          %v984 = vrot.slane %v556, %v983
          %v1021 = vunpack.c.l.b16 %v492
          %v1022 = vunpack.c.h.b16 %v492
          %v1023 = vunpack.c.l.b16 %v493
          %v1024 = vunpack.c.h.b16 %v493
          %v1025 = vunpack.c.l.b16 %v494
          %v1026 = vunpack.c.h.b16 %v494
          %v1027 = vunpack.c.l.b16 %v495
          %v1028 = vunpack.c.h.b16 %v495
          %v1029 = vunpack.c.l.b16 %v496
          %v1030 = vunpack.c.h.b16 %v496
          %v1031 = vunpack.c.l.b16 %v497
          %v1032 = vunpack.c.h.b16 %v497
          %v1033 = vunpack.c.l.b16 %v498
          %v1034 = vunpack.c.h.b16 %v498
          %v1035 = vunpack.c.l.b16 %v499
          %v1036 = vunpack.c.h.b16 %v499
          %v1037 = vunpack.c.l.b16 %v500
          %v1038 = vunpack.c.h.b16 %v500
          %v1039 = vunpack.c.l.b16 %v501
          %v1040 = vunpack.c.h.b16 %v501
          %v1041 = vunpack.c.l.b16 %v502
          %v1042 = vunpack.c.h.b16 %v502
          %v1043 = vunpack.c.l.b16 %v503
          %v1044 = vunpack.c.h.b16 %v503
          %v1045 = vunpack.c.l.b16 %v504
          %v1046 = vunpack.c.h.b16 %v504
          %v1047 = vunpack.c.l.b16 %v505
          %v1048 = vunpack.c.h.b16 %v505
          %v1049 = vunpack.c.l.b16 %v506
          %v1050 = vunpack.c.h.b16 %v506
          %v1051 = vunpack.c.l.b16 %v507
          %v1052 = vunpack.c.h.b16 %v507
          %v1053 = vunpack.c.l.b16 %v508
          %v1054 = vunpack.c.h.b16 %v508
          %v1055 = vunpack.c.l.b16 %v509
          %v1056 = vunpack.c.h.b16 %v509
          %v1057 = vunpack.c.l.b16 %v510
          %v1058 = vunpack.c.h.b16 %v510
          %v1059 = vunpack.c.l.b16 %v511
          %v1060 = vunpack.c.h.b16 %v511
          %v1061 = vunpack.c.l.b16 %v512
          %v1062 = vunpack.c.h.b16 %v512
          %v1063 = vunpack.c.l.b16 %v513
          %v1064 = vunpack.c.h.b16 %v513
          %v1065 = vunpack.c.l.b16 %v514
          %v1066 = vunpack.c.h.b16 %v514
          %v1067 = vunpack.c.l.b16 %v515
          %v1068 = vunpack.c.h.b16 %v515
          %v1069 = vunpack.c.l.b16 %v516
          %v1070 = vunpack.c.h.b16 %v516
          %v1071 = vunpack.c.l.b16 %v517
          %v1072 = vunpack.c.h.b16 %v517
          %v1073 = vunpack.c.l.b16 %v518
          %v1074 = vunpack.c.h.b16 %v518
          %v1075 = vunpack.c.l.b16 %v519
          %v1076 = vunpack.c.h.b16 %v519
          %v1077 = vunpack.c.l.b16 %v520
          %v1078 = vunpack.c.h.b16 %v520
          %v1079 = vunpack.c.l.b16 %v521
          %v1080 = vunpack.c.h.b16 %v521
          %v1081 = vunpack.c.l.b16 %v522
          %v1082 = vunpack.c.h.b16 %v522
          %v1083 = vunpack.c.l.b16 %v523
          %v1084 = vunpack.c.h.b16 %v523
          %v1085 = vpack.c.b16 %v1025, %v1021
          %v1086 = vpack.c.b16 %v1026, %v1022
          %v1087 = vpack.c.b16 %v1027, %v1023
          %v1088 = vpack.c.b16 %v1028, %v1024
          %v1089 = vpack.c.b16 %v1033, %v1029
          %v1090 = vpack.c.b16 %v1034, %v1030
          %v1091 = vpack.c.b16 %v1035, %v1031
          %v1092 = vpack.c.b16 %v1036, %v1032
          %v1093 = vpack.c.b16 %v1041, %v1037
          %v1094 = vpack.c.b16 %v1042, %v1038
          %v1095 = vpack.c.b16 %v1043, %v1039
          %v1096 = vpack.c.b16 %v1044, %v1040
          %v1097 = vpack.c.b16 %v1049, %v1045
          %v1098 = vpack.c.b16 %v1050, %v1046
          %v1099 = vpack.c.b16 %v1051, %v1047
          %v1100 = vpack.c.b16 %v1052, %v1048
          %v1101 = vpack.c.b16 %v1057, %v1053
          %v1102 = vpack.c.b16 %v1058, %v1054
          %v1103 = vpack.c.b16 %v1059, %v1055
          %v1104 = vpack.c.b16 %v1060, %v1056
          %v1105 = vpack.c.b16 %v1065, %v1061
          %v1106 = vpack.c.b16 %v1066, %v1062
          %v1107 = vpack.c.b16 %v1067, %v1063
          %v1108 = vpack.c.b16 %v1068, %v1064
          %v1109 = vpack.c.b16 %v1073, %v1069
          %v1110 = vpack.c.b16 %v1074, %v1070
          %v1111 = vpack.c.b16 %v1075, %v1071
          %v1112 = vpack.c.b16 %v1076, %v1072
          %v1113 = vpack.c.b16 %v1081, %v1077
          %v1114 = vpack.c.b16 %v1082, %v1078
          %v1115 = vpack.c.b16 %v1083, %v1079
          %v1116 = vpack.c.b16 %v1084, %v1080
          %1149 = vmatprep.subr.bf16.mxu0 %v1086
          %1150 = vmatpush1.bf16.msra.mxu0 %v1085
          %1151 = vmatprep.subr.bf16.mxu0 %v1090
          %1152 = vmatpush1.bf16.msra.mxu0 %v1089
          %1153 = vmatprep.subr.bf16.mxu0 %v1094
          %1154 = vmatpush1.bf16.msra.mxu0 %v1093
          %1155 = vmatprep.subr.bf16.mxu0 %v1098
          %1156 = vmatpush1.bf16.msra.mxu0 %v1097
          %1157 = vmatprep.subr.bf16.mxu0 %v1102
          %1158 = vmatpush1.bf16.msra.mxu0 %v1101
          %1159 = vmatprep.subr.bf16.mxu0 %v1106
          %1160 = vmatpush1.bf16.msra.mxu0 %v1105
          %1161 = vmatprep.subr.bf16.mxu0 %v1110
          %1162 = vmatpush1.bf16.msra.mxu0 %v1109
          %1163 = vmatprep.subr.bf16.mxu0 %v1114
          %1164 = vmatpush1.bf16.msra.mxu0 %v1113
          %1165 = vmatprep.subr.bf16.mxu0 0
          %1166 = vmatpush1.bf16.msra.mxu0 0
          %1167 = vmatprep.subr.bf16.mxu0 0
          %1168 = vmatpush1.bf16.msra.mxu0 0
          %1169 = vmatprep.subr.bf16.mxu0 0
          %1170 = vmatpush1.bf16.msra.mxu0 0
          %1171 = vmatprep.subr.bf16.mxu0 0
          %1172 = vmatpush1.bf16.msra.mxu0 0
          %1173 = vmatprep.subr.bf16.mxu0 0
          %1174 = vmatpush1.bf16.msra.mxu0 0
          %1175 = vmatprep.subr.bf16.mxu0 0
          %1176 = vmatpush1.bf16.msra.mxu0 0
          %1177 = vmatprep.subr.bf16.mxu0 0
          %1178 = vmatpush1.bf16.msra.mxu0 0
          %1179 = vmatprep.subr.bf16.mxu0 0
          %1180 = vmatpush1.bf16.msra.mxu0 0
          %1181 = vmatprep.mubr.bf16.mxu0 0
          %1182 = vmatmul.mubr.bf16.gmra.mrb[0].mxu0 %v964
          %v1183 = vpop.f32.mrb[0].mxu0
          %v1184 = vadd.f32 %v972, %v1183
          %v1185 = vpop.f32.mrb[0].mxu0
          %v1186 = vadd.f32 %v976, %v1185
          %v1187 = vpop.f32.mrb[0].mxu0
          %v1188 = vadd.f32 %v972, %v1187
          %v1189 = vpop.f32.mrb[0].mxu0
          %v1190 = vadd.f32 %v976, %v1189
          %1191 = vmatprep.mubr.bf16.mxu0 0
          %1192 = vmatmul.mubr.bf16.gmra.mrb[0].mxu0 %v965
          %v1193 = vpop.f32.mrb[0].mxu0
          %v1194 = vadd.f32 %v972, %v1193
          %v1195 = vpop.f32.mrb[0].mxu0
          %v1196 = vadd.f32 %v976, %v1195
          %v1197 = vpop.f32.mrb[0].mxu0
          %v1198 = vadd.f32 %v972, %v1197
          %v1199 = vpop.f32.mrb[0].mxu0
          %v1200 = vadd.f32 %v976, %v1199
          %1201 = vmatprep.mubr.bf16.mxu0 0
          %1202 = vmatmul.mubr.bf16.gmra.mrb[0].mxu0 %v966
          %v1203 = vpop.f32.mrb[0].mxu0
          %v1204 = vadd.f32 %v972, %v1203
          %v1205 = vpop.f32.mrb[0].mxu0
          %v1206 = vadd.f32 %v976, %v1205
          %v1207 = vpop.f32.mrb[0].mxu0
          %v1208 = vadd.f32 %v972, %v1207
          %v1209 = vpop.f32.mrb[0].mxu0
          %v1210 = vadd.f32 %v976, %v1209
          %1211 = vmatprep.mubr.bf16.mxu0 0
          %1212 = vmatmul.mubr.bf16.gmra.mrb[0].mxu0 %v967
          %v1213 = vpop.f32.mrb[0].mxu0
          %v1214 = vadd.f32 %v972, %v1213
          %v1215 = vpop.f32.mrb[0].mxu0
          %v1216 = vadd.f32 %v976, %v1215
          %v1217 = vpop.f32.mrb[0].mxu0
          %v1218 = vadd.f32 %v972, %v1217
          %v1219 = vpop.f32.mrb[0].mxu0
          %v1220 = vadd.f32 %v976, %v1219
          %1221 = vdwg.mxu0
          %1222 = vmatprep.subr.bf16.mxu0 %v1088
          %1223 = vmatpush1.bf16.msra.mxu0 %v1087
          %1224 = vmatprep.subr.bf16.mxu0 %v1092
          %1225 = vmatpush1.bf16.msra.mxu0 %v1091
          %1226 = vmatprep.subr.bf16.mxu0 %v1096
          %1227 = vmatpush1.bf16.msra.mxu0 %v1095
          %1228 = vmatprep.subr.bf16.mxu0 %v1100
          %1229 = vmatpush1.bf16.msra.mxu0 %v1099
          %1230 = vmatprep.subr.bf16.mxu0 %v1104
          %1231 = vmatpush1.bf16.msra.mxu0 %v1103
          %1232 = vmatprep.subr.bf16.mxu0 %v1108
          %1233 = vmatpush1.bf16.msra.mxu0 %v1107
          %1234 = vmatprep.subr.bf16.mxu0 %v1112
          %1235 = vmatpush1.bf16.msra.mxu0 %v1111
          %1236 = vmatprep.subr.bf16.mxu0 %v1116
          %1237 = vmatpush1.bf16.msra.mxu0 %v1115
          %1238 = vmatprep.subr.bf16.mxu0 0
          %1239 = vmatpush1.bf16.msra.mxu0 0
          %1240 = vmatprep.subr.bf16.mxu0 0
          %1241 = vmatpush1.bf16.msra.mxu0 0
          %1242 = vmatprep.subr.bf16.mxu0 0
          %1243 = vmatpush1.bf16.msra.mxu0 0
          %1244 = vmatprep.subr.bf16.mxu0 0
          %1245 = vmatpush1.bf16.msra.mxu0 0
          %1246 = vmatprep.subr.bf16.mxu0 0
          %1247 = vmatpush1.bf16.msra.mxu0 0
          %1248 = vmatprep.subr.bf16.mxu0 0
          %1249 = vmatpush1.bf16.msra.mxu0 0
          %1250 = vmatprep.subr.bf16.mxu0 0
          %1251 = vmatpush1.bf16.msra.mxu0 0
          %1252 = vmatprep.subr.bf16.mxu0 0
          %1253 = vmatpush1.bf16.msra.mxu0 0
          %1254 = vmatprep.mubr.bf16.mxu0 0
          %1255 = vmatmul.mubr.bf16.gmra.mrb[0].mxu0 %v964
          %v1256 = vpop.f32.mrb[0].mxu0
          %v1257 = vadd.f32 %v980, %v1256
          %v1258 = vpop.f32.mrb[0].mxu0
          %v1259 = vadd.f32 %v984, %v1258
          %v1260 = vpop.f32.mrb[0].mxu0
          %v1261 = vadd.f32 %v980, %v1260
          %v1262 = vpop.f32.mrb[0].mxu0
          %v1263 = vadd.f32 %v984, %v1262
          %1264 = vmatprep.mubr.bf16.mxu0 0
          %1265 = vmatmul.mubr.bf16.gmra.mrb[0].mxu0 %v965
          %v1266 = vpop.f32.mrb[0].mxu0
          %v1267 = vadd.f32 %v980, %v1266
          %v1268 = vpop.f32.mrb[0].mxu0
          %v1269 = vadd.f32 %v984, %v1268
          %v1270 = vpop.f32.mrb[0].mxu0
          %v1271 = vadd.f32 %v980, %v1270
          %v1272 = vpop.f32.mrb[0].mxu0
          %v1273 = vadd.f32 %v984, %v1272
          %1274 = vmatprep.mubr.bf16.mxu0 0
          %1275 = vmatmul.mubr.bf16.gmra.mrb[0].mxu0 %v966
          %v1276 = vpop.f32.mrb[0].mxu0
          %v1277 = vadd.f32 %v980, %v1276
          %v1278 = vpop.f32.mrb[0].mxu0
          %v1279 = vadd.f32 %v984, %v1278
          %v1280 = vpop.f32.mrb[0].mxu0
          %v1281 = vadd.f32 %v980, %v1280
          %v1282 = vpop.f32.mrb[0].mxu0
          %v1283 = vadd.f32 %v984, %v1282
          %1284 = vmatprep.mubr.bf16.mxu0 0
          %1285 = vmatmul.mubr.bf16.gmra.mrb[0].mxu0 %v967
          %v1286 = vpop.f32.mrb[0].mxu0
          %v1287 = vadd.f32 %v980, %v1286
          %v1288 = vpop.f32.mrb[0].mxu0
          %v1289 = vadd.f32 %v984, %v1288
          %v1290 = vpop.f32.mrb[0].mxu0
          %v1291 = vadd.f32 %v980, %v1290
          %v1292 = vpop.f32.mrb[0].mxu0
          %v1293 = vadd.f32 %v984, %v1292
          %1294 = vdwg.mxu0
          %1295 = vst [vmem:[#allocation2] sm:$0xff] %v1184
          %1296 = vst [vmem:[#allocation2 + $0x8] sm:$0xff] %v1186
          %1297 = vst [vmem:[#allocation2 + $0x10] sm:$0xff] %v1257
          %1298 = vst [vmem:[#allocation2 + $0x18] sm:$0xff] %v1259
          %1299 = vst [vmem:[#allocation2 + $0x20] sm:$0xff] %v1188
          %1300 = vst [vmem:[#allocation2 + $0x28] sm:$0xff] %v1190
          %1301 = vst [vmem:[#allocation2 + $0x30] sm:$0xff] %v1261
          %1302 = vst [vmem:[#allocation2 + $0x38] sm:$0xff] %v1263
          %1303 = vst [vmem:[#allocation2 + $0x40] sm:$0xff] %v1194
          %1304 = vst [vmem:[#allocation2 + $0x48] sm:$0xff] %v1196
          %1305 = vst [vmem:[#allocation2 + $0x50] sm:$0xff] %v1267
          %1306 = vst [vmem:[#allocation2 + $0x58] sm:$0xff] %v1269
          %1307 = vst [vmem:[#allocation2 + $0x60] sm:$0xff] %v1198
          %1308 = vst [vmem:[#allocation2 + $0x68] sm:$0xff] %v1200
          %1309 = vst [vmem:[#allocation2 + $0x70] sm:$0xff] %v1271
          %1310 = vst [vmem:[#allocation2 + $0x78] sm:$0xff] %v1273
          %1311 = vst [vmem:[#allocation2 + $0x80] sm:$0xff] %v1204
          %1312 = vst [vmem:[#allocation2 + $0x88] sm:$0xff] %v1206
          %1313 = vst [vmem:[#allocation2 + $0x90] sm:$0xff] %v1277
          %1314 = vst [vmem:[#allocation2 + $0x98] sm:$0xff] %v1279
          %1315 = vst [vmem:[#allocation2 + $0xa0] sm:$0xff] %v1208
          %1316 = vst [vmem:[#allocation2 + $0xa8] sm:$0xff] %v1210
          %1317 = vst [vmem:[#allocation2 + $0xb0] sm:$0xff] %v1281
          %1318 = vst [vmem:[#allocation2 + $0xb8] sm:$0xff] %v1283
          %1319 = vst [vmem:[#allocation2 + $0xc0] sm:$0xff] %v1214
          %1320 = vst [vmem:[#allocation2 + $0xc8] sm:$0xff] %v1216
          %1321 = vst [vmem:[#allocation2 + $0xd0] sm:$0xff] %v1287
          %1322 = vst [vmem:[#allocation2 + $0xd8] sm:$0xff] %v1289
          %1323 = vst [vmem:[#allocation2 + $0xe0] sm:$0xff] %v1218
          %1324 = vst [vmem:[#allocation2 + $0xe8] sm:$0xff] %v1220
          %1325 = vst [vmem:[#allocation2 + $0xf0] sm:$0xff] %v1291
          %1326 = vst [vmem:[#allocation2 + $0xf8] sm:$0xff] %v1293
        $region76: #{music_lstm_forward.2} parent=43 // pred_fallthru
          _
        %v1327 = vld [vmem:[%s424] sm:$0xff]
        %1328 = vst [vmem:[#allocation3] sm:$0xff] %v1327
        %v1329 = vld [vmem:[%s433] sm:$0xff]
        %1330 = vst [vmem:[#allocation4] sm:$0xff] %v1329
        %v1331 = vlaneseq
        %v1332 = vand.u32 %v1331, 127
        %v1333 = vadd.s32 %v1332, 128
        %v1334 = vadd.s32 %v1332, 256
        %v1335 = vadd.s32 %v1332, 384
        %vm1336 = vcmp.ge.s32.totalorder %v1332, 256
        %vm1337 = vcmp.ge.s32.totalorder %v1333, 256
        %vm1338 = vcmp.ge.s32.totalorder %v1334, 256
        %vm1339 = vcmp.ge.s32.totalorder %v1335, 256
        %vm1340 = vcmp.lt.s32.totalorder %v1332, 384
        %vm1341 = vcmp.lt.s32.totalorder %v1333, 384
        %vm1342 = vcmp.lt.s32.totalorder %v1334, 384
        %vm1343 = vcmp.lt.s32.totalorder %v1335, 384
        %vm1344 = vmand %vm1336, %vm1340
        %vm1345 = vmand %vm1337, %vm1341
        %vm1346 = vmand %vm1338, %vm1342
        %vm1347 = vmand %vm1339, %vm1343
        %v1348 = vsel %vm1344, 1.0, 0.5
        %v1349 = vsel %vm1345, 1.0, 0.5
        %v1350 = vsel %vm1346, 1.0, 0.5
        %v1351 = vsel %vm1347, 1.0, 0.5
        %v1352 = vsel %vm1344, 0.0, 0.5
        %v1353 = vsel %vm1345, 0.0, 0.5
        %v1354 = vsel %vm1346, 0.0, 0.5
        %v1355 = vsel %vm1347, 0.0, 0.5
        %v1356 = vld [vmem:[#allocation3] sm:$0xff]
        %v1357 = vld [vmem:[#allocation4] sm:$0xff]
        %s1358 = smul.u32 0, 4
        %s1359 = smul.addr %s1358, 8
        %s1360 = scalar_lea.vmem [#allocation2], %s1359
        %v1361 = vld [vmem:[%s1360] sm:$0xff]
        %v1362 = vld [vmem:[%s1360 + $0x8] sm:$0xff]
        %v1363 = vld [vmem:[%s1360 + $0x10] sm:$0xff]
        %v1364 = vld [vmem:[%s1360 + $0x18] sm:$0xff]
        %v1365 = vpack.c.bf16 %v1356, %v1356
        %v1398 = vunpack.c.l.b16 %v524
        %v1399 = vunpack.c.h.b16 %v524
        %v1400 = vunpack.c.l.b16 %v525
        %v1401 = vunpack.c.h.b16 %v525
        %v1402 = vunpack.c.l.b16 %v526
        %v1403 = vunpack.c.h.b16 %v526
        %v1404 = vunpack.c.l.b16 %v527
        %v1405 = vunpack.c.h.b16 %v527
        %v1406 = vunpack.c.l.b16 %v528
        %v1407 = vunpack.c.h.b16 %v528
        %v1408 = vunpack.c.l.b16 %v529
        %v1409 = vunpack.c.h.b16 %v529
        %v1410 = vunpack.c.l.b16 %v530
        %v1411 = vunpack.c.h.b16 %v530
        %v1412 = vunpack.c.l.b16 %v531
        %v1413 = vunpack.c.h.b16 %v531
        %v1414 = vunpack.c.l.b16 %v532
        %v1415 = vunpack.c.h.b16 %v532
        %v1416 = vunpack.c.l.b16 %v533
        %v1417 = vunpack.c.h.b16 %v533
        %v1418 = vunpack.c.l.b16 %v534
        %v1419 = vunpack.c.h.b16 %v534
        %v1420 = vunpack.c.l.b16 %v535
        %v1421 = vunpack.c.h.b16 %v535
        %v1422 = vunpack.c.l.b16 %v536
        %v1423 = vunpack.c.h.b16 %v536
        %v1424 = vunpack.c.l.b16 %v537
        %v1425 = vunpack.c.h.b16 %v537
        %v1426 = vunpack.c.l.b16 %v538
        %v1427 = vunpack.c.h.b16 %v538
        %v1428 = vunpack.c.l.b16 %v539
        %v1429 = vunpack.c.h.b16 %v539
        %v1430 = vunpack.c.l.b16 %v540
        %v1431 = vunpack.c.h.b16 %v540
        %v1432 = vunpack.c.l.b16 %v541
        %v1433 = vunpack.c.h.b16 %v541
        %v1434 = vunpack.c.l.b16 %v542
        %v1435 = vunpack.c.h.b16 %v542
        %v1436 = vunpack.c.l.b16 %v543
        %v1437 = vunpack.c.h.b16 %v543
        %v1438 = vunpack.c.l.b16 %v544
        %v1439 = vunpack.c.h.b16 %v544
        %v1440 = vunpack.c.l.b16 %v545
        %v1441 = vunpack.c.h.b16 %v545
        %v1442 = vunpack.c.l.b16 %v546
        %v1443 = vunpack.c.h.b16 %v546
        %v1444 = vunpack.c.l.b16 %v547
        %v1445 = vunpack.c.h.b16 %v547
        %v1446 = vunpack.c.l.b16 %v548
        %v1447 = vunpack.c.h.b16 %v548
        %v1448 = vunpack.c.l.b16 %v549
        %v1449 = vunpack.c.h.b16 %v549
        %v1450 = vunpack.c.l.b16 %v550
        %v1451 = vunpack.c.h.b16 %v550
        %v1452 = vunpack.c.l.b16 %v551
        %v1453 = vunpack.c.h.b16 %v551
        %v1454 = vunpack.c.l.b16 %v552
        %v1455 = vunpack.c.h.b16 %v552
        %v1456 = vunpack.c.l.b16 %v553
        %v1457 = vunpack.c.h.b16 %v553
        %v1458 = vunpack.c.l.b16 %v554
        %v1459 = vunpack.c.h.b16 %v554
        %v1460 = vunpack.c.l.b16 %v555
        %v1461 = vunpack.c.h.b16 %v555
        %v1462 = vpack.c.b16 %v1402, %v1398
        %v1463 = vpack.c.b16 %v1403, %v1399
        %v1464 = vpack.c.b16 %v1404, %v1400
        %v1465 = vpack.c.b16 %v1405, %v1401
        %v1466 = vpack.c.b16 %v1410, %v1406
        %v1467 = vpack.c.b16 %v1411, %v1407
        %v1468 = vpack.c.b16 %v1412, %v1408
        %v1469 = vpack.c.b16 %v1413, %v1409
        %v1470 = vpack.c.b16 %v1418, %v1414
        %v1471 = vpack.c.b16 %v1419, %v1415
        %v1472 = vpack.c.b16 %v1420, %v1416
        %v1473 = vpack.c.b16 %v1421, %v1417
        %v1474 = vpack.c.b16 %v1426, %v1422
        %v1475 = vpack.c.b16 %v1427, %v1423
        %v1476 = vpack.c.b16 %v1428, %v1424
        %v1477 = vpack.c.b16 %v1429, %v1425
        %v1478 = vpack.c.b16 %v1434, %v1430
        %v1479 = vpack.c.b16 %v1435, %v1431
        %v1480 = vpack.c.b16 %v1436, %v1432
        %v1481 = vpack.c.b16 %v1437, %v1433
        %v1482 = vpack.c.b16 %v1442, %v1438
        %v1483 = vpack.c.b16 %v1443, %v1439
        %v1484 = vpack.c.b16 %v1444, %v1440
        %v1485 = vpack.c.b16 %v1445, %v1441
        %v1486 = vpack.c.b16 %v1450, %v1446
        %v1487 = vpack.c.b16 %v1451, %v1447
        %v1488 = vpack.c.b16 %v1452, %v1448
        %v1489 = vpack.c.b16 %v1453, %v1449
        %v1490 = vpack.c.b16 %v1458, %v1454
        %v1491 = vpack.c.b16 %v1459, %v1455
        %v1492 = vpack.c.b16 %v1460, %v1456
        %v1493 = vpack.c.b16 %v1461, %v1457
        %1526 = vmatprep.subr.bf16.mxu0 %v1463
        %1527 = vmatpush1.bf16.msra.mxu0 %v1462
        %1528 = vmatprep.subr.bf16.mxu0 %v1467
        %1529 = vmatpush1.bf16.msra.mxu0 %v1466
        %1530 = vmatprep.subr.bf16.mxu0 %v1471
        %1531 = vmatpush1.bf16.msra.mxu0 %v1470
        %1532 = vmatprep.subr.bf16.mxu0 %v1475
        %1533 = vmatpush1.bf16.msra.mxu0 %v1474
        %1534 = vmatprep.subr.bf16.mxu0 %v1479
        %1535 = vmatpush1.bf16.msra.mxu0 %v1478
        %1536 = vmatprep.subr.bf16.mxu0 %v1483
        %1537 = vmatpush1.bf16.msra.mxu0 %v1482
        %1538 = vmatprep.subr.bf16.mxu0 %v1487
        %1539 = vmatpush1.bf16.msra.mxu0 %v1486
        %1540 = vmatprep.subr.bf16.mxu0 %v1491
        %1541 = vmatpush1.bf16.msra.mxu0 %v1490
        %1542 = vmatprep.subr.bf16.mxu0 0
        %1543 = vmatpush1.bf16.msra.mxu0 0
        %1544 = vmatprep.subr.bf16.mxu0 0
        %1545 = vmatpush1.bf16.msra.mxu0 0
        %1546 = vmatprep.subr.bf16.mxu0 0
        %1547 = vmatpush1.bf16.msra.mxu0 0
        %1548 = vmatprep.subr.bf16.mxu0 0
        %1549 = vmatpush1.bf16.msra.mxu0 0
        %1550 = vmatprep.subr.bf16.mxu0 0
        %1551 = vmatpush1.bf16.msra.mxu0 0
        %1552 = vmatprep.subr.bf16.mxu0 0
        %1553 = vmatpush1.bf16.msra.mxu0 0
        %1554 = vmatprep.subr.bf16.mxu0 0
        %1555 = vmatpush1.bf16.msra.mxu0 0
        %1556 = vmatprep.subr.bf16.mxu0 0
        %1557 = vmatpush1.bf16.msra.mxu0 0
        %1558 = vmatprep.mubr.bf16.mxu0 0
        %1559 = vmatmul.mubr.bf16.gmra.mrb[0].mxu0 %v1365
        %v1560 = vpop.f32.mrb[0].mxu0
        %v1561 = vadd.f32 0.0, %v1560
        %v1562 = vpop.f32.mrb[0].mxu0
        %v1563 = vadd.f32 0.0, %v1562
        %v1564 = vpop.f32.mrb[0].mxu0
        %v1565 = vpop.f32.mrb[0].mxu0
        %1566 = vdwg.mxu0
        %1567 = vmatprep.subr.bf16.mxu0 %v1465
        %1568 = vmatpush1.bf16.msra.mxu0 %v1464
        %1569 = vmatprep.subr.bf16.mxu0 %v1469
        %1570 = vmatpush1.bf16.msra.mxu0 %v1468
        %1571 = vmatprep.subr.bf16.mxu0 %v1473
        %1572 = vmatpush1.bf16.msra.mxu0 %v1472
        %1573 = vmatprep.subr.bf16.mxu0 %v1477
        %1574 = vmatpush1.bf16.msra.mxu0 %v1476
        %1575 = vmatprep.subr.bf16.mxu0 %v1481
        %1576 = vmatpush1.bf16.msra.mxu0 %v1480
        %1577 = vmatprep.subr.bf16.mxu0 %v1485
        %1578 = vmatpush1.bf16.msra.mxu0 %v1484
        %1579 = vmatprep.subr.bf16.mxu0 %v1489
        %1580 = vmatpush1.bf16.msra.mxu0 %v1488
        %1581 = vmatprep.subr.bf16.mxu0 %v1493
        %1582 = vmatpush1.bf16.msra.mxu0 %v1492
        %1583 = vmatprep.subr.bf16.mxu0 0
        %1584 = vmatpush1.bf16.msra.mxu0 0
        %1585 = vmatprep.subr.bf16.mxu0 0
        %1586 = vmatpush1.bf16.msra.mxu0 0
        %1587 = vmatprep.subr.bf16.mxu0 0
        %1588 = vmatpush1.bf16.msra.mxu0 0
        %1589 = vmatprep.subr.bf16.mxu0 0
        %1590 = vmatpush1.bf16.msra.mxu0 0
        %1591 = vmatprep.subr.bf16.mxu0 0
        %1592 = vmatpush1.bf16.msra.mxu0 0
        %1593 = vmatprep.subr.bf16.mxu0 0
        %1594 = vmatpush1.bf16.msra.mxu0 0
        %1595 = vmatprep.subr.bf16.mxu0 0
        %1596 = vmatpush1.bf16.msra.mxu0 0
        %1597 = vmatprep.subr.bf16.mxu0 0
        %1598 = vmatpush1.bf16.msra.mxu0 0
        %1599 = vmatprep.mubr.bf16.mxu0 0
        %1600 = vmatmul.mubr.bf16.gmra.mrb[0].mxu0 %v1365
        %v1601 = vpop.f32.mrb[0].mxu0
        %v1602 = vadd.f32 0.0, %v1601
        %v1603 = vpop.f32.mrb[0].mxu0
        %v1604 = vadd.f32 0.0, %v1603
        %v1605 = vpop.f32.mrb[0].mxu0
        %v1606 = vpop.f32.mrb[0].mxu0
        %1607 = vdwg.mxu0
        %v1608 = vadd.f32 %v1361, %v1561
        %v1609 = vadd.f32 %v1362, %v1563
        %v1610 = vadd.f32 %v1363, %v1602
        %v1611 = vadd.f32 %v1364, %v1604
        %v1612 = vmul.f32 %v1608, %v1348
        %v1613 = vmul.f32 %v1609, %v1349
        %v1614 = vmul.f32 %v1610, %v1350
        %v1615 = vmul.f32 %v1611, %v1351
        %v1616 = vtanh.pop %v1612
        %v1617 = vtanh.pop %v1613
        %v1618 = vtanh.pop %v1614
        %v1619 = vtanh.pop %v1615
        %v1620 = vmul.f32 %v1616, %v1348
        %v1621 = vmul.f32 %v1617, %v1349
        %v1622 = vmul.f32 %v1618, %v1350
        %v1623 = vmul.f32 %v1619, %v1351
        %v1624 = vadd.f32 %v1620, %v1352
        %v1625 = vadd.f32 %v1621, %v1353
        %v1626 = vadd.f32 %v1622, %v1354
        %v1627 = vadd.f32 %v1623, %v1355
        %v1628 = vmul.f32 %v1625, %v1357
        %v1629 = vmul.f32 %v1624, %v1626
        %v1630 = vadd.f32 %v1628, %v1629
        %v1631 = vtanh.pop %v1630
        %v1632 = vmul.f32 %v1627, %v1631
        %1633 = vst [vmem:[#allocation3] sm:$0xff] %v1632
        %1634 = vst [vmem:[#allocation4] sm:$0xff] %v1630
        %1635 = vst [vmem:[#allocation16] sm:$0xff] %v1632
        %v1636 = vld [vmem:[#allocation3] sm:$0xff]
        %v1637 = vld [vmem:[#allocation4] sm:$0xff]
        %s1638 = smul.u32 1, 4
        %s1639 = smul.addr %s1638, 8
        %s1640 = scalar_lea.vmem [#allocation2], %s1639
        %v1641 = vld [vmem:[%s1640] sm:$0xff]
        %v1642 = vld [vmem:[%s1640 + $0x8] sm:$0xff]
        %v1643 = vld [vmem:[%s1640 + $0x10] sm:$0xff]
        %v1644 = vld [vmem:[%s1640 + $0x18] sm:$0xff]
        %v1645 = vpack.c.bf16 %v1636, %v1636
        %1646 = vmatprep.subr.bf16.mxu0 %v1463
        %1647 = vmatpush1.bf16.msra.mxu0 %v1462
        %1648 = vmatprep.subr.bf16.mxu0 %v1467
        %1649 = vmatpush1.bf16.msra.mxu0 %v1466
        %1650 = vmatprep.subr.bf16.mxu0 %v1471
        %1651 = vmatpush1.bf16.msra.mxu0 %v1470
        %1652 = vmatprep.subr.bf16.mxu0 %v1475
        %1653 = vmatpush1.bf16.msra.mxu0 %v1474
        %1654 = vmatprep.subr.bf16.mxu0 %v1479
        %1655 = vmatpush1.bf16.msra.mxu0 %v1478
        %1656 = vmatprep.subr.bf16.mxu0 %v1483
        %1657 = vmatpush1.bf16.msra.mxu0 %v1482
        %1658 = vmatprep.subr.bf16.mxu0 %v1487
        %1659 = vmatpush1.bf16.msra.mxu0 %v1486
        %1660 = vmatprep.subr.bf16.mxu0 %v1491
        %1661 = vmatpush1.bf16.msra.mxu0 %v1490
        %1662 = vmatprep.subr.bf16.mxu0 0
        %1663 = vmatpush1.bf16.msra.mxu0 0
        %1664 = vmatprep.subr.bf16.mxu0 0
        %1665 = vmatpush1.bf16.msra.mxu0 0
        %1666 = vmatprep.subr.bf16.mxu0 0
        %1667 = vmatpush1.bf16.msra.mxu0 0
        %1668 = vmatprep.subr.bf16.mxu0 0
        %1669 = vmatpush1.bf16.msra.mxu0 0
        %1670 = vmatprep.subr.bf16.mxu0 0
        %1671 = vmatpush1.bf16.msra.mxu0 0
        %1672 = vmatprep.subr.bf16.mxu0 0
        %1673 = vmatpush1.bf16.msra.mxu0 0
        %1674 = vmatprep.subr.bf16.mxu0 0
        %1675 = vmatpush1.bf16.msra.mxu0 0
        %1676 = vmatprep.subr.bf16.mxu0 0
        %1677 = vmatpush1.bf16.msra.mxu0 0
        %1678 = vmatprep.mubr.bf16.mxu0 0
        %1679 = vmatmul.mubr.bf16.gmra.mrb[0].mxu0 %v1645
        %v1680 = vpop.f32.mrb[0].mxu0
        %v1681 = vadd.f32 0.0, %v1680
        %v1682 = vpop.f32.mrb[0].mxu0
        %v1683 = vadd.f32 0.0, %v1682
        %v1684 = vpop.f32.mrb[0].mxu0
        %v1685 = vpop.f32.mrb[0].mxu0
        %1686 = vdwg.mxu0
        %1687 = vmatprep.subr.bf16.mxu0 %v1465
        %1688 = vmatpush1.bf16.msra.mxu0 %v1464
        %1689 = vmatprep.subr.bf16.mxu0 %v1469
        %1690 = vmatpush1.bf16.msra.mxu0 %v1468
        %1691 = vmatprep.subr.bf16.mxu0 %v1473
        %1692 = vmatpush1.bf16.msra.mxu0 %v1472
        %1693 = vmatprep.subr.bf16.mxu0 %v1477
        %1694 = vmatpush1.bf16.msra.mxu0 %v1476
        %1695 = vmatprep.subr.bf16.mxu0 %v1481
        %1696 = vmatpush1.bf16.msra.mxu0 %v1480
        %1697 = vmatprep.subr.bf16.mxu0 %v1485
        %1698 = vmatpush1.bf16.msra.mxu0 %v1484
        %1699 = vmatprep.subr.bf16.mxu0 %v1489
        %1700 = vmatpush1.bf16.msra.mxu0 %v1488
        %1701 = vmatprep.subr.bf16.mxu0 %v1493
        %1702 = vmatpush1.bf16.msra.mxu0 %v1492
        %1703 = vmatprep.subr.bf16.mxu0 0
        %1704 = vmatpush1.bf16.msra.mxu0 0
        %1705 = vmatprep.subr.bf16.mxu0 0
        %1706 = vmatpush1.bf16.msra.mxu0 0
        %1707 = vmatprep.subr.bf16.mxu0 0
        %1708 = vmatpush1.bf16.msra.mxu0 0
        %1709 = vmatprep.subr.bf16.mxu0 0
        %1710 = vmatpush1.bf16.msra.mxu0 0
        %1711 = vmatprep.subr.bf16.mxu0 0
        %1712 = vmatpush1.bf16.msra.mxu0 0
        %1713 = vmatprep.subr.bf16.mxu0 0
        %1714 = vmatpush1.bf16.msra.mxu0 0
        %1715 = vmatprep.subr.bf16.mxu0 0
        %1716 = vmatpush1.bf16.msra.mxu0 0
        %1717 = vmatprep.subr.bf16.mxu0 0
        %1718 = vmatpush1.bf16.msra.mxu0 0
        %1719 = vmatprep.mubr.bf16.mxu0 0
        %1720 = vmatmul.mubr.bf16.gmra.mrb[0].mxu0 %v1645
        %v1721 = vpop.f32.mrb[0].mxu0
        %v1722 = vadd.f32 0.0, %v1721
        %v1723 = vpop.f32.mrb[0].mxu0
        %v1724 = vadd.f32 0.0, %v1723
        %v1725 = vpop.f32.mrb[0].mxu0
        %v1726 = vpop.f32.mrb[0].mxu0
        %1727 = vdwg.mxu0
        %v1728 = vadd.f32 %v1641, %v1681
        %v1729 = vadd.f32 %v1642, %v1683
        %v1730 = vadd.f32 %v1643, %v1722
        %v1731 = vadd.f32 %v1644, %v1724
        %v1732 = vmul.f32 %v1728, %v1348
        %v1733 = vmul.f32 %v1729, %v1349
        %v1734 = vmul.f32 %v1730, %v1350
        %v1735 = vmul.f32 %v1731, %v1351
        %v1736 = vtanh.pop %v1732
        %v1737 = vtanh.pop %v1733
        %v1738 = vtanh.pop %v1734
        %v1739 = vtanh.pop %v1735
        %v1740 = vmul.f32 %v1736, %v1348
        %v1741 = vmul.f32 %v1737, %v1349
        %v1742 = vmul.f32 %v1738, %v1350
        %v1743 = vmul.f32 %v1739, %v1351
        %v1744 = vadd.f32 %v1740, %v1352
        %v1745 = vadd.f32 %v1741, %v1353
        %v1746 = vadd.f32 %v1742, %v1354
        %v1747 = vadd.f32 %v1743, %v1355
        %v1748 = vmul.f32 %v1745, %v1637
        %v1749 = vmul.f32 %v1744, %v1746
        %v1750 = vadd.f32 %v1748, %v1749
        %v1751 = vtanh.pop %v1750
        %v1752 = vmul.f32 %v1747, %v1751
        %1753 = vst [vmem:[#allocation3] sm:$0xff] %v1752
        %1754 = vst [vmem:[#allocation4] sm:$0xff] %v1750
        %s1755 = scalar_lea.vmem [#allocation16], 8
        %1756 = vst [vmem:[%s1755] sm:$0xff] %v1752
        %v1757 = vld [vmem:[#allocation3] sm:$0xff]
        %v1758 = vld [vmem:[#allocation4] sm:$0xff]
        %s1759 = smul.u32 2, 4
        %s1760 = smul.addr %s1759, 8
        %s1761 = scalar_lea.vmem [#allocation2], %s1760
        %v1762 = vld [vmem:[%s1761] sm:$0xff]
        %v1763 = vld [vmem:[%s1761 + $0x8] sm:$0xff]
        %v1764 = vld [vmem:[%s1761 + $0x10] sm:$0xff]
        %v1765 = vld [vmem:[%s1761 + $0x18] sm:$0xff]
        %v1766 = vpack.c.bf16 %v1757, %v1757
        %1767 = vmatprep.subr.bf16.mxu0 %v1463
        %1768 = vmatpush1.bf16.msra.mxu0 %v1462
        %1769 = vmatprep.subr.bf16.mxu0 %v1467
        %1770 = vmatpush1.bf16.msra.mxu0 %v1466
        %1771 = vmatprep.subr.bf16.mxu0 %v1471
        %1772 = vmatpush1.bf16.msra.mxu0 %v1470
        %1773 = vmatprep.subr.bf16.mxu0 %v1475
        %1774 = vmatpush1.bf16.msra.mxu0 %v1474
        %1775 = vmatprep.subr.bf16.mxu0 %v1479
        %1776 = vmatpush1.bf16.msra.mxu0 %v1478
        %1777 = vmatprep.subr.bf16.mxu0 %v1483
        %1778 = vmatpush1.bf16.msra.mxu0 %v1482
        %1779 = vmatprep.subr.bf16.mxu0 %v1487
        %1780 = vmatpush1.bf16.msra.mxu0 %v1486
        %1781 = vmatprep.subr.bf16.mxu0 %v1491
        %1782 = vmatpush1.bf16.msra.mxu0 %v1490
        %1783 = vmatprep.subr.bf16.mxu0 0
        %1784 = vmatpush1.bf16.msra.mxu0 0
        %1785 = vmatprep.subr.bf16.mxu0 0
        %1786 = vmatpush1.bf16.msra.mxu0 0
        %1787 = vmatprep.subr.bf16.mxu0 0
        %1788 = vmatpush1.bf16.msra.mxu0 0
        %1789 = vmatprep.subr.bf16.mxu0 0
        %1790 = vmatpush1.bf16.msra.mxu0 0
        %1791 = vmatprep.subr.bf16.mxu0 0
        %1792 = vmatpush1.bf16.msra.mxu0 0
        %1793 = vmatprep.subr.bf16.mxu0 0
        %1794 = vmatpush1.bf16.msra.mxu0 0
        %1795 = vmatprep.subr.bf16.mxu0 0
        %1796 = vmatpush1.bf16.msra.mxu0 0
        %1797 = vmatprep.subr.bf16.mxu0 0
        %1798 = vmatpush1.bf16.msra.mxu0 0
        %1799 = vmatprep.mubr.bf16.mxu0 0
        %1800 = vmatmul.mubr.bf16.gmra.mrb[0].mxu0 %v1766
        %v1801 = vpop.f32.mrb[0].mxu0
        %v1802 = vadd.f32 0.0, %v1801
        %v1803 = vpop.f32.mrb[0].mxu0
        %v1804 = vadd.f32 0.0, %v1803
        %v1805 = vpop.f32.mrb[0].mxu0
        %v1806 = vpop.f32.mrb[0].mxu0
        %1807 = vdwg.mxu0
        %1808 = vmatprep.subr.bf16.mxu0 %v1465
        %1809 = vmatpush1.bf16.msra.mxu0 %v1464
        %1810 = vmatprep.subr.bf16.mxu0 %v1469
        %1811 = vmatpush1.bf16.msra.mxu0 %v1468
        %1812 = vmatprep.subr.bf16.mxu0 %v1473
        %1813 = vmatpush1.bf16.msra.mxu0 %v1472
        %1814 = vmatprep.subr.bf16.mxu0 %v1477
        %1815 = vmatpush1.bf16.msra.mxu0 %v1476
        %1816 = vmatprep.subr.bf16.mxu0 %v1481
        %1817 = vmatpush1.bf16.msra.mxu0 %v1480
        %1818 = vmatprep.subr.bf16.mxu0 %v1485
        %1819 = vmatpush1.bf16.msra.mxu0 %v1484
        %1820 = vmatprep.subr.bf16.mxu0 %v1489
        %1821 = vmatpush1.bf16.msra.mxu0 %v1488
        %1822 = vmatprep.subr.bf16.mxu0 %v1493
        %1823 = vmatpush1.bf16.msra.mxu0 %v1492
        %1824 = vmatprep.subr.bf16.mxu0 0
        %1825 = vmatpush1.bf16.msra.mxu0 0
        %1826 = vmatprep.subr.bf16.mxu0 0
        %1827 = vmatpush1.bf16.msra.mxu0 0
        %1828 = vmatprep.subr.bf16.mxu0 0
        %1829 = vmatpush1.bf16.msra.mxu0 0
        %1830 = vmatprep.subr.bf16.mxu0 0
        %1831 = vmatpush1.bf16.msra.mxu0 0
        %1832 = vmatprep.subr.bf16.mxu0 0
        %1833 = vmatpush1.bf16.msra.mxu0 0
        %1834 = vmatprep.subr.bf16.mxu0 0
        %1835 = vmatpush1.bf16.msra.mxu0 0
        %1836 = vmatprep.subr.bf16.mxu0 0
        %1837 = vmatpush1.bf16.msra.mxu0 0
        %1838 = vmatprep.subr.bf16.mxu0 0
        %1839 = vmatpush1.bf16.msra.mxu0 0
        %1840 = vmatprep.mubr.bf16.mxu0 0
        %1841 = vmatmul.mubr.bf16.gmra.mrb[0].mxu0 %v1766
        %v1842 = vpop.f32.mrb[0].mxu0
        %v1843 = vadd.f32 0.0, %v1842
        %v1844 = vpop.f32.mrb[0].mxu0
        %v1845 = vadd.f32 0.0, %v1844
        %v1846 = vpop.f32.mrb[0].mxu0
        %v1847 = vpop.f32.mrb[0].mxu0
        %1848 = vdwg.mxu0
        %v1849 = vadd.f32 %v1762, %v1802
        %v1850 = vadd.f32 %v1763, %v1804
        %v1851 = vadd.f32 %v1764, %v1843
        %v1852 = vadd.f32 %v1765, %v1845
        %v1853 = vmul.f32 %v1849, %v1348
        %v1854 = vmul.f32 %v1850, %v1349
        %v1855 = vmul.f32 %v1851, %v1350
        %v1856 = vmul.f32 %v1852, %v1351
        %v1857 = vtanh.pop %v1853
        %v1858 = vtanh.pop %v1854
        %v1859 = vtanh.pop %v1855
        %v1860 = vtanh.pop %v1856
        %v1861 = vmul.f32 %v1857, %v1348
        %v1862 = vmul.f32 %v1858, %v1349
        %v1863 = vmul.f32 %v1859, %v1350
        %v1864 = vmul.f32 %v1860, %v1351
        %v1865 = vadd.f32 %v1861, %v1352
        %v1866 = vadd.f32 %v1862, %v1353
        %v1867 = vadd.f32 %v1863, %v1354
        %v1868 = vadd.f32 %v1864, %v1355
        %v1869 = vmul.f32 %v1866, %v1758
        %v1870 = vmul.f32 %v1865, %v1867
        %v1871 = vadd.f32 %v1869, %v1870
        %v1872 = vtanh.pop %v1871
        %v1873 = vmul.f32 %v1868, %v1872
        %1874 = vst [vmem:[#allocation3] sm:$0xff] %v1873
        %1875 = vst [vmem:[#allocation4] sm:$0xff] %v1871
        %s1876 = scalar_lea.vmem [#allocation16], 16
        %1877 = vst [vmem:[%s1876] sm:$0xff] %v1873
        %v1878 = vld [vmem:[#allocation3] sm:$0xff]
        %v1879 = vld [vmem:[#allocation4] sm:$0xff]
        %s1880 = smul.u32 3, 4
        %s1881 = smul.addr %s1880, 8
        %s1882 = scalar_lea.vmem [#allocation2], %s1881
        %v1883 = vld [vmem:[%s1882] sm:$0xff]
        %v1884 = vld [vmem:[%s1882 + $0x8] sm:$0xff]
        %v1885 = vld [vmem:[%s1882 + $0x10] sm:$0xff]
        %v1886 = vld [vmem:[%s1882 + $0x18] sm:$0xff]
        %v1887 = vpack.c.bf16 %v1878, %v1878
        %1888 = vmatprep.subr.bf16.mxu0 %v1463
        %1889 = vmatpush1.bf16.msra.mxu0 %v1462
        %1890 = vmatprep.subr.bf16.mxu0 %v1467
        %1891 = vmatpush1.bf16.msra.mxu0 %v1466
        %1892 = vmatprep.subr.bf16.mxu0 %v1471
        %1893 = vmatpush1.bf16.msra.mxu0 %v1470
        %1894 = vmatprep.subr.bf16.mxu0 %v1475
        %1895 = vmatpush1.bf16.msra.mxu0 %v1474
        %1896 = vmatprep.subr.bf16.mxu0 %v1479
        %1897 = vmatpush1.bf16.msra.mxu0 %v1478
        %1898 = vmatprep.subr.bf16.mxu0 %v1483
        %1899 = vmatpush1.bf16.msra.mxu0 %v1482
        %1900 = vmatprep.subr.bf16.mxu0 %v1487
        %1901 = vmatpush1.bf16.msra.mxu0 %v1486
        %1902 = vmatprep.subr.bf16.mxu0 %v1491
        %1903 = vmatpush1.bf16.msra.mxu0 %v1490
        %1904 = vmatprep.subr.bf16.mxu0 0
        %1905 = vmatpush1.bf16.msra.mxu0 0
        %1906 = vmatprep.subr.bf16.mxu0 0
        %1907 = vmatpush1.bf16.msra.mxu0 0
        %1908 = vmatprep.subr.bf16.mxu0 0
        %1909 = vmatpush1.bf16.msra.mxu0 0
        %1910 = vmatprep.subr.bf16.mxu0 0
        %1911 = vmatpush1.bf16.msra.mxu0 0
        %1912 = vmatprep.subr.bf16.mxu0 0
        %1913 = vmatpush1.bf16.msra.mxu0 0
        %1914 = vmatprep.subr.bf16.mxu0 0
        %1915 = vmatpush1.bf16.msra.mxu0 0
        %1916 = vmatprep.subr.bf16.mxu0 0
        %1917 = vmatpush1.bf16.msra.mxu0 0
        %1918 = vmatprep.subr.bf16.mxu0 0
        %1919 = vmatpush1.bf16.msra.mxu0 0
        %1920 = vmatprep.mubr.bf16.mxu0 0
        %1921 = vmatmul.mubr.bf16.gmra.mrb[0].mxu0 %v1887
        %v1922 = vpop.f32.mrb[0].mxu0
        %v1923 = vadd.f32 0.0, %v1922
        %v1924 = vpop.f32.mrb[0].mxu0
        %v1925 = vadd.f32 0.0, %v1924
        %v1926 = vpop.f32.mrb[0].mxu0
        %v1927 = vpop.f32.mrb[0].mxu0
        %1928 = vdwg.mxu0
        %1929 = vmatprep.subr.bf16.mxu0 %v1465
        %1930 = vmatpush1.bf16.msra.mxu0 %v1464
        %1931 = vmatprep.subr.bf16.mxu0 %v1469
        %1932 = vmatpush1.bf16.msra.mxu0 %v1468
        %1933 = vmatprep.subr.bf16.mxu0 %v1473
        %1934 = vmatpush1.bf16.msra.mxu0 %v1472
        %1935 = vmatprep.subr.bf16.mxu0 %v1477
        %1936 = vmatpush1.bf16.msra.mxu0 %v1476
        %1937 = vmatprep.subr.bf16.mxu0 %v1481
        %1938 = vmatpush1.bf16.msra.mxu0 %v1480
        %1939 = vmatprep.subr.bf16.mxu0 %v1485
        %1940 = vmatpush1.bf16.msra.mxu0 %v1484
        %1941 = vmatprep.subr.bf16.mxu0 %v1489
        %1942 = vmatpush1.bf16.msra.mxu0 %v1488
        %1943 = vmatprep.subr.bf16.mxu0 %v1493
        %1944 = vmatpush1.bf16.msra.mxu0 %v1492
        %1945 = vmatprep.subr.bf16.mxu0 0
        %1946 = vmatpush1.bf16.msra.mxu0 0
        %1947 = vmatprep.subr.bf16.mxu0 0
        %1948 = vmatpush1.bf16.msra.mxu0 0
        %1949 = vmatprep.subr.bf16.mxu0 0
        %1950 = vmatpush1.bf16.msra.mxu0 0
        %1951 = vmatprep.subr.bf16.mxu0 0
        %1952 = vmatpush1.bf16.msra.mxu0 0
        %1953 = vmatprep.subr.bf16.mxu0 0
        %1954 = vmatpush1.bf16.msra.mxu0 0
        %1955 = vmatprep.subr.bf16.mxu0 0
        %1956 = vmatpush1.bf16.msra.mxu0 0
        %1957 = vmatprep.subr.bf16.mxu0 0
        %1958 = vmatpush1.bf16.msra.mxu0 0
        %1959 = vmatprep.subr.bf16.mxu0 0
        %1960 = vmatpush1.bf16.msra.mxu0 0
        %1961 = vmatprep.mubr.bf16.mxu0 0
        %1962 = vmatmul.mubr.bf16.gmra.mrb[0].mxu0 %v1887
        %v1963 = vpop.f32.mrb[0].mxu0
        %v1964 = vadd.f32 0.0, %v1963
        %v1965 = vpop.f32.mrb[0].mxu0
        %v1966 = vadd.f32 0.0, %v1965
        %v1967 = vpop.f32.mrb[0].mxu0
        %v1968 = vpop.f32.mrb[0].mxu0
        %1969 = vdwg.mxu0
        %v1970 = vadd.f32 %v1883, %v1923
        %v1971 = vadd.f32 %v1884, %v1925
        %v1972 = vadd.f32 %v1885, %v1964
        %v1973 = vadd.f32 %v1886, %v1966
        %v1974 = vmul.f32 %v1970, %v1348
        %v1975 = vmul.f32 %v1971, %v1349
        %v1976 = vmul.f32 %v1972, %v1350
        %v1977 = vmul.f32 %v1973, %v1351
        %v1978 = vtanh.pop %v1974
        %v1979 = vtanh.pop %v1975
        %v1980 = vtanh.pop %v1976
        %v1981 = vtanh.pop %v1977
        %v1982 = vmul.f32 %v1978, %v1348
        %v1983 = vmul.f32 %v1979, %v1349
        %v1984 = vmul.f32 %v1980, %v1350
        %v1985 = vmul.f32 %v1981, %v1351
        %v1986 = vadd.f32 %v1982, %v1352
        %v1987 = vadd.f32 %v1983, %v1353
        %v1988 = vadd.f32 %v1984, %v1354
        %v1989 = vadd.f32 %v1985, %v1355
        %v1990 = vmul.f32 %v1987, %v1879
        %v1991 = vmul.f32 %v1986, %v1988
        %v1992 = vadd.f32 %v1990, %v1991
        %v1993 = vtanh.pop %v1992
        %v1994 = vmul.f32 %v1989, %v1993
        %1995 = vst [vmem:[#allocation3] sm:$0xff] %v1994
        %1996 = vst [vmem:[#allocation4] sm:$0xff] %v1992
        %s1997 = scalar_lea.vmem [#allocation16], 24
        %1998 = vst [vmem:[%s1997] sm:$0xff] %v1994
        %v1999 = vld [vmem:[#allocation3] sm:$0xff]
        %v2000 = vld [vmem:[#allocation4] sm:$0xff]
        %s2001 = smul.u32 4, 4
        %s2002 = smul.addr %s2001, 8
        %s2003 = scalar_lea.vmem [#allocation2], %s2002
        %v2004 = vld [vmem:[%s2003] sm:$0xff]
        %v2005 = vld [vmem:[%s2003 + $0x8] sm:$0xff]
        %v2006 = vld [vmem:[%s2003 + $0x10] sm:$0xff]
        %v2007 = vld [vmem:[%s2003 + $0x18] sm:$0xff]
        %v2008 = vpack.c.bf16 %v1999, %v1999
        %2009 = vmatprep.subr.bf16.mxu0 %v1463
        %2010 = vmatpush1.bf16.msra.mxu0 %v1462
        %2011 = vmatprep.subr.bf16.mxu0 %v1467
        %2012 = vmatpush1.bf16.msra.mxu0 %v1466
        %2013 = vmatprep.subr.bf16.mxu0 %v1471
        %2014 = vmatpush1.bf16.msra.mxu0 %v1470
        %2015 = vmatprep.subr.bf16.mxu0 %v1475
        %2016 = vmatpush1.bf16.msra.mxu0 %v1474
        %2017 = vmatprep.subr.bf16.mxu0 %v1479
        %2018 = vmatpush1.bf16.msra.mxu0 %v1478
        %2019 = vmatprep.subr.bf16.mxu0 %v1483
        %2020 = vmatpush1.bf16.msra.mxu0 %v1482
        %2021 = vmatprep.subr.bf16.mxu0 %v1487
        %2022 = vmatpush1.bf16.msra.mxu0 %v1486
        %2023 = vmatprep.subr.bf16.mxu0 %v1491
        %2024 = vmatpush1.bf16.msra.mxu0 %v1490
        %2025 = vmatprep.subr.bf16.mxu0 0
        %2026 = vmatpush1.bf16.msra.mxu0 0
        %2027 = vmatprep.subr.bf16.mxu0 0
        %2028 = vmatpush1.bf16.msra.mxu0 0
        %2029 = vmatprep.subr.bf16.mxu0 0
        %2030 = vmatpush1.bf16.msra.mxu0 0
        %2031 = vmatprep.subr.bf16.mxu0 0
        %2032 = vmatpush1.bf16.msra.mxu0 0
        %2033 = vmatprep.subr.bf16.mxu0 0
        %2034 = vmatpush1.bf16.msra.mxu0 0
        %2035 = vmatprep.subr.bf16.mxu0 0
        %2036 = vmatpush1.bf16.msra.mxu0 0
        %2037 = vmatprep.subr.bf16.mxu0 0
        %2038 = vmatpush1.bf16.msra.mxu0 0
        %2039 = vmatprep.subr.bf16.mxu0 0
        %2040 = vmatpush1.bf16.msra.mxu0 0
        %2041 = vmatprep.mubr.bf16.mxu0 0
        %2042 = vmatmul.mubr.bf16.gmra.mrb[0].mxu0 %v2008
        %v2043 = vpop.f32.mrb[0].mxu0
        %v2044 = vadd.f32 0.0, %v2043
        %v2045 = vpop.f32.mrb[0].mxu0
        %v2046 = vadd.f32 0.0, %v2045
        %v2047 = vpop.f32.mrb[0].mxu0
        %v2048 = vpop.f32.mrb[0].mxu0
        %2049 = vdwg.mxu0
        %2050 = vmatprep.subr.bf16.mxu0 %v1465
        %2051 = vmatpush1.bf16.msra.mxu0 %v1464
        %2052 = vmatprep.subr.bf16.mxu0 %v1469
        %2053 = vmatpush1.bf16.msra.mxu0 %v1468
        %2054 = vmatprep.subr.bf16.mxu0 %v1473
        %2055 = vmatpush1.bf16.msra.mxu0 %v1472
        %2056 = vmatprep.subr.bf16.mxu0 %v1477
        %2057 = vmatpush1.bf16.msra.mxu0 %v1476
        %2058 = vmatprep.subr.bf16.mxu0 %v1481
        %2059 = vmatpush1.bf16.msra.mxu0 %v1480
        %2060 = vmatprep.subr.bf16.mxu0 %v1485
        %2061 = vmatpush1.bf16.msra.mxu0 %v1484
        %2062 = vmatprep.subr.bf16.mxu0 %v1489
        %2063 = vmatpush1.bf16.msra.mxu0 %v1488
        %2064 = vmatprep.subr.bf16.mxu0 %v1493
        %2065 = vmatpush1.bf16.msra.mxu0 %v1492
        %2066 = vmatprep.subr.bf16.mxu0 0
        %2067 = vmatpush1.bf16.msra.mxu0 0
        %2068 = vmatprep.subr.bf16.mxu0 0
        %2069 = vmatpush1.bf16.msra.mxu0 0
        %2070 = vmatprep.subr.bf16.mxu0 0
        %2071 = vmatpush1.bf16.msra.mxu0 0
        %2072 = vmatprep.subr.bf16.mxu0 0
        %2073 = vmatpush1.bf16.msra.mxu0 0
        %2074 = vmatprep.subr.bf16.mxu0 0
        %2075 = vmatpush1.bf16.msra.mxu0 0
        %2076 = vmatprep.subr.bf16.mxu0 0
        %2077 = vmatpush1.bf16.msra.mxu0 0
        %2078 = vmatprep.subr.bf16.mxu0 0
        %2079 = vmatpush1.bf16.msra.mxu0 0
        %2080 = vmatprep.subr.bf16.mxu0 0
        %2081 = vmatpush1.bf16.msra.mxu0 0
        %2082 = vmatprep.mubr.bf16.mxu0 0
        %2083 = vmatmul.mubr.bf16.gmra.mrb[0].mxu0 %v2008
        %v2084 = vpop.f32.mrb[0].mxu0
        %v2085 = vadd.f32 0.0, %v2084
        %v2086 = vpop.f32.mrb[0].mxu0
        %v2087 = vadd.f32 0.0, %v2086
        %v2088 = vpop.f32.mrb[0].mxu0
        %v2089 = vpop.f32.mrb[0].mxu0
        %2090 = vdwg.mxu0
        %v2091 = vadd.f32 %v2004, %v2044
        %v2092 = vadd.f32 %v2005, %v2046
        %v2093 = vadd.f32 %v2006, %v2085
        %v2094 = vadd.f32 %v2007, %v2087
        %v2095 = vmul.f32 %v2091, %v1348
        %v2096 = vmul.f32 %v2092, %v1349
        %v2097 = vmul.f32 %v2093, %v1350
        %v2098 = vmul.f32 %v2094, %v1351
        %v2099 = vtanh.pop %v2095
        %v2100 = vtanh.pop %v2096
        %v2101 = vtanh.pop %v2097
        %v2102 = vtanh.pop %v2098
        %v2103 = vmul.f32 %v2099, %v1348
        %v2104 = vmul.f32 %v2100, %v1349
        %v2105 = vmul.f32 %v2101, %v1350
        %v2106 = vmul.f32 %v2102, %v1351
        %v2107 = vadd.f32 %v2103, %v1352
        %v2108 = vadd.f32 %v2104, %v1353
        %v2109 = vadd.f32 %v2105, %v1354
        %v2110 = vadd.f32 %v2106, %v1355
        %v2111 = vmul.f32 %v2108, %v2000
        %v2112 = vmul.f32 %v2107, %v2109
        %v2113 = vadd.f32 %v2111, %v2112
        %v2114 = vtanh.pop %v2113
        %v2115 = vmul.f32 %v2110, %v2114
        %2116 = vst [vmem:[#allocation3] sm:$0xff] %v2115
        %2117 = vst [vmem:[#allocation4] sm:$0xff] %v2113
        %s2118 = scalar_lea.vmem [#allocation16], 32
        %2119 = vst [vmem:[%s2118] sm:$0xff] %v2115
        %v2120 = vld [vmem:[#allocation3] sm:$0xff]
        %v2121 = vld [vmem:[#allocation4] sm:$0xff]
        %s2122 = smul.u32 5, 4
        %s2123 = smul.addr %s2122, 8
        %s2124 = scalar_lea.vmem [#allocation2], %s2123
        %v2125 = vld [vmem:[%s2124] sm:$0xff]
        %v2126 = vld [vmem:[%s2124 + $0x8] sm:$0xff]
        %v2127 = vld [vmem:[%s2124 + $0x10] sm:$0xff]
        %v2128 = vld [vmem:[%s2124 + $0x18] sm:$0xff]
        %v2129 = vpack.c.bf16 %v2120, %v2120
        %2130 = vmatprep.subr.bf16.mxu0 %v1463
        %2131 = vmatpush1.bf16.msra.mxu0 %v1462
        %2132 = vmatprep.subr.bf16.mxu0 %v1467
        %2133 = vmatpush1.bf16.msra.mxu0 %v1466
        %2134 = vmatprep.subr.bf16.mxu0 %v1471
        %2135 = vmatpush1.bf16.msra.mxu0 %v1470
        %2136 = vmatprep.subr.bf16.mxu0 %v1475
        %2137 = vmatpush1.bf16.msra.mxu0 %v1474
        %2138 = vmatprep.subr.bf16.mxu0 %v1479
        %2139 = vmatpush1.bf16.msra.mxu0 %v1478
        %2140 = vmatprep.subr.bf16.mxu0 %v1483
        %2141 = vmatpush1.bf16.msra.mxu0 %v1482
        %2142 = vmatprep.subr.bf16.mxu0 %v1487
        %2143 = vmatpush1.bf16.msra.mxu0 %v1486
        %2144 = vmatprep.subr.bf16.mxu0 %v1491
        %2145 = vmatpush1.bf16.msra.mxu0 %v1490
        %2146 = vmatprep.subr.bf16.mxu0 0
        %2147 = vmatpush1.bf16.msra.mxu0 0
        %2148 = vmatprep.subr.bf16.mxu0 0
        %2149 = vmatpush1.bf16.msra.mxu0 0
        %2150 = vmatprep.subr.bf16.mxu0 0
        %2151 = vmatpush1.bf16.msra.mxu0 0
        %2152 = vmatprep.subr.bf16.mxu0 0
        %2153 = vmatpush1.bf16.msra.mxu0 0
        %2154 = vmatprep.subr.bf16.mxu0 0
        %2155 = vmatpush1.bf16.msra.mxu0 0
        %2156 = vmatprep.subr.bf16.mxu0 0
        %2157 = vmatpush1.bf16.msra.mxu0 0
        %2158 = vmatprep.subr.bf16.mxu0 0
        %2159 = vmatpush1.bf16.msra.mxu0 0
        %2160 = vmatprep.subr.bf16.mxu0 0
        %2161 = vmatpush1.bf16.msra.mxu0 0
        %2162 = vmatprep.mubr.bf16.mxu0 0
        %2163 = vmatmul.mubr.bf16.gmra.mrb[0].mxu0 %v2129
        %v2164 = vpop.f32.mrb[0].mxu0
        %v2165 = vadd.f32 0.0, %v2164
        %v2166 = vpop.f32.mrb[0].mxu0
        %v2167 = vadd.f32 0.0, %v2166
        %v2168 = vpop.f32.mrb[0].mxu0
        %v2169 = vpop.f32.mrb[0].mxu0
        %2170 = vdwg.mxu0
        %2171 = vmatprep.subr.bf16.mxu0 %v1465
        %2172 = vmatpush1.bf16.msra.mxu0 %v1464
        %2173 = vmatprep.subr.bf16.mxu0 %v1469
        %2174 = vmatpush1.bf16.msra.mxu0 %v1468
        %2175 = vmatprep.subr.bf16.mxu0 %v1473
        %2176 = vmatpush1.bf16.msra.mxu0 %v1472
        %2177 = vmatprep.subr.bf16.mxu0 %v1477
        %2178 = vmatpush1.bf16.msra.mxu0 %v1476
        %2179 = vmatprep.subr.bf16.mxu0 %v1481
        %2180 = vmatpush1.bf16.msra.mxu0 %v1480
        %2181 = vmatprep.subr.bf16.mxu0 %v1485
        %2182 = vmatpush1.bf16.msra.mxu0 %v1484
        %2183 = vmatprep.subr.bf16.mxu0 %v1489
        %2184 = vmatpush1.bf16.msra.mxu0 %v1488
        %2185 = vmatprep.subr.bf16.mxu0 %v1493
        %2186 = vmatpush1.bf16.msra.mxu0 %v1492
        %2187 = vmatprep.subr.bf16.mxu0 0
        %2188 = vmatpush1.bf16.msra.mxu0 0
        %2189 = vmatprep.subr.bf16.mxu0 0
        %2190 = vmatpush1.bf16.msra.mxu0 0
        %2191 = vmatprep.subr.bf16.mxu0 0
        %2192 = vmatpush1.bf16.msra.mxu0 0
        %2193 = vmatprep.subr.bf16.mxu0 0
        %2194 = vmatpush1.bf16.msra.mxu0 0
        %2195 = vmatprep.subr.bf16.mxu0 0
        %2196 = vmatpush1.bf16.msra.mxu0 0
        %2197 = vmatprep.subr.bf16.mxu0 0
        %2198 = vmatpush1.bf16.msra.mxu0 0
        %2199 = vmatprep.subr.bf16.mxu0 0
        %2200 = vmatpush1.bf16.msra.mxu0 0
        %2201 = vmatprep.subr.bf16.mxu0 0
        %2202 = vmatpush1.bf16.msra.mxu0 0
        %2203 = vmatprep.mubr.bf16.mxu0 0
        %2204 = vmatmul.mubr.bf16.gmra.mrb[0].mxu0 %v2129
        %v2205 = vpop.f32.mrb[0].mxu0
        %v2206 = vadd.f32 0.0, %v2205
        %v2207 = vpop.f32.mrb[0].mxu0
        %v2208 = vadd.f32 0.0, %v2207
        %v2209 = vpop.f32.mrb[0].mxu0
        %v2210 = vpop.f32.mrb[0].mxu0
        %2211 = vdwg.mxu0
        %v2212 = vadd.f32 %v2125, %v2165
        %v2213 = vadd.f32 %v2126, %v2167
        %v2214 = vadd.f32 %v2127, %v2206
        %v2215 = vadd.f32 %v2128, %v2208
        %v2216 = vmul.f32 %v2212, %v1348
        %v2217 = vmul.f32 %v2213, %v1349
        %v2218 = vmul.f32 %v2214, %v1350
        %v2219 = vmul.f32 %v2215, %v1351
        %v2220 = vtanh.pop %v2216
        %v2221 = vtanh.pop %v2217
        %v2222 = vtanh.pop %v2218
        %v2223 = vtanh.pop %v2219
        %v2224 = vmul.f32 %v2220, %v1348
        %v2225 = vmul.f32 %v2221, %v1349
        %v2226 = vmul.f32 %v2222, %v1350
        %v2227 = vmul.f32 %v2223, %v1351
        %v2228 = vadd.f32 %v2224, %v1352
        %v2229 = vadd.f32 %v2225, %v1353
        %v2230 = vadd.f32 %v2226, %v1354
        %v2231 = vadd.f32 %v2227, %v1355
        %v2232 = vmul.f32 %v2229, %v2121
        %v2233 = vmul.f32 %v2228, %v2230
        %v2234 = vadd.f32 %v2232, %v2233
        %v2235 = vtanh.pop %v2234
        %v2236 = vmul.f32 %v2231, %v2235
        %2237 = vst [vmem:[#allocation3] sm:$0xff] %v2236
        %2238 = vst [vmem:[#allocation4] sm:$0xff] %v2234
        %s2239 = scalar_lea.vmem [#allocation16], 40
        %2240 = vst [vmem:[%s2239] sm:$0xff] %v2236
        %v2241 = vld [vmem:[#allocation3] sm:$0xff]
        %v2242 = vld [vmem:[#allocation4] sm:$0xff]
        %s2243 = smul.u32 6, 4
        %s2244 = smul.addr %s2243, 8
        %s2245 = scalar_lea.vmem [#allocation2], %s2244
        %v2246 = vld [vmem:[%s2245] sm:$0xff]
        %v2247 = vld [vmem:[%s2245 + $0x8] sm:$0xff]
        %v2248 = vld [vmem:[%s2245 + $0x10] sm:$0xff]
        %v2249 = vld [vmem:[%s2245 + $0x18] sm:$0xff]
        %v2250 = vpack.c.bf16 %v2241, %v2241
        %2251 = vmatprep.subr.bf16.mxu0 %v1463
        %2252 = vmatpush1.bf16.msra.mxu0 %v1462
        %2253 = vmatprep.subr.bf16.mxu0 %v1467
        %2254 = vmatpush1.bf16.msra.mxu0 %v1466
        %2255 = vmatprep.subr.bf16.mxu0 %v1471
        %2256 = vmatpush1.bf16.msra.mxu0 %v1470
        %2257 = vmatprep.subr.bf16.mxu0 %v1475
        %2258 = vmatpush1.bf16.msra.mxu0 %v1474
        %2259 = vmatprep.subr.bf16.mxu0 %v1479
        %2260 = vmatpush1.bf16.msra.mxu0 %v1478
        %2261 = vmatprep.subr.bf16.mxu0 %v1483
        %2262 = vmatpush1.bf16.msra.mxu0 %v1482
        %2263 = vmatprep.subr.bf16.mxu0 %v1487
        %2264 = vmatpush1.bf16.msra.mxu0 %v1486
        %2265 = vmatprep.subr.bf16.mxu0 %v1491
        %2266 = vmatpush1.bf16.msra.mxu0 %v1490
        %2267 = vmatprep.subr.bf16.mxu0 0
        %2268 = vmatpush1.bf16.msra.mxu0 0
        %2269 = vmatprep.subr.bf16.mxu0 0
        %2270 = vmatpush1.bf16.msra.mxu0 0
        %2271 = vmatprep.subr.bf16.mxu0 0
        %2272 = vmatpush1.bf16.msra.mxu0 0
        %2273 = vmatprep.subr.bf16.mxu0 0
        %2274 = vmatpush1.bf16.msra.mxu0 0
        %2275 = vmatprep.subr.bf16.mxu0 0
        %2276 = vmatpush1.bf16.msra.mxu0 0
        %2277 = vmatprep.subr.bf16.mxu0 0
        %2278 = vmatpush1.bf16.msra.mxu0 0
        %2279 = vmatprep.subr.bf16.mxu0 0
        %2280 = vmatpush1.bf16.msra.mxu0 0
        %2281 = vmatprep.subr.bf16.mxu0 0
        %2282 = vmatpush1.bf16.msra.mxu0 0
        %2283 = vmatprep.mubr.bf16.mxu0 0
        %2284 = vmatmul.mubr.bf16.gmra.mrb[0].mxu0 %v2250
        %v2285 = vpop.f32.mrb[0].mxu0
        %v2286 = vadd.f32 0.0, %v2285
        %v2287 = vpop.f32.mrb[0].mxu0
        %v2288 = vadd.f32 0.0, %v2287
        %v2289 = vpop.f32.mrb[0].mxu0
        %v2290 = vpop.f32.mrb[0].mxu0
        %2291 = vdwg.mxu0
        %2292 = vmatprep.subr.bf16.mxu0 %v1465
        %2293 = vmatpush1.bf16.msra.mxu0 %v1464
        %2294 = vmatprep.subr.bf16.mxu0 %v1469
        %2295 = vmatpush1.bf16.msra.mxu0 %v1468
        %2296 = vmatprep.subr.bf16.mxu0 %v1473
        %2297 = vmatpush1.bf16.msra.mxu0 %v1472
        %2298 = vmatprep.subr.bf16.mxu0 %v1477
        %2299 = vmatpush1.bf16.msra.mxu0 %v1476
        %2300 = vmatprep.subr.bf16.mxu0 %v1481
        %2301 = vmatpush1.bf16.msra.mxu0 %v1480
        %2302 = vmatprep.subr.bf16.mxu0 %v1485
        %2303 = vmatpush1.bf16.msra.mxu0 %v1484
        %2304 = vmatprep.subr.bf16.mxu0 %v1489
        %2305 = vmatpush1.bf16.msra.mxu0 %v1488
        %2306 = vmatprep.subr.bf16.mxu0 %v1493
        %2307 = vmatpush1.bf16.msra.mxu0 %v1492
        %2308 = vmatprep.subr.bf16.mxu0 0
        %2309 = vmatpush1.bf16.msra.mxu0 0
        %2310 = vmatprep.subr.bf16.mxu0 0
        %2311 = vmatpush1.bf16.msra.mxu0 0
        %2312 = vmatprep.subr.bf16.mxu0 0
        %2313 = vmatpush1.bf16.msra.mxu0 0
        %2314 = vmatprep.subr.bf16.mxu0 0
        %2315 = vmatpush1.bf16.msra.mxu0 0
        %2316 = vmatprep.subr.bf16.mxu0 0
        %2317 = vmatpush1.bf16.msra.mxu0 0
        %2318 = vmatprep.subr.bf16.mxu0 0
        %2319 = vmatpush1.bf16.msra.mxu0 0
        %2320 = vmatprep.subr.bf16.mxu0 0
        %2321 = vmatpush1.bf16.msra.mxu0 0
        %2322 = vmatprep.subr.bf16.mxu0 0
        %2323 = vmatpush1.bf16.msra.mxu0 0
        %2324 = vmatprep.mubr.bf16.mxu0 0
        %2325 = vmatmul.mubr.bf16.gmra.mrb[0].mxu0 %v2250
        %v2326 = vpop.f32.mrb[0].mxu0
        %v2327 = vadd.f32 0.0, %v2326
        %v2328 = vpop.f32.mrb[0].mxu0
        %v2329 = vadd.f32 0.0, %v2328
        %v2330 = vpop.f32.mrb[0].mxu0
        %v2331 = vpop.f32.mrb[0].mxu0
        %2332 = vdwg.mxu0
        %v2333 = vadd.f32 %v2246, %v2286
        %v2334 = vadd.f32 %v2247, %v2288
        %v2335 = vadd.f32 %v2248, %v2327
        %v2336 = vadd.f32 %v2249, %v2329
        %v2337 = vmul.f32 %v2333, %v1348
        %v2338 = vmul.f32 %v2334, %v1349
        %v2339 = vmul.f32 %v2335, %v1350
        %v2340 = vmul.f32 %v2336, %v1351
        %v2341 = vtanh.pop %v2337
        %v2342 = vtanh.pop %v2338
        %v2343 = vtanh.pop %v2339
        %v2344 = vtanh.pop %v2340
        %v2345 = vmul.f32 %v2341, %v1348
        %v2346 = vmul.f32 %v2342, %v1349
        %v2347 = vmul.f32 %v2343, %v1350
        %v2348 = vmul.f32 %v2344, %v1351
        %v2349 = vadd.f32 %v2345, %v1352
        %v2350 = vadd.f32 %v2346, %v1353
        %v2351 = vadd.f32 %v2347, %v1354
        %v2352 = vadd.f32 %v2348, %v1355
        %v2353 = vmul.f32 %v2350, %v2242
        %v2354 = vmul.f32 %v2349, %v2351
        %v2355 = vadd.f32 %v2353, %v2354
        %v2356 = vtanh.pop %v2355
        %v2357 = vmul.f32 %v2352, %v2356
        %2358 = vst [vmem:[#allocation3] sm:$0xff] %v2357
        %2359 = vst [vmem:[#allocation4] sm:$0xff] %v2355
        %s2360 = scalar_lea.vmem [#allocation16], 48
        %2361 = vst [vmem:[%s2360] sm:$0xff] %v2357
        %v2362 = vld [vmem:[#allocation3] sm:$0xff]
        %v2363 = vld [vmem:[#allocation4] sm:$0xff]
        %s2364 = smul.u32 7, 4
        %s2365 = smul.addr %s2364, 8
        %s2366 = scalar_lea.vmem [#allocation2], %s2365
        %v2367 = vld [vmem:[%s2366] sm:$0xff]
        %v2368 = vld [vmem:[%s2366 + $0x8] sm:$0xff]
        %v2369 = vld [vmem:[%s2366 + $0x10] sm:$0xff]
        %v2370 = vld [vmem:[%s2366 + $0x18] sm:$0xff]
        %v2371 = vpack.c.bf16 %v2362, %v2362
        %2372 = vmatprep.subr.bf16.mxu0 %v1463
        %2373 = vmatpush1.bf16.msra.mxu0 %v1462
        %2374 = vmatprep.subr.bf16.mxu0 %v1467
        %2375 = vmatpush1.bf16.msra.mxu0 %v1466
        %2376 = vmatprep.subr.bf16.mxu0 %v1471
        %2377 = vmatpush1.bf16.msra.mxu0 %v1470
        %2378 = vmatprep.subr.bf16.mxu0 %v1475
        %2379 = vmatpush1.bf16.msra.mxu0 %v1474
        %2380 = vmatprep.subr.bf16.mxu0 %v1479
        %2381 = vmatpush1.bf16.msra.mxu0 %v1478
        %2382 = vmatprep.subr.bf16.mxu0 %v1483
        %2383 = vmatpush1.bf16.msra.mxu0 %v1482
        %2384 = vmatprep.subr.bf16.mxu0 %v1487
        %2385 = vmatpush1.bf16.msra.mxu0 %v1486
        %2386 = vmatprep.subr.bf16.mxu0 %v1491
        %2387 = vmatpush1.bf16.msra.mxu0 %v1490
        %2388 = vmatprep.subr.bf16.mxu0 0
        %2389 = vmatpush1.bf16.msra.mxu0 0
        %2390 = vmatprep.subr.bf16.mxu0 0
        %2391 = vmatpush1.bf16.msra.mxu0 0
        %2392 = vmatprep.subr.bf16.mxu0 0
        %2393 = vmatpush1.bf16.msra.mxu0 0
        %2394 = vmatprep.subr.bf16.mxu0 0
        %2395 = vmatpush1.bf16.msra.mxu0 0
        %2396 = vmatprep.subr.bf16.mxu0 0
        %2397 = vmatpush1.bf16.msra.mxu0 0
        %2398 = vmatprep.subr.bf16.mxu0 0
        %2399 = vmatpush1.bf16.msra.mxu0 0
        %2400 = vmatprep.subr.bf16.mxu0 0
        %2401 = vmatpush1.bf16.msra.mxu0 0
        %2402 = vmatprep.subr.bf16.mxu0 0
        %2403 = vmatpush1.bf16.msra.mxu0 0
        %2404 = vmatprep.mubr.bf16.mxu0 0
        %2405 = vmatmul.mubr.bf16.gmra.mrb[0].mxu0 %v2371
        %v2406 = vpop.f32.mrb[0].mxu0
        %v2407 = vadd.f32 0.0, %v2406
        %v2408 = vpop.f32.mrb[0].mxu0
        %v2409 = vadd.f32 0.0, %v2408
        %v2410 = vpop.f32.mrb[0].mxu0
        %v2411 = vpop.f32.mrb[0].mxu0
        %2412 = vdwg.mxu0
        %2413 = vmatprep.subr.bf16.mxu0 %v1465
        %2414 = vmatpush1.bf16.msra.mxu0 %v1464
        %2415 = vmatprep.subr.bf16.mxu0 %v1469
        %2416 = vmatpush1.bf16.msra.mxu0 %v1468
        %2417 = vmatprep.subr.bf16.mxu0 %v1473
        %2418 = vmatpush1.bf16.msra.mxu0 %v1472
        %2419 = vmatprep.subr.bf16.mxu0 %v1477
        %2420 = vmatpush1.bf16.msra.mxu0 %v1476
        %2421 = vmatprep.subr.bf16.mxu0 %v1481
        %2422 = vmatpush1.bf16.msra.mxu0 %v1480
        %2423 = vmatprep.subr.bf16.mxu0 %v1485
        %2424 = vmatpush1.bf16.msra.mxu0 %v1484
        %2425 = vmatprep.subr.bf16.mxu0 %v1489
        %2426 = vmatpush1.bf16.msra.mxu0 %v1488
        %2427 = vmatprep.subr.bf16.mxu0 %v1493
        %2428 = vmatpush1.bf16.msra.mxu0 %v1492
        %2429 = vmatprep.subr.bf16.mxu0 0
        %2430 = vmatpush1.bf16.msra.mxu0 0
        %2431 = vmatprep.subr.bf16.mxu0 0
        %2432 = vmatpush1.bf16.msra.mxu0 0
        %2433 = vmatprep.subr.bf16.mxu0 0
        %2434 = vmatpush1.bf16.msra.mxu0 0
        %2435 = vmatprep.subr.bf16.mxu0 0
        %2436 = vmatpush1.bf16.msra.mxu0 0
        %2437 = vmatprep.subr.bf16.mxu0 0
        %2438 = vmatpush1.bf16.msra.mxu0 0
        %2439 = vmatprep.subr.bf16.mxu0 0
        %2440 = vmatpush1.bf16.msra.mxu0 0
        %2441 = vmatprep.subr.bf16.mxu0 0
        %2442 = vmatpush1.bf16.msra.mxu0 0
        %2443 = vmatprep.subr.bf16.mxu0 0
        %2444 = vmatpush1.bf16.msra.mxu0 0
        %2445 = vmatprep.mubr.bf16.mxu0 0
        %2446 = vmatmul.mubr.bf16.gmra.mrb[0].mxu0 %v2371
        %v2447 = vpop.f32.mrb[0].mxu0
        %v2448 = vadd.f32 0.0, %v2447
        %v2449 = vpop.f32.mrb[0].mxu0
        %v2450 = vadd.f32 0.0, %v2449
        %v2451 = vpop.f32.mrb[0].mxu0
        %v2452 = vpop.f32.mrb[0].mxu0
        %2453 = vdwg.mxu0
        %v2454 = vadd.f32 %v2367, %v2407
        %v2455 = vadd.f32 %v2368, %v2409
        %v2456 = vadd.f32 %v2369, %v2448
        %v2457 = vadd.f32 %v2370, %v2450
        %v2458 = vmul.f32 %v2454, %v1348
        %v2459 = vmul.f32 %v2455, %v1349
        %v2460 = vmul.f32 %v2456, %v1350
        %v2461 = vmul.f32 %v2457, %v1351
        %v2462 = vtanh.pop %v2458
        %v2463 = vtanh.pop %v2459
        %v2464 = vtanh.pop %v2460
        %v2465 = vtanh.pop %v2461
        %v2466 = vmul.f32 %v2462, %v1348
        %v2467 = vmul.f32 %v2463, %v1349
        %v2468 = vmul.f32 %v2464, %v1350
        %v2469 = vmul.f32 %v2465, %v1351
        %v2470 = vadd.f32 %v2466, %v1352
        %v2471 = vadd.f32 %v2467, %v1353
        %v2472 = vadd.f32 %v2468, %v1354
        %v2473 = vadd.f32 %v2469, %v1355
        %v2474 = vmul.f32 %v2471, %v2363
        %v2475 = vmul.f32 %v2470, %v2472
        %v2476 = vadd.f32 %v2474, %v2475
        %v2477 = vtanh.pop %v2476
        %v2478 = vmul.f32 %v2473, %v2477
        %2479 = vst [vmem:[#allocation3] sm:$0xff] %v2478
        %2480 = vst [vmem:[#allocation4] sm:$0xff] %v2476
        %s2481 = scalar_lea.vmem [#allocation16], 56
        %2482 = vst [vmem:[%s2481] sm:$0xff] %v2478
        %v2483 = vld [vmem:[#allocation3] sm:$0xff]
        %2484 = vst [vmem:[%s483] sm:$0xff] %v2483
        %v2485 = vld [vmem:[#allocation4] sm:$0xff]
        %2486 = vst [vmem:[%s490] sm:$0xff] %v2485
        %s2487 = sand.u32 %s34, 1
        %s2488 = scalar_lea.sflag [#allocation18], %s2487
        %s2489 = sand.u32 %s214, 1
        %s2490 = smul.addr %s2489, 8
        %s2491 = scalar_lea.vmem [#allocation17], %s2490
        %s2492 = sand.u32 %s34, 1
        %s2493 = scalar_lea.sflag [#allocation18], %s2492
        %s2494 = sand.u32 %s240, 1
        %s2495 = smul.addr %s2494, 8
        %s2496 = scalar_lea.vmem [#allocation19], %s2495
        // Predicated region
        $region77: #{music_lstm_forward.2} parent=43 // pred_check
          %p2497 = pneg %p198
        $region78: #{music_lstm_forward.2} parent=43 // pred_check_branch
          %2499 = sbr.rel (%p2497) target = $region80
        $region79: #{music_lstm_forward.2} parent=43 // pred_region
          %s2501 = ssub.s32 1024, 1024
          %2502 = vsyncadd [#allocation7], %s2501
          %s2503 = sshll.u32 [#allocation16], 4
          %s2504 = int_to_ptr.vmem [resolvable:$true] %s2503
          %2509 = dma.vmem_to_hbm [thread:$0]  %s2504, 1024, %s6, [#allocation7], 128, 128, 8
        $region80: #{music_lstm_forward.2} parent=43 // pred_fallthru
          _
        // Predicated region
        $region81: #{music_lstm_forward.2} parent=43 // pred_check
          %p2510 = pneg %p224
        $region82: #{music_lstm_forward.2} parent=43 // pred_check_branch
          %2512 = sbr.rel (%p2510) target = $region84
        $region83: #{music_lstm_forward.2} parent=43 // pred_region
          %s2514 = ssub.s32 128, 128
          %2515 = vsyncadd %s2488, %s2514
          %s2516 = smul.addr %s34, 128
          %s2517 = scalar_lea.hbm %s7, %s2516
          %s2519 = sshll.u32 %s2491, 4
          %s2520 = int_to_ptr.vmem [resolvable:$true] %s2519
          %2522 = dma.vmem_to_hbm [thread:$0]  %s2520, 128, %s2517, %s2488
        $region84: #{music_lstm_forward.2} parent=43 // pred_fallthru
          _
        // Predicated region
        $region85: #{music_lstm_forward.2} parent=43 // pred_check
          %p2523 = pneg %p250
        $region86: #{music_lstm_forward.2} parent=43 // pred_check_branch
          %2525 = sbr.rel (%p2523) target = $region88
        $region87: #{music_lstm_forward.2} parent=43 // pred_region
          %s2527 = ssub.s32 128, 128
          %2528 = vsyncadd %s2493, %s2527
          %s2529 = smul.addr %s34, 128
          %s2530 = scalar_lea.hbm %s8, %s2529
          %s2532 = sshll.u32 %s2496, 4
          %s2533 = int_to_ptr.vmem [resolvable:$true] %s2532
          %2535 = dma.vmem_to_hbm [thread:$0]  %s2533, 128, %s2530, %s2493
        $region88: #{music_lstm_forward.2} parent=43 // pred_fallthru
          _
        // Predicated region
        $region89: #{music_lstm_forward.2} parent=43 // pred_check
          %p2536 = pneg %p198
        $region90: #{music_lstm_forward.2} parent=43 // pred_check_branch
          %2538 = sbr.rel (%p2536) target = $region92
        $region91: #{music_lstm_forward.2} parent=43 // pred_region
          %2539 = dma.done [#allocation7], 1024
        $region92: #{music_lstm_forward.2} parent=43 // pred_fallthru
          _
      $region44: #{music_lstm_forward.2} parent=5 // pred_fallthru
        _
      %p2540 = scmp.le.s32.totalorder 2, %s29
      // Predicated region
      $region93: #{music_lstm_forward.2} parent=5 // pred_check
        %p2541 = pneg %p2540
      $region94: #{music_lstm_forward.2} parent=5 // pred_check_branch
        %2543 = sbr.rel (%p2541) target = $region96
      $region95: #{music_lstm_forward.2} parent=5 // pred_region
        %s2544 = ssub.s32 %s29, 2
        // Predicated region
        $region97: #{music_lstm_forward.2} parent=95 // pred_check
          %p2545 = pneg %p230
        $region98: #{music_lstm_forward.2} parent=95 // pred_check_branch
          %2547 = sbr.rel (%p2545) target = $region100
        $region99: #{music_lstm_forward.2} parent=95 // pred_region
          %s2548 = sand.u32 %s35, 1
          %s2549 = scalar_lea.sflag [#allocation18], %s2548
          %s2550 = sand.u32 %s215, 1
          %s2551 = smul.addr %s2550, 8
          %s2552 = scalar_lea.vmem [#allocation17], %s2551
          %2553 = dma.done %s2549, 128
        $region100: #{music_lstm_forward.2} parent=95 // pred_fallthru
          _
        // Predicated region
        $region101: #{music_lstm_forward.2} parent=95 // pred_check
          %p2554 = pneg %p256
        $region102: #{music_lstm_forward.2} parent=95 // pred_check_branch
          %2556 = sbr.rel (%p2554) target = $region104
        $region103: #{music_lstm_forward.2} parent=95 // pred_region
          %s2557 = sand.u32 %s35, 1
          %s2558 = scalar_lea.sflag [#allocation18], %s2557
          %s2559 = sand.u32 %s241, 1
          %s2560 = smul.addr %s2559, 8
          %s2561 = scalar_lea.vmem [#allocation19], %s2560
          %2562 = dma.done %s2558, 128
        $region104: #{music_lstm_forward.2} parent=95 // pred_fallthru
          _
      $region96: #{music_lstm_forward.2} parent=5 // pred_fallthru
        _
    $region6: #{music_lstm_forward.2} parent=1 // loop_footer
      %s33 = sadd.s32 1, %s29
    $region7: #{music_lstm_forward.2} parent=1 // loop_footer_branch
      %28 = sbr.rel target = $region3
    $region8: #{music_lstm_forward.2} parent=1 // loop_exit
      _
    %2563 = vsyncpa [#allocation6], 1
    %s2564 = scalar_lea.sflag [#allocation6], 1
    %2565 = vsyncpa %s2564, 1
    %2566 = vsyncpa [#allocation9], 1
    %s2567 = scalar_lea.sflag [#allocation9], 1
    %2568 = vsyncpa %s2567, 1
    %2569 = vsyncpa [#allocation12], 1
    %s2570 = scalar_lea.sflag [#allocation12], 1
    %2571 = vsyncpa %s2570, 1
    %2572 = vsyncpa [#allocation15], 1
    %s2573 = scalar_lea.sflag [#allocation15], 1
    %2574 = vsyncpa %s2573, 1
    %2575 = vsyncpa [#allocation7], 1
    %s2576 = scalar_lea.sflag [#allocation7], 1
    %2577 = vsyncpa %s2576, 1
    %2578 = vsyncpa [#allocation18], 1
    %s2579 = scalar_lea.sflag [#allocation18], 1
    %2580 = vsyncpa %s2579, 1

</llo_original>
